<compile_context>
chip_gen: v5e
topology: v5e:2x2
jax: 0.10.0
libtpu: 0.0.40
codegen_flags: <defaults>
</compile_context>

<pallas_src>
import functools
import math

import jax
import jax.numpy as jnp
from jax.experimental import pallas as pl
from jax.experimental.pallas import tpu as pltpu


# ----------------------------------------------------------------------------
# Kernels
# ----------------------------------------------------------------------------

def _ln_linear_kernel(x_ref, g_ref, b_ref, w_ref, bias_ref, o_ref):
    # o = LayerNorm(x) @ W + bias      (eps=1e-5, biased variance)
    x = x_ref[...].astype(jnp.float32)
    mu = jnp.mean(x, axis=-1, keepdims=True)
    xc = x - mu
    var = jnp.mean(xc * xc, axis=-1, keepdims=True)
    z = xc * jax.lax.rsqrt(var + 1e-5) * g_ref[...] + b_ref[...]
    y = jnp.dot(z, w_ref[...], preferred_element_type=jnp.float32) + bias_ref[...]
    o_ref[...] = y.astype(o_ref.dtype)


def _linear_kernel(x_ref, w_ref, bias_ref, o_ref):
    # o = x @ W + bias
    y = jnp.dot(x_ref[...].astype(jnp.float32), w_ref[...],
                preferred_element_type=jnp.float32) + bias_ref[...]
    o_ref[...] = y.astype(o_ref.dtype)


def _ln_ffn_resid_kernel(x_ref, g_ref, b_ref, w1_ref, b1_ref, w2_ref, b2_ref, o_ref):
    # o = x + (ReLU(LayerNorm(x) @ W1 + b1) @ W2 + b2)    (dropout = identity)
    x = x_ref[...].astype(jnp.float32)
    mu = jnp.mean(x, axis=-1, keepdims=True)
    xc = x - mu
    var = jnp.mean(xc * xc, axis=-1, keepdims=True)
    z = xc * jax.lax.rsqrt(var + 1e-5) * g_ref[...] + b_ref[...]
    h = jnp.dot(z, w1_ref[...], preferred_element_type=jnp.float32) + b1_ref[...]
    h = jnp.maximum(h, 0.0)
    y = jnp.dot(h, w2_ref[...], preferred_element_type=jnp.float32) + b2_ref[...]
    o_ref[...] = (x + y).astype(o_ref.dtype)


def _layernorm_kernel(x_ref, g_ref, b_ref, o_ref):
    x = x_ref[...].astype(jnp.float32)
    mu = jnp.mean(x, axis=-1, keepdims=True)
    xc = x - mu
    var = jnp.mean(xc * xc, axis=-1, keepdims=True)
    o_ref[...] = (xc * jax.lax.rsqrt(var + 1e-5) * g_ref[...] + b_ref[...]).astype(o_ref.dtype)


def _attn_out_resid_kernel(q_ref, kv_ref, m_ref, wo_ref, bo_ref, res_ref, o_ref,
                           *, heads, scale):
    # One grid step = one batch element, ALL heads folded (lane-dense output):
    #   scores_h = (q_h * scale) @ k_h^T ; mask==0 -> large-negative ; softmax over keys
    #   out      = sum_h softmax(scores_h) @ v_h @ Wo[h-th row block]  + bo + residual
    # The output projection is fused per head so the kernel writes [Sq, D]
    # (lane-dense, D on the lane axis) exactly once.
    Sq, D = q_ref.shape[1], q_ref.shape[2]
    dk = D // heads

    q = q_ref[0].astype(jnp.float32) * scale        # pre-scale q (touches [Sq,D], not [Sq,Sk])
    kv = kv_ref[0].astype(jnp.float32)              # [Sk, 2D]
    k = kv[:, :D]
    v = kv[:, D:]
    m = m_ref[0]                                    # [Sq_m, Sk] (broadcasts over queries if Sq_m==1)
    wo = wo_ref[...].astype(jnp.float32)            # [D, D]

    acc = jnp.zeros((Sq, D), jnp.float32)
    for h in range(heads):                          # static unroll over heads
        lo = h * dk
        qh = q[:, lo:lo + dk]
        kh = k[:, lo:lo + dk]
        vh = v[:, lo:lo + dk]
        s = jnp.dot(qh, kh.T, preferred_element_type=jnp.float32)       # [Sq, Sk]
        # large finite negative instead of -inf: avoids NaN for fully-masked rows
        s = jnp.where(m == 0, -1e30, s)
        s_max = jnp.max(s, axis=-1, keepdims=True)
        p = jnp.exp(s - s_max)
        denom = jnp.sum(p, axis=-1, keepdims=True)
        p = p * pl.reciprocal(denom, approx=True)                       # EUP slot, ~free
        oh = jnp.dot(p, vh, preferred_element_type=jnp.float32)         # [Sq, dk]
        acc = acc + jnp.dot(oh, wo[lo:lo + dk, :],
                            preferred_element_type=jnp.float32)         # fused out-proj
    y = acc + bo_ref[...]
    o_ref[0] = (res_ref[0].astype(jnp.float32) + y).astype(o_ref.dtype)


# ----------------------------------------------------------------------------
# pallas_call wrappers (row-tiled token dim for the matmul/LN kernels)
# ----------------------------------------------------------------------------

def _row_block(n, max_rows=512):
    # biggest row-tile that divides n and is a multiple of 8 (or n itself)
    for t in (512, 256, 128, 64, 32, 16, 8):
        if t <= max_rows and n % t == 0:
            return t
    return n


def ln_linear(x2d, g, b, w, bias):
    N, Din = x2d.shape
    Dout = w.shape[1]
    TM = _row_block(N)
    return pl.pallas_call(
        _ln_linear_kernel,
        out_shape=jax.ShapeDtypeStruct((N, Dout), x2d.dtype),
        grid=(N // TM,),
        in_specs=[
            pl.BlockSpec((TM, Din), lambda i: (i, 0)),
            pl.BlockSpec((1, Din), lambda i: (0, 0)),
            pl.BlockSpec((1, Din), lambda i: (0, 0)),
            pl.BlockSpec((Din, Dout), lambda i: (0, 0)),
            pl.BlockSpec((1, Dout), lambda i: (0, 0)),
        ],
        out_specs=pl.BlockSpec((TM, Dout), lambda i: (i, 0)),
        compiler_params=pltpu.CompilerParams(dimension_semantics=("parallel",)),
    )(x2d, g, b, w, bias)


def linear(x2d, w, bias):
    N, Din = x2d.shape
    Dout = w.shape[1]
    TM = _row_block(N)
    return pl.pallas_call(
        _linear_kernel,
        out_shape=jax.ShapeDtypeStruct((N, Dout), x2d.dtype),
        grid=(N // TM,),
        in_specs=[
            pl.BlockSpec((TM, Din), lambda i: (i, 0)),
            pl.BlockSpec((Din, Dout), lambda i: (0, 0)),
            pl.BlockSpec((1, Dout), lambda i: (0, 0)),
        ],
        out_specs=pl.BlockSpec((TM, Dout), lambda i: (i, 0)),
        compiler_params=pltpu.CompilerParams(dimension_semantics=("parallel",)),
    )(x2d, w, bias)


def ln_ffn_resid(x2d, g, b, w1, b1, w2, b2):
    N, D = x2d.shape
    Dff = w1.shape[1]
    # smaller row cap: the [TM, Dff] hidden tile is the VMEM hog at real shapes
    # (on v7x budget against 64 MiB physical VMEM; lower TM or bump
    #  vmem_limit_bytes via CompilerParams if Dff is large).
    TM = _row_block(N, max_rows=256)
    return pl.pallas_call(
        _ln_ffn_resid_kernel,
        out_shape=jax.ShapeDtypeStruct((N, D), x2d.dtype),
        grid=(N // TM,),
        in_specs=[
            pl.BlockSpec((TM, D), lambda i: (i, 0)),
            pl.BlockSpec((1, D), lambda i: (0, 0)),
            pl.BlockSpec((1, D), lambda i: (0, 0)),
            pl.BlockSpec((D, Dff), lambda i: (0, 0)),
            pl.BlockSpec((1, Dff), lambda i: (0, 0)),
            pl.BlockSpec((Dff, D), lambda i: (0, 0)),
            pl.BlockSpec((1, D), lambda i: (0, 0)),
        ],
        out_specs=pl.BlockSpec((TM, D), lambda i: (i, 0)),
        compiler_params=pltpu.CompilerParams(dimension_semantics=("parallel",)),
    )(x2d, g, b, w1, b1, w2, b2)


def layer_norm(x2d, g, b):
    N, D = x2d.shape
    TM = _row_block(N)
    return pl.pallas_call(
        _layernorm_kernel,
        out_shape=jax.ShapeDtypeStruct((N, D), x2d.dtype),
        grid=(N // TM,),
        in_specs=[
            pl.BlockSpec((TM, D), lambda i: (i, 0)),
            pl.BlockSpec((1, D), lambda i: (0, 0)),
            pl.BlockSpec((1, D), lambda i: (0, 0)),
        ],
        out_specs=pl.BlockSpec((TM, D), lambda i: (i, 0)),
        compiler_params=pltpu.CompilerParams(dimension_semantics=("parallel",)),
    )(x2d, g, b)


def attention_out_resid(q, kv, mask, wo, bo, resid, *, heads, scale):
    # q: [B, Sq, D]; kv: [B, Sk, 2D]; mask: [Bm, Sqm, Sk] (Bm in {1,B}, Sqm in {1,Sq})
    # returns resid + out_proj(attention(q, k, v))    -> [B, Sq, D] lane-dense
    B, Sq, D = q.shape
    Sk = kv.shape[1]
    Bm, Sqm, Skm = mask.shape
    assert Skm == Sk and Bm in (1, B) and Sqm in (1, Sq)
    if Bm == B:
        mask_idx = lambda bidx: (bidx, 0, 0)
    else:
        mask_idx = lambda bidx: (0, 0, 0)
    kern = functools.partial(_attn_out_resid_kernel, heads=heads, scale=scale)
    return pl.pallas_call(
        kern,
        out_shape=jax.ShapeDtypeStruct((B, Sq, D), q.dtype),
        grid=(B,),
        in_specs=[
            pl.BlockSpec((1, Sq, D), lambda bidx: (bidx, 0, 0)),
            pl.BlockSpec((1, Sk, 2 * D), lambda bidx: (bidx, 0, 0)),
            pl.BlockSpec((1, Sqm, Sk), mask_idx),
            pl.BlockSpec((D, D), lambda bidx: (0, 0)),
            pl.BlockSpec((1, D), lambda bidx: (0, 0)),
            pl.BlockSpec((1, Sq, D), lambda bidx: (bidx, 0, 0)),
        ],
        out_specs=pl.BlockSpec((1, Sq, D), lambda bidx: (bidx, 0, 0)),
        compiler_params=pltpu.CompilerParams(dimension_semantics=("parallel",)),
    )(q, kv, mask, wo, bo, resid)


# ----------------------------------------------------------------------------
# Model glue
# ----------------------------------------------------------------------------

def _prepare_mask(mask):
    # torch mask [Sq_m, Sk, B_m]  ->  [B_m, Sq_m, Sk] float32 (no dense broadcast;
    # broadcasting over queries/batch happens inside the kernel / index_map)
    return jnp.transpose(mask, (2, 0, 1)).astype(jnp.float32)


def decoder_forward(x_sbd, memory_sbd, src_mask, tgt_mask, params, n_layers, heads):
    S, B, D = x_sbd.shape
    S_src = memory_sbd.shape[0]
    dk = D // heads
    scale = 1.0 / math.sqrt(dk)

    x = jnp.transpose(x_sbd, (1, 0, 2))            # [B, S, D]
    mem = jnp.transpose(memory_sbd, (1, 0, 2))     # [B, S_src, D]

    tgt_m = _prepare_mask(tgt_mask)                # [Bm, Sqm, S]
    src_m = _prepare_mask(src_mask)                # [Bm, Sqm, S_src]

    lp = params["layer"]

    # memory K/V projection: layer-invariant (cloned layers share parameters,
    # memory is fixed) -> compute once, reuse every layer.
    kv_mem = linear(mem.reshape(B * S_src, D),
                    lp["ca_wkv"], lp["ca_bkv"]).reshape(B, S_src, 2 * D)

    def layer_body(_, x):
        # --- self-attention sub-block (pre-LN, residual) ---
        qkv = ln_linear(x.reshape(B * S, D), lp["ln_sa_g"], lp["ln_sa_b"],
                        lp["sa_wqkv"], lp["sa_bqkv"]).reshape(B, S, 3 * D)
        q = qkv[:, :, :D]
        kv = qkv[:, :, D:]
        x = attention_out_resid(q, kv, tgt_m, lp["sa_wo"], lp["sa_bo"], x,
                                heads=heads, scale=scale)

        # --- source (cross) attention sub-block ---
        qc = ln_linear(x.reshape(B * S, D), lp["ln_ca_g"], lp["ln_ca_b"],
                       lp["ca_wq"], lp["ca_bq"]).reshape(B, S, D)
        x = attention_out_resid(qc, kv_mem, src_m, lp["ca_wo"], lp["ca_bo"], x,
                                heads=heads, scale=scale)

        # --- feed-forward sub-block ---
        x = ln_ffn_resid(x.reshape(B * S, D), lp["ln_ff_g"], lp["ln_ff_b"],
                         lp["w1"], lp["b1"], lp["w2"], lp["b2"]).reshape(B, S, D)
        return x

    # TODO(synk): nn.Dropout layers are identity here (inference semantics).
    x = jax.lax.fori_loop(0, n_layers, layer_body, x)

    out = layer_norm(x.reshape(B * S, D), params["norm_g"], params["norm_b"])
    return jnp.transpose(out.reshape(B, S, D), (1, 0, 2))   # back to [S, B, D]


# ----------------------------------------------------------------------------
# Deterministic parameter construction (all decoder layers share one clone)
# ----------------------------------------------------------------------------

def _init_linear(key, din, dout):
    kw, kb = jax.random.split(key)
    lim = 1.0 / math.sqrt(din)
    w = jax.random.uniform(kw, (din, dout), jnp.float32, -lim, lim)
    b = jax.random.uniform(kb, (1, dout), jnp.float32, -lim, lim)
    return w, b


def init_params(key, d_model, d_ff):
    ks = jax.random.split(key, 10)
    wq, bq = _init_linear(ks[0], d_model, d_model)
    wk, bk = _init_linear(ks[1], d_model, d_model)
    wv, bv = _init_linear(ks[2], d_model, d_model)
    wo, bo = _init_linear(ks[3], d_model, d_model)
    cwq, cbq = _init_linear(ks[4], d_model, d_model)
    cwk, cbk = _init_linear(ks[5], d_model, d_model)
    cwv, cbv = _init_linear(ks[6], d_model, d_model)
    cwo, cbo = _init_linear(ks[7], d_model, d_model)
    w1, b1 = _init_linear(ks[8], d_model, d_ff)
    w2, b2 = _init_linear(ks[9], d_ff, d_model)
    layer = dict(
        ln_sa_g=jnp.ones((1, d_model), jnp.float32), ln_sa_b=jnp.zeros((1, d_model), jnp.float32),
        ln_ca_g=jnp.ones((1, d_model), jnp.float32), ln_ca_b=jnp.zeros((1, d_model), jnp.float32),
        ln_ff_g=jnp.ones((1, d_model), jnp.float32), ln_ff_b=jnp.zeros((1, d_model), jnp.float32),
        # fused QKV projection for self-attention
        sa_wqkv=jnp.concatenate([wq, wk, wv], axis=1),
        sa_bqkv=jnp.concatenate([bq, bk, bv], axis=1),
        sa_wo=wo, sa_bo=bo,
        # cross attention: Q from x, fused KV from memory
        ca_wq=cwq, ca_bq=cbq,
        ca_wkv=jnp.concatenate([cwk, cwv], axis=1),
        ca_bkv=jnp.concatenate([cbk, cbv], axis=1),
        ca_wo=cwo, ca_bo=cbo,
        w1=w1, b1=b1, w2=w2, b2=b2,
    )
    return dict(
        layer=layer,
        norm_g=jnp.ones((1, d_model), jnp.float32),
        norm_b=jnp.zeros((1, d_model), jnp.float32),
    )


# ----------------------------------------------------------------------------
# Driver
# ----------------------------------------------------------------------------

if __name__ == "__main__":
    S, B, D = 8, 2, 32          # tgt seq, batch, d_model
    S_SRC = 8                   # memory (encoder) seq length
    HEADS, D_FF, N_LAYERS = 4, 64, 2

    root = jax.random.PRNGKey(0)
    kx, km, kp = jax.random.split(root, 3)

    x = jax.random.normal(kx, (S, B, D), jnp.float32)
    memory = jax.random.normal(km, (S_SRC, B, D), jnp.float32)

    # torch-style masks: tgt causal [Sq, Sk, 1]; src all-ones [1, S_src, B]
    causal = jnp.tril(jnp.ones((S, S), jnp.float32))
    tgt_mask = causal[:, :, None]                       # [S, S, 1]
    src_mask = jnp.ones((1, S_SRC, B), jnp.float32)     # [1, S_src, B]

    params = init_params(kp, D, D_FF)

    fwd = jax.jit(functools.partial(decoder_forward, n_layers=N_LAYERS, heads=HEADS))
    out = fwd(x, memory, src_mask, tgt_mask, params)
    jax.block_until_ready(out)

    assert out.shape == (S, B, D) and out.dtype == jnp.float32
    assert bool(jnp.all(jnp.isfinite(out)))
    print("KERNEL_OK")
</pallas_src>

<mosaic_0001>
module attributes {stable_mosaic.version = 11 : i64} {
  func.func @_linear_kernel(%arg0: i32, %arg1: memref<16x32xf32, #tpu.memory_space<vmem>>, %arg2: memref<32x64xf32, #tpu.memory_space<vmem>>, %arg3: memref<1x64xf32, #tpu.memory_space<vmem>>, %arg4: memref<16x64xf32, #tpu.memory_space<vmem>>) attributes {dimension_semantics = [#tpu.dimension_semantics<parallel>], iteration_bounds = array<i64: 1>, scalar_prefetch = 0 : i64, scratch_operands = 0 : i64, tpu.core_type = #tpu.core_type<tc>, window_params = [{transform_indices = @transform_0, window_bounds = array<i64: 16, 32>}, {pipeline_mode = #tpu.pipeline_mode<synchronous>, transform_indices = @transform_1, window_bounds = array<i64: 32, 64>}, {pipeline_mode = #tpu.pipeline_mode<synchronous>, transform_indices = @transform_2, window_bounds = array<i64: 1, 64>}, {transform_indices = @transform_3, window_bounds = array<i64: 16, 64>}]} {
    %c0 = arith.constant 0 : index
    %c0_0 = arith.constant 0 : index
    %0 = vector.load %arg1[%c0, %c0_0] : memref<16x32xf32, #tpu.memory_space<vmem>>, vector<16x32xf32>
    %c0_1 = arith.constant 0 : index
    %c0_2 = arith.constant 0 : index
    %1 = vector.load %arg2[%c0_1, %c0_2] : memref<32x64xf32, #tpu.memory_space<vmem>>, vector<32x64xf32>
    %cst = arith.constant dense<0.000000e+00> : vector<16x64xf32>
    %2 = tpu.matmul %0, %1, %cst {dimension_numbers = #tpu.dot_dimension_numbers<[1], [0], [0], [1], [0, 0, 1, 1], [], []>} : vector<16x32xf32>, vector<32x64xf32>, vector<16x64xf32> -> vector<16x64xf32>
    %c0_3 = arith.constant 0 : index
    %c0_4 = arith.constant 0 : index
    %3 = vector.load %arg3[%c0_3, %c0_4] : memref<1x64xf32, #tpu.memory_space<vmem>>, vector<1x64xf32>
    %4 = vector.broadcast %3 : vector<1x64xf32> to vector<16x64xf32>
    %5 = arith.addf %2, %4 : vector<16x64xf32>
    %c0_5 = arith.constant 0 : index
    %c0_6 = arith.constant 0 : index
    %6 = vector.load %arg4[%c0_5, %c0_6] : memref<16x64xf32, #tpu.memory_space<vmem>>, vector<16x64xf32>
    tpu.vector_store %arg4[%c0_5, %c0_6], %5 {strides = array<i32>} : memref<16x64xf32, #tpu.memory_space<vmem>>, vector<16x64xf32>,
    return
  }
  func.func @transform_0(%arg0: i32) -> (i32, i32) {
    %c0_i32 = arith.constant 0 : i32
    %c0_i32_0 = arith.constant 0 : i32
    return %arg0, %c0_i32 : i32, i32
  }
  func.func @transform_1(%arg0: i32) -> (i32, i32) {
    %c0_i32 = arith.constant 0 : i32
    %c0_i32_0 = arith.constant 0 : i32
    %c0_i32_1 = arith.constant 0 : i32
    return %c0_i32, %c0_i32_0 : i32, i32
  }
  func.func @transform_2(%arg0: i32) -> (i32, i32) {
    %c0_i32 = arith.constant 0 : i32
    %c0_i32_0 = arith.constant 0 : i32
    %c0_i32_1 = arith.constant 0 : i32
    return %c0_i32, %c0_i32_0 : i32, i32
  }
  func.func @transform_3(%arg0: i32) -> (i32, i32) {
    %c0_i32 = arith.constant 0 : i32
    %c0_i32_0 = arith.constant 0 : i32
    return %arg0, %c0_i32 : i32, i32
  }
}

module attributes {stable_mosaic.version = 11 : i64} {
  func.func @_attn_out_resid_kernel(%arg0: i32, %arg1: memref<1x8x32xf32, #tpu.memory_space<vmem>>, %arg2: memref<1x8x64xf32, #tpu.memory_space<vmem>>, %arg3: memref<1x8x8xf32, #tpu.memory_space<vmem>>, %arg4: memref<32x32xf32, #tpu.memory_space<vmem>>, %arg5: memref<1x32xf32, #tpu.memory_space<vmem>>, %arg6: memref<1x8x32xf32, #tpu.memory_space<vmem>>, %arg7: memref<1x8x32xf32, #tpu.memory_space<vmem>>) attributes {dimension_semantics = [#tpu.dimension_semantics<parallel>], iteration_bounds = array<i64: 2>, scalar_prefetch = 0 : i64, scratch_operands = 0 : i64, tpu.core_type = #tpu.core_type<tc>, window_params = [{transform_indices = @transform_0, window_bounds = array<i64: 1, 8, 32>}, {transform_indices = @transform_1, window_bounds = array<i64: 1, 8, 64>}, {pipeline_mode = #tpu.pipeline_mode<synchronous>, transform_indices = @transform_2, window_bounds = array<i64: 1, 8, 8>}, {pipeline_mode = #tpu.pipeline_mode<synchronous>, transform_indices = @transform_3, window_bounds = array<i64: 32, 32>}, {pipeline_mode = #tpu.pipeline_mode<synchronous>, transform_indices = @transform_4, window_bounds = array<i64: 1, 32>}, {transform_indices = @transform_5, window_bounds = array<i64: 1, 8, 32>}, {transform_indices = @transform_6, window_bounds = array<i64: 1, 8, 32>}]} {
    %c0 = arith.constant 0 : index
    %c0_0 = arith.constant 0 : index
    %c0_1 = arith.constant 0 : index
    %0 = vector.load %arg1[%c0, %c0_0, %c0_1] : memref<1x8x32xf32, #tpu.memory_space<vmem>>, vector<1x8x32xf32>
    %1 = vector.shape_cast %0 : vector<1x8x32xf32> to vector<8x32xf32>
    %cst = arith.constant 0.353553385 : f32
    %2 = vector.broadcast %cst : f32 to vector<8x32xf32>
    %3 = arith.mulf %1, %2 : vector<8x32xf32>
    %c0_2 = arith.constant 0 : index
    %c0_3 = arith.constant 0 : index
    %c0_4 = arith.constant 0 : index
    %4 = vector.load %arg2[%c0_2, %c0_3, %c0_4] : memref<1x8x64xf32, #tpu.memory_space<vmem>>, vector<1x8x64xf32>
    %5 = vector.shape_cast %4 : vector<1x8x64xf32> to vector<8x64xf32>
    %6 = vector.extract_strided_slice %5 {offsets = [0, 0], sizes = [8, 32], strides = [1, 1]} : vector<8x64xf32> to vector<8x32xf32>
    %7 = vector.extract_strided_slice %5 {offsets = [0, 32], sizes = [8, 32], strides = [1, 1]} : vector<8x64xf32> to vector<8x32xf32>
    %c0_5 = arith.constant 0 : index
    %c0_6 = arith.constant 0 : index
    %c0_7 = arith.constant 0 : index
    %8 = vector.load %arg3[%c0_5, %c0_6, %c0_7] : memref<1x8x8xf32, #tpu.memory_space<vmem>>, vector<1x8x8xf32>
    %9 = vector.shape_cast %8 : vector<1x8x8xf32> to vector<8x8xf32>
    %c0_8 = arith.constant 0 : index
    %c0_9 = arith.constant 0 : index
    %10 = vector.load %arg4[%c0_8, %c0_9] : memref<32x32xf32, #tpu.memory_space<vmem>>, vector<32x32xf32>
    %cst_10 = arith.constant 0.000000e+00 : f32
    %11 = vector.broadcast %cst_10 : f32 to vector<8x32xf32>
    %12 = vector.extract_strided_slice %3 {offsets = [0, 0], sizes = [8, 8], strides = [1, 1]} : vector<8x32xf32> to vector<8x8xf32>
    %13 = vector.extract_strided_slice %6 {offsets = [0, 0], sizes = [8, 8], strides = [1, 1]} : vector<8x32xf32> to vector<8x8xf32>
    %14 = vector.extract_strided_slice %7 {offsets = [0, 0], sizes = [8, 8], strides = [1, 1]} : vector<8x32xf32> to vector<8x8xf32>
    %15 = tpu.transpose %13, [1, 0] : vector<8x8xf32> -> vector<8x8xf32>
    %cst_11 = arith.constant dense<0.000000e+00> : vector<8x8xf32>
    %16 = tpu.matmul %12, %15, %cst_11 {dimension_numbers = #tpu.dot_dimension_numbers<[1], [0], [0], [1], [0, 0, 1, 1], [], []>} : vector<8x8xf32>, vector<8x8xf32>, vector<8x8xf32> -> vector<8x8xf32>
    %cst_12 = arith.constant 0.000000e+00 : f32
    %17 = vector.broadcast %cst_12 : f32 to vector<8x8xf32>
    %18 = arith.cmpf oeq, %9, %17 : vector<8x8xf32>
    %cst_13 = arith.constant -1.000000e+30 : f32
    %19 = vector.broadcast %cst_13 : f32 to vector<8x8xf32>
    %20 = arith.select %18, %19, %16 : vector<8x8xi1>, vector<8x8xf32>
    %cst_14 = arith.constant dense<0xFF800000> : vector<8xf32>
    %21 = vector.multi_reduction <maximumf>, %20, %cst_14 [1] : vector<8x8xf32> to vector<8xf32>
    %22 = vector.shape_cast %21 : vector<8xf32> to vector<8x1xf32>
    %23 = vector.broadcast %22 : vector<8x1xf32> to vector<8x8xf32>
    %24 = arith.subf %20, %23 : vector<8x8xf32>
    %25 = math.exp %24 : vector<8x8xf32>
    %cst_15 = arith.constant dense<0.000000e+00> : vector<8xf32>
    %26 = vector.multi_reduction <add>, %25, %cst_15 [1] : vector<8x8xf32> to vector<8xf32>
    %27 = vector.shape_cast %26 : vector<8xf32> to vector<8x1xf32>
    %28 = tpu.reciprocal %27 {approx = true} : vector<8x1xf32> -> vector<8x1xf32>
    %29 = vector.broadcast %28 : vector<8x1xf32> to vector<8x8xf32>
    %30 = arith.mulf %25, %29 : vector<8x8xf32>
    %cst_16 = arith.constant dense<0.000000e+00> : vector<8x8xf32>
    %31 = tpu.matmul %30, %14, %cst_16 {dimension_numbers = #tpu.dot_dimension_numbers<[1], [0], [0], [1], [0, 0, 1, 1], [], []>} : vector<8x8xf32>, vector<8x8xf32>, vector<8x8xf32> -> vector<8x8xf32>
    %32 = vector.extract_strided_slice %10 {offsets = [0, 0], sizes = [8, 32], strides = [1, 1]} : vector<32x32xf32> to vector<8x32xf32>
    %cst_17 = arith.constant dense<0.000000e+00> : vector<8x32xf32>
    %33 = tpu.matmul %31, %32, %cst_17 {dimension_numbers = #tpu.dot_dimension_numbers<[1], [0], [0], [1], [0, 0, 1, 1], [], []>} : vector<8x8xf32>, vector<8x32xf32>, vector<8x32xf32> -> vector<8x32xf32>
    %34 = arith.addf %11, %33 : vector<8x32xf32>
    %35 = vector.extract_strided_slice %3 {offsets = [0, 8], sizes = [8, 8], strides = [1, 1]} : vector<8x32xf32> to vector<8x8xf32>
    %36 = vector.extract_strided_slice %6 {offsets = [0, 8], sizes = [8, 8], strides = [1, 1]} : vector<8x32xf32> to vector<8x8xf32>
    %37 = vector.extract_strided_slice %7 {offsets = [0, 8], sizes = [8, 8], strides = [1, 1]} : vector<8x32xf32> to vector<8x8xf32>
    %38 = tpu.transpose %36, [1, 0] : vector<8x8xf32> -> vector<8x8xf32>
    %cst_18 = arith.constant dense<0.000000e+00> : vector<8x8xf32>
    %39 = tpu.matmul %35, %38, %cst_18 {dimension_numbers = #tpu.dot_dimension_numbers<[1], [0], [0], [1], [0, 0, 1, 1], [], []>} : vector<8x8xf32>, vector<8x8xf32>, vector<8x8xf32> -> vector<8x8xf32>
    %cst_19 = arith.constant 0.000000e+00 : f32
    %40 = vector.broadcast %cst_19 : f32 to vector<8x8xf32>
    %41 = arith.cmpf oeq, %9, %40 : vector<8x8xf32>
    %cst_20 = arith.constant -1.000000e+30 : f32
    %42 = vector.broadcast %cst_20 : f32 to vector<8x8xf32>
    %43 = arith.select %41, %42, %39 : vector<8x8xi1>, vector<8x8xf32>
    %cst_21 = arith.constant dense<0xFF800000> : vector<8xf32>
    %44 = vector.multi_reduction <maximumf>, %43, %cst_21 [1] : vector<8x8xf32> to vector<8xf32>
    %45 = vector.shape_cast %44 : vector<8xf32> to vector<8x1xf32>
    %46 = vector.broadcast %45 : vector<8x1xf32> to vector<8x8xf32>
    %47 = arith.subf %43, %46 : vector<8x8xf32>
    %48 = math.exp %47 : vector<8x8xf32>
    %cst_22 = arith.constant dense<0.000000e+00> : vector<8xf32>
    %49 = vector.multi_reduction <add>, %48, %cst_22 [1] : vector<8x8xf32> to vector<8xf32>
    %50 = vector.shape_cast %49 : vector<8xf32> to vector<8x1xf32>
    %51 = tpu.reciprocal %50 {approx = true} : vector<8x1xf32> -> vector<8x1xf32>
    %52 = vector.broadcast %51 : vector<8x1xf32> to vector<8x8xf32>
    %53 = arith.mulf %48, %52 : vector<8x8xf32>
    %cst_23 = arith.constant dense<0.000000e+00> : vector<8x8xf32>
    %54 = tpu.matmul %53, %37, %cst_23 {dimension_numbers = #tpu.dot_dimension_numbers<[1], [0], [0], [1], [0, 0, 1, 1], [], []>} : vector<8x8xf32>, vector<8x8xf32>, vector<8x8xf32> -> vector<8x8xf32>
    %55 = vector.extract_strided_slice %10 {offsets = [8, 0], sizes = [8, 32], strides = [1, 1]} : vector<32x32xf32> to vector<8x32xf32>
    %cst_24 = arith.constant dense<0.000000e+00> : vector<8x32xf32>
    %56 = tpu.matmul %54, %55, %cst_24 {dimension_numbers = #tpu.dot_dimension_numbers<[1], [0], [0], [1], [0, 0, 1, 1], [], []>} : vector<8x8xf32>, vector<8x32xf32>, vector<8x32xf32> -> vector<8x32xf32>
    %57 = arith.addf %34, %56 : vector<8x32xf32>
    %58 = vector.extract_strided_slice %3 {offsets = [0, 16], sizes = [8, 8], strides = [1, 1]} : vector<8x32xf32> to vector<8x8xf32>
    %59 = vector.extract_strided_slice %6 {offsets = [0, 16], sizes = [8, 8], strides = [1, 1]} : vector<8x32xf32> to vector<8x8xf32>
    %60 = vector.extract_strided_slice %7 {offsets = [0, 16], sizes = [8, 8], strides = [1, 1]} : vector<8x32xf32> to vector<8x8xf32>
    %61 = tpu.transpose %59, [1, 0] : vector<8x8xf32> -> vector<8x8xf32>
    %cst_25 = arith.constant dense<0.000000e+00> : vector<8x8xf32>
    %62 = tpu.matmul %58, %61, %cst_25 {dimension_numbers = #tpu.dot_dimension_numbers<[1], [0], [0], [1], [0, 0, 1, 1], [], []>} : vector<8x8xf32>, vector<8x8xf32>, vector<8x8xf32> -> vector<8x8xf32>
    %cst_26 = arith.constant 0.000000e+00 : f32
    %63 = vector.broadcast %cst_26 : f32 to vector<8x8xf32>
    %64 = arith.cmpf oeq, %9, %63 : vector<8x8xf32>
    %cst_27 = arith.constant -1.000000e+30 : f32
    %65 = vector.broadcast %cst_27 : f32 to vector<8x8xf32>
    %66 = arith.select %64, %65, %62 : vector<8x8xi1>, vector<8x8xf32>
    %cst_28 = arith.constant dense<0xFF800000> : vector<8xf32>
    %67 = vector.multi_reduction <maximumf>, %66, %cst_28 [1] : vector<8x8xf32> to vector<8xf32>
    %68 = vector.shape_cast %67 : vector<8xf32> to vector<8x1xf32>
    %69 = vector.broadcast %68 : vector<8x1xf32> to vector<8x8xf32>
    %70 = arith.subf %66, %69 : vector<8x8xf32>
    %71 = math.exp %70 : vector<8x8xf32>
    %cst_29 = arith.constant dense<0.000000e+00> : vector<8xf32>
    %72 = vector.multi_reduction <add>, %71, %cst_29 [1] : vector<8x8xf32> to vector<8xf32>
    %73 = vector.shape_cast %72 : vector<8xf32> to vector<8x1xf32>
    %74 = tpu.reciprocal %73 {approx = true} : vector<8x1xf32> -> vector<8x1xf32>
    %75 = vector.broadcast %74 : vector<8x1xf32> to vector<8x8xf32>
    %76 = arith.mulf %71, %75 : vector<8x8xf32>
    %cst_30 = arith.constant dense<0.000000e+00> : vector<8x8xf32>
    %77 = tpu.matmul %76, %60, %cst_30 {dimension_numbers = #tpu.dot_dimension_numbers<[1], [0], [0], [1], [0, 0, 1, 1], [], []>} : vector<8x8xf32>, vector<8x8xf32>, vector<8x8xf32> -> vector<8x8xf32>
    %78 = vector.extract_strided_slice %10 {offsets = [16, 0], sizes = [8, 32], strides = [1, 1]} : vector<32x32xf32> to vector<8x32xf32>
    %cst_31 = arith.constant dense<0.000000e+00> : vector<8x32xf32>
    %79 = tpu.matmul %77, %78, %cst_31 {dimension_numbers = #tpu.dot_dimension_numbers<[1], [0], [0], [1], [0, 0, 1, 1], [], []>} : vector<8x8xf32>, vector<8x32xf32>, vector<8x32xf32> -> vector<8x32xf32>
    %80 = arith.addf %57, %79 : vector<8x32xf32>
    %81 = vector.extract_strided_slice %3 {offsets = [0, 24], sizes = [8, 8], strides = [1, 1]} : vector<8x32xf32> to vector<8x8xf32>
    %82 = vector.extract_strided_slice %6 {offsets = [0, 24], sizes = [8, 8], strides = [1, 1]} : vector<8x32xf32> to vector<8x8xf32>
    %83 = vector.extract_strided_slice %7 {offsets = [0, 24], sizes = [8, 8], strides = [1, 1]} : vector<8x32xf32> to vector<8x8xf32>
    %84 = tpu.transpose %82, [1, 0] : vector<8x8xf32> -> vector<8x8xf32>
    %cst_32 = arith.constant dense<0.000000e+00> : vector<8x8xf32>
    %85 = tpu.matmul %81, %84, %cst_32 {dimension_numbers = #tpu.dot_dimension_numbers<[1], [0], [0], [1], [0, 0, 1, 1], [], []>} : vector<8x8xf32>, vector<8x8xf32>, vector<8x8xf32> -> vector<8x8xf32>
    %cst_33 = arith.constant 0.000000e+00 : f32
    %86 = vector.broadcast %cst_33 : f32 to vector<8x8xf32>
    %87 = arith.cmpf oeq, %9, %86 : vector<8x8xf32>
    %cst_34 = arith.constant -1.000000e+30 : f32
    %88 = vector.broadcast %cst_34 : f32 to vector<8x8xf32>
    %89 = arith.select %87, %88, %85 : vector<8x8xi1>, vector<8x8xf32>
    %cst_35 = arith.constant dense<0xFF800000> : vector<8xf32>
    %90 = vector.multi_reduction <maximumf>, %89, %cst_35 [1] : vector<8x8xf32> to vector<8xf32>
    %91 = vector.shape_cast %90 : vector<8xf32> to vector<8x1xf32>
    %92 = vector.broadcast %91 : vector<8x1xf32> to vector<8x8xf32>
    %93 = arith.subf %89, %92 : vector<8x8xf32>
    %94 = math.exp %93 : vector<8x8xf32>
    %cst_36 = arith.constant dense<0.000000e+00> : vector<8xf32>
    %95 = vector.multi_reduction <add>, %94, %cst_36 [1] : vector<8x8xf32> to vector<8xf32>
    %96 = vector.shape_cast %95 : vector<8xf32> to vector<8x1xf32>
    %97 = tpu.reciprocal %96 {approx = true} : vector<8x1xf32> -> vector<8x1xf32>
    %98 = vector.broadcast %97 : vector<8x1xf32> to vector<8x8xf32>
    %99 = arith.mulf %94, %98 : vector<8x8xf32>
    %cst_37 = arith.constant dense<0.000000e+00> : vector<8x8xf32>
    %100 = tpu.matmul %99, %83, %cst_37 {dimension_numbers = #tpu.dot_dimension_numbers<[1], [0], [0], [1], [0, 0, 1, 1], [], []>} : vector<8x8xf32>, vector<8x8xf32>, vector<8x8xf32> -> vector<8x8xf32>
    %101 = vector.extract_strided_slice %10 {offsets = [24, 0], sizes = [8, 32], strides = [1, 1]} : vector<32x32xf32> to vector<8x32xf32>
    %cst_38 = arith.constant dense<0.000000e+00> : vector<8x32xf32>
    %102 = tpu.matmul %100, %101, %cst_38 {dimension_numbers = #tpu.dot_dimension_numbers<[1], [0], [0], [1], [0, 0, 1, 1], [], []>} : vector<8x8xf32>, vector<8x32xf32>, vector<8x32xf32> -> vector<8x32xf32>
    %103 = arith.addf %80, %102 : vector<8x32xf32>
    %c0_39 = arith.constant 0 : index
    %c0_40 = arith.constant 0 : index
    %104 = vector.load %arg5[%c0_39, %c0_40] : memref<1x32xf32, #tpu.memory_space<vmem>>, vector<1x32xf32>
    %105 = vector.broadcast %104 : vector<1x32xf32> to vector<8x32xf32>
    %106 = arith.addf %103, %105 : vector<8x32xf32>
    %c0_41 = arith.constant 0 : index
    %c0_42 = arith.constant 0 : index
    %c0_43 = arith.constant 0 : index
    %107 = vector.load %arg6[%c0_41, %c0_42, %c0_43] : memref<1x8x32xf32, #tpu.memory_space<vmem>>, vector<1x8x32xf32>
    %108 = vector.shape_cast %107 : vector<1x8x32xf32> to vector<8x32xf32>
    %109 = arith.addf %108, %106 : vector<8x32xf32>
    %c0_44 = arith.constant 0 : index
    %c0_45 = arith.constant 0 : index
    %c0_46 = arith.constant 0 : index
    %110 = vector.load %arg7[%c0_44, %c0_45, %c0_46] : memref<1x8x32xf32, #tpu.memory_space<vmem>>, vector<1x8x32xf32>
    %111 = vector.shape_cast %110 : vector<1x8x32xf32> to vector<8x32xf32>
    %112 = vector.shape_cast %109 : vector<8x32xf32> to vector<1x8x32xf32>
    tpu.vector_store %arg7[%c0_44, %c0_45, %c0_46], %112 {strides = array<i32>} : memref<1x8x32xf32, #tpu.memory_space<vmem>>, vector<1x8x32xf32>,
    return
  }
  func.func @transform_0(%arg0: i32) -> (i32, i32, i32) {
    %c0_i32 = arith.constant 0 : i32
    %c0_i32_0 = arith.constant 0 : i32
    %c0_i32_1 = arith.constant 0 : i32
    return %arg0, %c0_i32, %c0_i32_0 : i32, i32, i32
  }
  func.func @transform_1(%arg0: i32) -> (i32, i32, i32) {
    %c0_i32 = arith.constant 0 : i32
    %c0_i32_0 = arith.constant 0 : i32
    %c0_i32_1 = arith.constant 0 : i32
    return %arg0, %c0_i32, %c0_i32_0 : i32, i32, i32
  }
  func.func @transform_2(%arg0: i32) -> (i32, i32, i32) {
    %c0_i32 = arith.constant 0 : i32
    %c0_i32_0 = arith.constant 0 : i32
    %c0_i32_1 = arith.constant 0 : i32
    %c0_i32_2 = arith.constant 0 : i32
    return %c0_i32, %c0_i32_0, %c0_i32_1 : i32, i32, i32
  }
  func.func @transform_3(%arg0: i32) -> (i32, i32) {
    %c0_i32 = arith.constant 0 : i32
    %c0_i32_0 = arith.constant 0 : i32
    %c0_i32_1 = arith.constant 0 : i32
    return %c0_i32, %c0_i32_0 : i32, i32
  }
  func.func @transform_4(%arg0: i32) -> (i32, i32) {
    %c0_i32 = arith.constant 0 : i32
    %c0_i32_0 = arith.constant 0 : i32
    %c0_i32_1 = arith.constant 0 : i32
    return %c0_i32, %c0_i32_0 : i32, i32
  }
  func.func @transform_5(%arg0: i32) -> (i32, i32, i32) {
    %c0_i32 = arith.constant 0 : i32
    %c0_i32_0 = arith.constant 0 : i32
    %c0_i32_1 = arith.constant 0 : i32
    return %arg0, %c0_i32, %c0_i32_0 : i32, i32, i32
  }
  func.func @transform_6(%arg0: i32) -> (i32, i32, i32) {
    %c0_i32 = arith.constant 0 : i32
    %c0_i32_0 = arith.constant 0 : i32
    %c0_i32_1 = arith.constant 0 : i32
    return %arg0, %c0_i32, %c0_i32_0 : i32, i32, i32
  }
}

module attributes {stable_mosaic.version = 11 : i64} {
  func.func @_ln_linear_kernel(%arg0: i32, %arg1: memref<16x32xf32, #tpu.memory_space<vmem>>, %arg2: memref<1x32xf32, #tpu.memory_space<vmem>>, %arg3: memref<1x32xf32, #tpu.memory_space<vmem>>, %arg4: memref<32x96xf32, #tpu.memory_space<vmem>>, %arg5: memref<1x96xf32, #tpu.memory_space<vmem>>, %arg6: memref<16x96xf32, #tpu.memory_space<vmem>>) attributes {dimension_semantics = [#tpu.dimension_semantics<parallel>], iteration_bounds = array<i64: 1>, scalar_prefetch = 0 : i64, scratch_operands = 0 : i64, tpu.core_type = #tpu.core_type<tc>, window_params = [{transform_indices = @transform_0, window_bounds = array<i64: 16, 32>}, {pipeline_mode = #tpu.pipeline_mode<synchronous>, transform_indices = @transform_1, window_bounds = array<i64: 1, 32>}, {pipeline_mode = #tpu.pipeline_mode<synchronous>, transform_indices = @transform_2, window_bounds = array<i64: 1, 32>}, {pipeline_mode = #tpu.pipeline_mode<synchronous>, transform_indices = @transform_3, window_bounds = array<i64: 32, 96>}, {pipeline_mode = #tpu.pipeline_mode<synchronous>, transform_indices = @transform_4, window_bounds = array<i64: 1, 96>}, {transform_indices = @transform_5, window_bounds = array<i64: 16, 96>}]} {
    %c0 = arith.constant 0 : index
    %c0_0 = arith.constant 0 : index
    %0 = vector.load %arg1[%c0, %c0_0] : memref<16x32xf32, #tpu.memory_space<vmem>>, vector<16x32xf32>
    %cst = arith.constant dense<0.000000e+00> : vector<16xf32>
    %1 = vector.multi_reduction <add>, %0, %cst [1] : vector<16x32xf32> to vector<16xf32>
    %2 = vector.shape_cast %1 : vector<16xf32> to vector<16x1xf32>
    %cst_1 = arith.constant 3.200000e+01 : f32
    %3 = vector.broadcast %cst_1 : f32 to vector<16x1xf32>
    %4 = arith.divf %2, %3 : vector<16x1xf32>
    %5 = vector.broadcast %4 : vector<16x1xf32> to vector<16x32xf32>
    %6 = arith.subf %0, %5 : vector<16x32xf32>
    %7 = arith.mulf %6, %6 : vector<16x32xf32>
    %cst_2 = arith.constant dense<0.000000e+00> : vector<16xf32>
    %8 = vector.multi_reduction <add>, %7, %cst_2 [1] : vector<16x32xf32> to vector<16xf32>
    %9 = vector.shape_cast %8 : vector<16xf32> to vector<16x1xf32>
    %cst_3 = arith.constant 3.200000e+01 : f32
    %10 = vector.broadcast %cst_3 : f32 to vector<16x1xf32>
    %11 = arith.divf %9, %10 : vector<16x1xf32>
    %cst_4 = arith.constant 9.99999974E-6 : f32
    %12 = vector.broadcast %cst_4 : f32 to vector<16x1xf32>
    %13 = arith.addf %11, %12 : vector<16x1xf32>
    %14 = math.rsqrt %13 : vector<16x1xf32>
    %15 = vector.broadcast %14 : vector<16x1xf32> to vector<16x32xf32>
    %16 = arith.mulf %6, %15 : vector<16x32xf32>
    %c0_5 = arith.constant 0 : index
    %c0_6 = arith.constant 0 : index
    %17 = vector.load %arg2[%c0_5, %c0_6] : memref<1x32xf32, #tpu.memory_space<vmem>>, vector<1x32xf32>
    %18 = vector.broadcast %17 : vector<1x32xf32> to vector<16x32xf32>
    %19 = arith.mulf %16, %18 : vector<16x32xf32>
    %c0_7 = arith.constant 0 : index
    %c0_8 = arith.constant 0 : index
    %20 = vector.load %arg3[%c0_7, %c0_8] : memref<1x32xf32, #tpu.memory_space<vmem>>, vector<1x32xf32>
    %21 = vector.broadcast %20 : vector<1x32xf32> to vector<16x32xf32>
    %22 = arith.addf %19, %21 : vector<16x32xf32>
    %c0_9 = arith.constant 0 : index
    %c0_10 = arith.constant 0 : index
    %23 = vector.load %arg4[%c0_9, %c0_10] : memref<32x96xf32, #tpu.memory_space<vmem>>, vector<32x96xf32>
    %cst_11 = arith.constant dense<0.000000e+00> : vector<16x96xf32>
    %24 = tpu.matmul %22, %23, %cst_11 {dimension_numbers = #tpu.dot_dimension_numbers<[1], [0], [0], [1], [0, 0, 1, 1], [], []>} : vector<16x32xf32>, vector<32x96xf32>, vector<16x96xf32> -> vector<16x96xf32>
    %c0_12 = arith.constant 0 : index
    %c0_13 = arith.constant 0 : index
    %25 = vector.load %arg5[%c0_12, %c0_13] : memref<1x96xf32, #tpu.memory_space<vmem>>, vector<1x96xf32>
    %26 = vector.broadcast %25 : vector<1x96xf32> to vector<16x96xf32>
    %27 = arith.addf %24, %26 : vector<16x96xf32>
    %c0_14 = arith.constant 0 : index
    %c0_15 = arith.constant 0 : index
    %28 = vector.load %arg6[%c0_14, %c0_15] : memref<16x96xf32, #tpu.memory_space<vmem>>, vector<16x96xf32>
    tpu.vector_store %arg6[%c0_14, %c0_15], %27 {strides = array<i32>} : memref<16x96xf32, #tpu.memory_space<vmem>>, vector<16x96xf32>,
    return
  }
  func.func @transform_0(%arg0: i32) -> (i32, i32) {
    %c0_i32 = arith.constant 0 : i32
    %c0_i32_0 = arith.constant 0 : i32
    return %arg0, %c0_i32 : i32, i32
  }
  func.func @transform_1(%arg0: i32) -> (i32, i32) {
    %c0_i32 = arith.constant 0 : i32
    %c0_i32_0 = arith.constant 0 : i32
    %c0_i32_1 = arith.constant 0 : i32
    return %c0_i32, %c0_i32_0 : i32, i32
  }
  func.func @transform_2(%arg0: i32) -> (i32, i32) {
    %c0_i32 = arith.constant 0 : i32
    %c0_i32_0 = arith.constant 0 : i32
    %c0_i32_1 = arith.constant 0 : i32
    return %c0_i32, %c0_i32_0 : i32, i32
  }
  func.func @transform_3(%arg0: i32) -> (i32, i32) {
    %c0_i32 = arith.constant 0 : i32
    %c0_i32_0 = arith.constant 0 : i32
    %c0_i32_1 = arith.constant 0 : i32
    return %c0_i32, %c0_i32_0 : i32, i32
  }
  func.func @transform_4(%arg0: i32) -> (i32, i32) {
    %c0_i32 = arith.constant 0 : i32
    %c0_i32_0 = arith.constant 0 : i32
    %c0_i32_1 = arith.constant 0 : i32
    return %c0_i32, %c0_i32_0 : i32, i32
  }
  func.func @transform_5(%arg0: i32) -> (i32, i32) {
    %c0_i32 = arith.constant 0 : i32
    %c0_i32_0 = arith.constant 0 : i32
    return %arg0, %c0_i32 : i32, i32
  }
}

module attributes {stable_mosaic.version = 11 : i64} {
  func.func @_ln_linear_kernel(%arg0: i32, %arg1: memref<16x32xf32, #tpu.memory_space<vmem>>, %arg2: memref<1x32xf32, #tpu.memory_space<vmem>>, %arg3: memref<1x32xf32, #tpu.memory_space<vmem>>, %arg4: memref<32x32xf32, #tpu.memory_space<vmem>>, %arg5: memref<1x32xf32, #tpu.memory_space<vmem>>, %arg6: memref<16x32xf32, #tpu.memory_space<vmem>>) attributes {dimension_semantics = [#tpu.dimension_semantics<parallel>], iteration_bounds = array<i64: 1>, scalar_prefetch = 0 : i64, scratch_operands = 0 : i64, tpu.core_type = #tpu.core_type<tc>, window_params = [{transform_indices = @transform_0, window_bounds = array<i64: 16, 32>}, {pipeline_mode = #tpu.pipeline_mode<synchronous>, transform_indices = @transform_1, window_bounds = array<i64: 1, 32>}, {pipeline_mode = #tpu.pipeline_mode<synchronous>, transform_indices = @transform_2, window_bounds = array<i64: 1, 32>}, {pipeline_mode = #tpu.pipeline_mode<synchronous>, transform_indices = @transform_3, window_bounds = array<i64: 32, 32>}, {pipeline_mode = #tpu.pipeline_mode<synchronous>, transform_indices = @transform_4, window_bounds = array<i64: 1, 32>}, {transform_indices = @transform_5, window_bounds = array<i64: 16, 32>}]} {
    %c0 = arith.constant 0 : index
    %c0_0 = arith.constant 0 : index
    %0 = vector.load %arg1[%c0, %c0_0] : memref<16x32xf32, #tpu.memory_space<vmem>>, vector<16x32xf32>
    %cst = arith.constant dense<0.000000e+00> : vector<16xf32>
    %1 = vector.multi_reduction <add>, %0, %cst [1] : vector<16x32xf32> to vector<16xf32>
    %2 = vector.shape_cast %1 : vector<16xf32> to vector<16x1xf32>
    %cst_1 = arith.constant 3.200000e+01 : f32
    %3 = vector.broadcast %cst_1 : f32 to vector<16x1xf32>
    %4 = arith.divf %2, %3 : vector<16x1xf32>
    %5 = vector.broadcast %4 : vector<16x1xf32> to vector<16x32xf32>
    %6 = arith.subf %0, %5 : vector<16x32xf32>
    %7 = arith.mulf %6, %6 : vector<16x32xf32>
    %cst_2 = arith.constant dense<0.000000e+00> : vector<16xf32>
    %8 = vector.multi_reduction <add>, %7, %cst_2 [1] : vector<16x32xf32> to vector<16xf32>
    %9 = vector.shape_cast %8 : vector<16xf32> to vector<16x1xf32>
    %cst_3 = arith.constant 3.200000e+01 : f32
    %10 = vector.broadcast %cst_3 : f32 to vector<16x1xf32>
    %11 = arith.divf %9, %10 : vector<16x1xf32>
    %cst_4 = arith.constant 9.99999974E-6 : f32
    %12 = vector.broadcast %cst_4 : f32 to vector<16x1xf32>
    %13 = arith.addf %11, %12 : vector<16x1xf32>
    %14 = math.rsqrt %13 : vector<16x1xf32>
    %15 = vector.broadcast %14 : vector<16x1xf32> to vector<16x32xf32>
    %16 = arith.mulf %6, %15 : vector<16x32xf32>
    %c0_5 = arith.constant 0 : index
    %c0_6 = arith.constant 0 : index
    %17 = vector.load %arg2[%c0_5, %c0_6] : memref<1x32xf32, #tpu.memory_space<vmem>>, vector<1x32xf32>
    %18 = vector.broadcast %17 : vector<1x32xf32> to vector<16x32xf32>
    %19 = arith.mulf %16, %18 : vector<16x32xf32>
    %c0_7 = arith.constant 0 : index
    %c0_8 = arith.constant 0 : index
    %20 = vector.load %arg3[%c0_7, %c0_8] : memref<1x32xf32, #tpu.memory_space<vmem>>, vector<1x32xf32>
    %21 = vector.broadcast %20 : vector<1x32xf32> to vector<16x32xf32>
    %22 = arith.addf %19, %21 : vector<16x32xf32>
    %c0_9 = arith.constant 0 : index
    %c0_10 = arith.constant 0 : index
    %23 = vector.load %arg4[%c0_9, %c0_10] : memref<32x32xf32, #tpu.memory_space<vmem>>, vector<32x32xf32>
    %cst_11 = arith.constant dense<0.000000e+00> : vector<16x32xf32>
    %24 = tpu.matmul %22, %23, %cst_11 {dimension_numbers = #tpu.dot_dimension_numbers<[1], [0], [0], [1], [0, 0, 1, 1], [], []>} : vector<16x32xf32>, vector<32x32xf32>, vector<16x32xf32> -> vector<16x32xf32>
    %c0_12 = arith.constant 0 : index
    %c0_13 = arith.constant 0 : index
    %25 = vector.load %arg5[%c0_12, %c0_13] : memref<1x32xf32, #tpu.memory_space<vmem>>, vector<1x32xf32>
    %26 = vector.broadcast %25 : vector<1x32xf32> to vector<16x32xf32>
    %27 = arith.addf %24, %26 : vector<16x32xf32>
    %c0_14 = arith.constant 0 : index
    %c0_15 = arith.constant 0 : index
    %28 = vector.load %arg6[%c0_14, %c0_15] : memref<16x32xf32, #tpu.memory_space<vmem>>, vector<16x32xf32>
    tpu.vector_store %arg6[%c0_14, %c0_15], %27 {strides = array<i32>} : memref<16x32xf32, #tpu.memory_space<vmem>>, vector<16x32xf32>,
    return
  }
  func.func @transform_0(%arg0: i32) -> (i32, i32) {
    %c0_i32 = arith.constant 0 : i32
    %c0_i32_0 = arith.constant 0 : i32
    return %arg0, %c0_i32 : i32, i32
  }
  func.func @transform_1(%arg0: i32) -> (i32, i32) {
    %c0_i32 = arith.constant 0 : i32
    %c0_i32_0 = arith.constant 0 : i32
    %c0_i32_1 = arith.constant 0 : i32
    return %c0_i32, %c0_i32_0 : i32, i32
  }
  func.func @transform_2(%arg0: i32) -> (i32, i32) {
    %c0_i32 = arith.constant 0 : i32
    %c0_i32_0 = arith.constant 0 : i32
    %c0_i32_1 = arith.constant 0 : i32
    return %c0_i32, %c0_i32_0 : i32, i32
  }
  func.func @transform_3(%arg0: i32) -> (i32, i32) {
    %c0_i32 = arith.constant 0 : i32
    %c0_i32_0 = arith.constant 0 : i32
    %c0_i32_1 = arith.constant 0 : i32
    return %c0_i32, %c0_i32_0 : i32, i32
  }
  func.func @transform_4(%arg0: i32) -> (i32, i32) {
    %c0_i32 = arith.constant 0 : i32
    %c0_i32_0 = arith.constant 0 : i32
    %c0_i32_1 = arith.constant 0 : i32
    return %c0_i32, %c0_i32_0 : i32, i32
  }
  func.func @transform_5(%arg0: i32) -> (i32, i32) {
    %c0_i32 = arith.constant 0 : i32
    %c0_i32_0 = arith.constant 0 : i32
    return %arg0, %c0_i32 : i32, i32
  }
}

module attributes {stable_mosaic.version = 11 : i64} {
  func.func @_attn_out_resid_kernel(%arg0: i32, %arg1: memref<1x8x32xf32, #tpu.memory_space<vmem>>, %arg2: memref<1x8x64xf32, #tpu.memory_space<vmem>>, %arg3: memref<1x1x8xf32, #tpu.memory_space<vmem>>, %arg4: memref<32x32xf32, #tpu.memory_space<vmem>>, %arg5: memref<1x32xf32, #tpu.memory_space<vmem>>, %arg6: memref<1x8x32xf32, #tpu.memory_space<vmem>>, %arg7: memref<1x8x32xf32, #tpu.memory_space<vmem>>) attributes {dimension_semantics = [#tpu.dimension_semantics<parallel>], iteration_bounds = array<i64: 2>, scalar_prefetch = 0 : i64, scratch_operands = 0 : i64, tpu.core_type = #tpu.core_type<tc>, window_params = [{transform_indices = @transform_0, window_bounds = array<i64: 1, 8, 32>}, {transform_indices = @transform_1, window_bounds = array<i64: 1, 8, 64>}, {transform_indices = @transform_2, window_bounds = array<i64: 1, 1, 8>}, {pipeline_mode = #tpu.pipeline_mode<synchronous>, transform_indices = @transform_3, window_bounds = array<i64: 32, 32>}, {pipeline_mode = #tpu.pipeline_mode<synchronous>, transform_indices = @transform_4, window_bounds = array<i64: 1, 32>}, {transform_indices = @transform_5, window_bounds = array<i64: 1, 8, 32>}, {transform_indices = @transform_6, window_bounds = array<i64: 1, 8, 32>}]} {
    %c0 = arith.constant 0 : index
    %c0_0 = arith.constant 0 : index
    %c0_1 = arith.constant 0 : index
    %0 = vector.load %arg1[%c0, %c0_0, %c0_1] : memref<1x8x32xf32, #tpu.memory_space<vmem>>, vector<1x8x32xf32>
    %1 = vector.shape_cast %0 : vector<1x8x32xf32> to vector<8x32xf32>
    %cst = arith.constant 0.353553385 : f32
    %2 = vector.broadcast %cst : f32 to vector<8x32xf32>
    %3 = arith.mulf %1, %2 : vector<8x32xf32>
    %c0_2 = arith.constant 0 : index
    %c0_3 = arith.constant 0 : index
    %c0_4 = arith.constant 0 : index
    %4 = vector.load %arg2[%c0_2, %c0_3, %c0_4] : memref<1x8x64xf32, #tpu.memory_space<vmem>>, vector<1x8x64xf32>
    %5 = vector.shape_cast %4 : vector<1x8x64xf32> to vector<8x64xf32>
    %6 = vector.extract_strided_slice %5 {offsets = [0, 0], sizes = [8, 32], strides = [1, 1]} : vector<8x64xf32> to vector<8x32xf32>
    %7 = vector.extract_strided_slice %5 {offsets = [0, 32], sizes = [8, 32], strides = [1, 1]} : vector<8x64xf32> to vector<8x32xf32>
    %c0_5 = arith.constant 0 : index
    %c0_6 = arith.constant 0 : index
    %c0_7 = arith.constant 0 : index
    %8 = vector.load %arg3[%c0_5, %c0_6, %c0_7] : memref<1x1x8xf32, #tpu.memory_space<vmem>>, vector<1x1x8xf32>
    %9 = vector.shape_cast %8 : vector<1x1x8xf32> to vector<1x8xf32>
    %c0_8 = arith.constant 0 : index
    %c0_9 = arith.constant 0 : index
    %10 = vector.load %arg4[%c0_8, %c0_9] : memref<32x32xf32, #tpu.memory_space<vmem>>, vector<32x32xf32>
    %cst_10 = arith.constant 0.000000e+00 : f32
    %11 = vector.broadcast %cst_10 : f32 to vector<8x32xf32>
    %12 = vector.extract_strided_slice %3 {offsets = [0, 0], sizes = [8, 8], strides = [1, 1]} : vector<8x32xf32> to vector<8x8xf32>
    %13 = vector.extract_strided_slice %6 {offsets = [0, 0], sizes = [8, 8], strides = [1, 1]} : vector<8x32xf32> to vector<8x8xf32>
    %14 = vector.extract_strided_slice %7 {offsets = [0, 0], sizes = [8, 8], strides = [1, 1]} : vector<8x32xf32> to vector<8x8xf32>
    %15 = tpu.transpose %13, [1, 0] : vector<8x8xf32> -> vector<8x8xf32>
    %cst_11 = arith.constant dense<0.000000e+00> : vector<8x8xf32>
    %16 = tpu.matmul %12, %15, %cst_11 {dimension_numbers = #tpu.dot_dimension_numbers<[1], [0], [0], [1], [0, 0, 1, 1], [], []>} : vector<8x8xf32>, vector<8x8xf32>, vector<8x8xf32> -> vector<8x8xf32>
    %cst_12 = arith.constant 0.000000e+00 : f32
    %17 = vector.broadcast %cst_12 : f32 to vector<1x8xf32>
    %18 = arith.cmpf oeq, %9, %17 : vector<1x8xf32>
    %cst_13 = arith.constant -1.000000e+30 : f32
    %19 = vector.shape_cast %18 : vector<1x8xi1> to vector<1x8xi1>
    %20 = vector.broadcast %19 : vector<1x8xi1> to vector<8x8xi1>
    %21 = vector.broadcast %cst_13 : f32 to vector<8x8xf32>
    %22 = arith.select %20, %21, %16 : vector<8x8xi1>, vector<8x8xf32>
    %cst_14 = arith.constant dense<0xFF800000> : vector<8xf32>
    %23 = vector.multi_reduction <maximumf>, %22, %cst_14 [1] : vector<8x8xf32> to vector<8xf32>
    %24 = vector.shape_cast %23 : vector<8xf32> to vector<8x1xf32>
    %25 = vector.broadcast %24 : vector<8x1xf32> to vector<8x8xf32>
    %26 = arith.subf %22, %25 : vector<8x8xf32>
    %27 = math.exp %26 : vector<8x8xf32>
    %cst_15 = arith.constant dense<0.000000e+00> : vector<8xf32>
    %28 = vector.multi_reduction <add>, %27, %cst_15 [1] : vector<8x8xf32> to vector<8xf32>
    %29 = vector.shape_cast %28 : vector<8xf32> to vector<8x1xf32>
    %30 = tpu.reciprocal %29 {approx = true} : vector<8x1xf32> -> vector<8x1xf32>
    %31 = vector.broadcast %30 : vector<8x1xf32> to vector<8x8xf32>
    %32 = arith.mulf %27, %31 : vector<8x8xf32>
    %cst_16 = arith.constant dense<0.000000e+00> : vector<8x8xf32>
    %33 = tpu.matmul %32, %14, %cst_16 {dimension_numbers = #tpu.dot_dimension_numbers<[1], [0], [0], [1], [0, 0, 1, 1], [], []>} : vector<8x8xf32>, vector<8x8xf32>, vector<8x8xf32> -> vector<8x8xf32>
    %34 = vector.extract_strided_slice %10 {offsets = [0, 0], sizes = [8, 32], strides = [1, 1]} : vector<32x32xf32> to vector<8x32xf32>
    %cst_17 = arith.constant dense<0.000000e+00> : vector<8x32xf32>
    %35 = tpu.matmul %33, %34, %cst_17 {dimension_numbers = #tpu.dot_dimension_numbers<[1], [0], [0], [1], [0, 0, 1, 1], [], []>} : vector<8x8xf32>, vector<8x32xf32>, vector<8x32xf32> -> vector<8x32xf32>
    %36 = arith.addf %11, %35 : vector<8x32xf32>
    %37 = vector.extract_strided_slice %3 {offsets = [0, 8], sizes = [8, 8], strides = [1, 1]} : vector<8x32xf32> to vector<8x8xf32>
    %38 = vector.extract_strided_slice %6 {offsets = [0, 8], sizes = [8, 8], strides = [1, 1]} : vector<8x32xf32> to vector<8x8xf32>
    %39 = vector.extract_strided_slice %7 {offsets = [0, 8], sizes = [8, 8], strides = [1, 1]} : vector<8x32xf32> to vector<8x8xf32>
    %40 = tpu.transpose %38, [1, 0] : vector<8x8xf32> -> vector<8x8xf32>
    %cst_18 = arith.constant dense<0.000000e+00> : vector<8x8xf32>
    %41 = tpu.matmul %37, %40, %cst_18 {dimension_numbers = #tpu.dot_dimension_numbers<[1], [0], [0], [1], [0, 0, 1, 1], [], []>} : vector<8x8xf32>, vector<8x8xf32>, vector<8x8xf32> -> vector<8x8xf32>
    %cst_19 = arith.constant 0.000000e+00 : f32
    %42 = vector.broadcast %cst_19 : f32 to vector<1x8xf32>
    %43 = arith.cmpf oeq, %9, %42 : vector<1x8xf32>
    %cst_20 = arith.constant -1.000000e+30 : f32
    %44 = vector.shape_cast %43 : vector<1x8xi1> to vector<1x8xi1>
    %45 = vector.broadcast %44 : vector<1x8xi1> to vector<8x8xi1>
    %46 = vector.broadcast %cst_20 : f32 to vector<8x8xf32>
    %47 = arith.select %45, %46, %41 : vector<8x8xi1>, vector<8x8xf32>
    %cst_21 = arith.constant dense<0xFF800000> : vector<8xf32>
    %48 = vector.multi_reduction <maximumf>, %47, %cst_21 [1] : vector<8x8xf32> to vector<8xf32>
    %49 = vector.shape_cast %48 : vector<8xf32> to vector<8x1xf32>
    %50 = vector.broadcast %49 : vector<8x1xf32> to vector<8x8xf32>
    %51 = arith.subf %47, %50 : vector<8x8xf32>
    %52 = math.exp %51 : vector<8x8xf32>
    %cst_22 = arith.constant dense<0.000000e+00> : vector<8xf32>
    %53 = vector.multi_reduction <add>, %52, %cst_22 [1] : vector<8x8xf32> to vector<8xf32>
    %54 = vector.shape_cast %53 : vector<8xf32> to vector<8x1xf32>
    %55 = tpu.reciprocal %54 {approx = true} : vector<8x1xf32> -> vector<8x1xf32>
    %56 = vector.broadcast %55 : vector<8x1xf32> to vector<8x8xf32>
    %57 = arith.mulf %52, %56 : vector<8x8xf32>
    %cst_23 = arith.constant dense<0.000000e+00> : vector<8x8xf32>
    %58 = tpu.matmul %57, %39, %cst_23 {dimension_numbers = #tpu.dot_dimension_numbers<[1], [0], [0], [1], [0, 0, 1, 1], [], []>} : vector<8x8xf32>, vector<8x8xf32>, vector<8x8xf32> -> vector<8x8xf32>
    %59 = vector.extract_strided_slice %10 {offsets = [8, 0], sizes = [8, 32], strides = [1, 1]} : vector<32x32xf32> to vector<8x32xf32>
    %cst_24 = arith.constant dense<0.000000e+00> : vector<8x32xf32>
    %60 = tpu.matmul %58, %59, %cst_24 {dimension_numbers = #tpu.dot_dimension_numbers<[1], [0], [0], [1], [0, 0, 1, 1], [], []>} : vector<8x8xf32>, vector<8x32xf32>, vector<8x32xf32> -> vector<8x32xf32>
    %61 = arith.addf %36, %60 : vector<8x32xf32>
    %62 = vector.extract_strided_slice %3 {offsets = [0, 16], sizes = [8, 8], strides = [1, 1]} : vector<8x32xf32> to vector<8x8xf32>
    %63 = vector.extract_strided_slice %6 {offsets = [0, 16], sizes = [8, 8], strides = [1, 1]} : vector<8x32xf32> to vector<8x8xf32>
    %64 = vector.extract_strided_slice %7 {offsets = [0, 16], sizes = [8, 8], strides = [1, 1]} : vector<8x32xf32> to vector<8x8xf32>
    %65 = tpu.transpose %63, [1, 0] : vector<8x8xf32> -> vector<8x8xf32>
    %cst_25 = arith.constant dense<0.000000e+00> : vector<8x8xf32>
    %66 = tpu.matmul %62, %65, %cst_25 {dimension_numbers = #tpu.dot_dimension_numbers<[1], [0], [0], [1], [0, 0, 1, 1], [], []>} : vector<8x8xf32>, vector<8x8xf32>, vector<8x8xf32> -> vector<8x8xf32>
    %cst_26 = arith.constant 0.000000e+00 : f32
    %67 = vector.broadcast %cst_26 : f32 to vector<1x8xf32>
    %68 = arith.cmpf oeq, %9, %67 : vector<1x8xf32>
    %cst_27 = arith.constant -1.000000e+30 : f32
    %69 = vector.shape_cast %68 : vector<1x8xi1> to vector<1x8xi1>
    %70 = vector.broadcast %69 : vector<1x8xi1> to vector<8x8xi1>
    %71 = vector.broadcast %cst_27 : f32 to vector<8x8xf32>
    %72 = arith.select %70, %71, %66 : vector<8x8xi1>, vector<8x8xf32>
    %cst_28 = arith.constant dense<0xFF800000> : vector<8xf32>
    %73 = vector.multi_reduction <maximumf>, %72, %cst_28 [1] : vector<8x8xf32> to vector<8xf32>
    %74 = vector.shape_cast %73 : vector<8xf32> to vector<8x1xf32>
    %75 = vector.broadcast %74 : vector<8x1xf32> to vector<8x8xf32>
    %76 = arith.subf %72, %75 : vector<8x8xf32>
    %77 = math.exp %76 : vector<8x8xf32>
    %cst_29 = arith.constant dense<0.000000e+00> : vector<8xf32>
    %78 = vector.multi_reduction <add>, %77, %cst_29 [1] : vector<8x8xf32> to vector<8xf32>
    %79 = vector.shape_cast %78 : vector<8xf32> to vector<8x1xf32>
    %80 = tpu.reciprocal %79 {approx = true} : vector<8x1xf32> -> vector<8x1xf32>
    %81 = vector.broadcast %80 : vector<8x1xf32> to vector<8x8xf32>
    %82 = arith.mulf %77, %81 : vector<8x8xf32>
    %cst_30 = arith.constant dense<0.000000e+00> : vector<8x8xf32>
    %83 = tpu.matmul %82, %64, %cst_30 {dimension_numbers = #tpu.dot_dimension_numbers<[1], [0], [0], [1], [0, 0, 1, 1], [], []>} : vector<8x8xf32>, vector<8x8xf32>, vector<8x8xf32> -> vector<8x8xf32>
    %84 = vector.extract_strided_slice %10 {offsets = [16, 0], sizes = [8, 32], strides = [1, 1]} : vector<32x32xf32> to vector<8x32xf32>
    %cst_31 = arith.constant dense<0.000000e+00> : vector<8x32xf32>
    %85 = tpu.matmul %83, %84, %cst_31 {dimension_numbers = #tpu.dot_dimension_numbers<[1], [0], [0], [1], [0, 0, 1, 1], [], []>} : vector<8x8xf32>, vector<8x32xf32>, vector<8x32xf32> -> vector<8x32xf32>
    %86 = arith.addf %61, %85 : vector<8x32xf32>
    %87 = vector.extract_strided_slice %3 {offsets = [0, 24], sizes = [8, 8], strides = [1, 1]} : vector<8x32xf32> to vector<8x8xf32>
    %88 = vector.extract_strided_slice %6 {offsets = [0, 24], sizes = [8, 8], strides = [1, 1]} : vector<8x32xf32> to vector<8x8xf32>
    %89 = vector.extract_strided_slice %7 {offsets = [0, 24], sizes = [8, 8], strides = [1, 1]} : vector<8x32xf32> to vector<8x8xf32>
    %90 = tpu.transpose %88, [1, 0] : vector<8x8xf32> -> vector<8x8xf32>
    %cst_32 = arith.constant dense<0.000000e+00> : vector<8x8xf32>
    %91 = tpu.matmul %87, %90, %cst_32 {dimension_numbers = #tpu.dot_dimension_numbers<[1], [0], [0], [1], [0, 0, 1, 1], [], []>} : vector<8x8xf32>, vector<8x8xf32>, vector<8x8xf32> -> vector<8x8xf32>
    %cst_33 = arith.constant 0.000000e+00 : f32
    %92 = vector.broadcast %cst_33 : f32 to vector<1x8xf32>
    %93 = arith.cmpf oeq, %9, %92 : vector<1x8xf32>
    %cst_34 = arith.constant -1.000000e+30 : f32
    %94 = vector.shape_cast %93 : vector<1x8xi1> to vector<1x8xi1>
    %95 = vector.broadcast %94 : vector<1x8xi1> to vector<8x8xi1>
    %96 = vector.broadcast %cst_34 : f32 to vector<8x8xf32>
    %97 = arith.select %95, %96, %91 : vector<8x8xi1>, vector<8x8xf32>
    %cst_35 = arith.constant dense<0xFF800000> : vector<8xf32>
    %98 = vector.multi_reduction <maximumf>, %97, %cst_35 [1] : vector<8x8xf32> to vector<8xf32>
    %99 = vector.shape_cast %98 : vector<8xf32> to vector<8x1xf32>
    %100 = vector.broadcast %99 : vector<8x1xf32> to vector<8x8xf32>
    %101 = arith.subf %97, %100 : vector<8x8xf32>
    %102 = math.exp %101 : vector<8x8xf32>
    %cst_36 = arith.constant dense<0.000000e+00> : vector<8xf32>
    %103 = vector.multi_reduction <add>, %102, %cst_36 [1] : vector<8x8xf32> to vector<8xf32>
    %104 = vector.shape_cast %103 : vector<8xf32> to vector<8x1xf32>
    %105 = tpu.reciprocal %104 {approx = true} : vector<8x1xf32> -> vector<8x1xf32>
    %106 = vector.broadcast %105 : vector<8x1xf32> to vector<8x8xf32>
    %107 = arith.mulf %102, %106 : vector<8x8xf32>
    %cst_37 = arith.constant dense<0.000000e+00> : vector<8x8xf32>
    %108 = tpu.matmul %107, %89, %cst_37 {dimension_numbers = #tpu.dot_dimension_numbers<[1], [0], [0], [1], [0, 0, 1, 1], [], []>} : vector<8x8xf32>, vector<8x8xf32>, vector<8x8xf32> -> vector<8x8xf32>
    %109 = vector.extract_strided_slice %10 {offsets = [24, 0], sizes = [8, 32], strides = [1, 1]} : vector<32x32xf32> to vector<8x32xf32>
    %cst_38 = arith.constant dense<0.000000e+00> : vector<8x32xf32>
    %110 = tpu.matmul %108, %109, %cst_38 {dimension_numbers = #tpu.dot_dimension_numbers<[1], [0], [0], [1], [0, 0, 1, 1], [], []>} : vector<8x8xf32>, vector<8x32xf32>, vector<8x32xf32> -> vector<8x32xf32>
    %111 = arith.addf %86, %110 : vector<8x32xf32>
    %c0_39 = arith.constant 0 : index
    %c0_40 = arith.constant 0 : index
    %112 = vector.load %arg5[%c0_39, %c0_40] : memref<1x32xf32, #tpu.memory_space<vmem>>, vector<1x32xf32>
    %113 = vector.broadcast %112 : vector<1x32xf32> to vector<8x32xf32>
    %114 = arith.addf %111, %113 : vector<8x32xf32>
    %c0_41 = arith.constant 0 : index
    %c0_42 = arith.constant 0 : index
    %c0_43 = arith.constant 0 : index
    %115 = vector.load %arg6[%c0_41, %c0_42, %c0_43] : memref<1x8x32xf32, #tpu.memory_space<vmem>>, vector<1x8x32xf32>
    %116 = vector.shape_cast %115 : vector<1x8x32xf32> to vector<8x32xf32>
    %117 = arith.addf %116, %114 : vector<8x32xf32>
    %c0_44 = arith.constant 0 : index
    %c0_45 = arith.constant 0 : index
    %c0_46 = arith.constant 0 : index
    %118 = vector.load %arg7[%c0_44, %c0_45, %c0_46] : memref<1x8x32xf32, #tpu.memory_space<vmem>>, vector<1x8x32xf32>
    %119 = vector.shape_cast %118 : vector<1x8x32xf32> to vector<8x32xf32>
    %120 = vector.shape_cast %117 : vector<8x32xf32> to vector<1x8x32xf32>
    tpu.vector_store %arg7[%c0_44, %c0_45, %c0_46], %120 {strides = array<i32>} : memref<1x8x32xf32, #tpu.memory_space<vmem>>, vector<1x8x32xf32>,
    return
  }
  func.func @transform_0(%arg0: i32) -> (i32, i32, i32) {
    %c0_i32 = arith.constant 0 : i32
    %c0_i32_0 = arith.constant 0 : i32
    %c0_i32_1 = arith.constant 0 : i32
    return %arg0, %c0_i32, %c0_i32_0 : i32, i32, i32
  }
  func.func @transform_1(%arg0: i32) -> (i32, i32, i32) {
    %c0_i32 = arith.constant 0 : i32
    %c0_i32_0 = arith.constant 0 : i32
    %c0_i32_1 = arith.constant 0 : i32
    return %arg0, %c0_i32, %c0_i32_0 : i32, i32, i32
  }
  func.func @transform_2(%arg0: i32) -> (i32, i32, i32) {
    %c0_i32 = arith.constant 0 : i32
    %c0_i32_0 = arith.constant 0 : i32
    %c0_i32_1 = arith.constant 0 : i32
    return %arg0, %c0_i32, %c0_i32_0 : i32, i32, i32
  }
  func.func @transform_3(%arg0: i32) -> (i32, i32) {
    %c0_i32 = arith.constant 0 : i32
    %c0_i32_0 = arith.constant 0 : i32
    %c0_i32_1 = arith.constant 0 : i32
    return %c0_i32, %c0_i32_0 : i32, i32
  }
  func.func @transform_4(%arg0: i32) -> (i32, i32) {
    %c0_i32 = arith.constant 0 : i32
    %c0_i32_0 = arith.constant 0 : i32
    %c0_i32_1 = arith.constant 0 : i32
    return %c0_i32, %c0_i32_0 : i32, i32
  }
  func.func @transform_5(%arg0: i32) -> (i32, i32, i32) {
    %c0_i32 = arith.constant 0 : i32
    %c0_i32_0 = arith.constant 0 : i32
    %c0_i32_1 = arith.constant 0 : i32
    return %arg0, %c0_i32, %c0_i32_0 : i32, i32, i32
  }
  func.func @transform_6(%arg0: i32) -> (i32, i32, i32) {
    %c0_i32 = arith.constant 0 : i32
    %c0_i32_0 = arith.constant 0 : i32
    %c0_i32_1 = arith.constant 0 : i32
    return %arg0, %c0_i32, %c0_i32_0 : i32, i32, i32
  }
}

module attributes {stable_mosaic.version = 11 : i64} {
  func.func @_layernorm_kernel(%arg0: i32, %arg1: memref<16x32xf32, #tpu.memory_space<vmem>>, %arg2: memref<1x32xf32, #tpu.memory_space<vmem>>, %arg3: memref<1x32xf32, #tpu.memory_space<vmem>>, %arg4: memref<16x32xf32, #tpu.memory_space<vmem>>) attributes {dimension_semantics = [#tpu.dimension_semantics<parallel>], iteration_bounds = array<i64: 1>, scalar_prefetch = 0 : i64, scratch_operands = 0 : i64, tpu.core_type = #tpu.core_type<tc>, window_params = [{transform_indices = @transform_0, window_bounds = array<i64: 16, 32>}, {pipeline_mode = #tpu.pipeline_mode<synchronous>, transform_indices = @transform_1, window_bounds = array<i64: 1, 32>}, {pipeline_mode = #tpu.pipeline_mode<synchronous>, transform_indices = @transform_2, window_bounds = array<i64: 1, 32>}, {transform_indices = @transform_3, window_bounds = array<i64: 16, 32>}]} {
    %c0 = arith.constant 0 : index
    %c0_0 = arith.constant 0 : index
    %0 = vector.load %arg1[%c0, %c0_0] : memref<16x32xf32, #tpu.memory_space<vmem>>, vector<16x32xf32>
    %cst = arith.constant dense<0.000000e+00> : vector<16xf32>
    %1 = vector.multi_reduction <add>, %0, %cst [1] : vector<16x32xf32> to vector<16xf32>
    %2 = vector.shape_cast %1 : vector<16xf32> to vector<16x1xf32>
    %cst_1 = arith.constant 3.200000e+01 : f32
    %3 = vector.broadcast %cst_1 : f32 to vector<16x1xf32>
    %4 = arith.divf %2, %3 : vector<16x1xf32>
    %5 = vector.broadcast %4 : vector<16x1xf32> to vector<16x32xf32>
    %6 = arith.subf %0, %5 : vector<16x32xf32>
    %7 = arith.mulf %6, %6 : vector<16x32xf32>
    %cst_2 = arith.constant dense<0.000000e+00> : vector<16xf32>
    %8 = vector.multi_reduction <add>, %7, %cst_2 [1] : vector<16x32xf32> to vector<16xf32>
    %9 = vector.shape_cast %8 : vector<16xf32> to vector<16x1xf32>
    %cst_3 = arith.constant 3.200000e+01 : f32
    %10 = vector.broadcast %cst_3 : f32 to vector<16x1xf32>
    %11 = arith.divf %9, %10 : vector<16x1xf32>
    %cst_4 = arith.constant 9.99999974E-6 : f32
    %12 = vector.broadcast %cst_4 : f32 to vector<16x1xf32>
    %13 = arith.addf %11, %12 : vector<16x1xf32>
    %14 = math.rsqrt %13 : vector<16x1xf32>
    %15 = vector.broadcast %14 : vector<16x1xf32> to vector<16x32xf32>
    %16 = arith.mulf %6, %15 : vector<16x32xf32>
    %c0_5 = arith.constant 0 : index
    %c0_6 = arith.constant 0 : index
    %17 = vector.load %arg2[%c0_5, %c0_6] : memref<1x32xf32, #tpu.memory_space<vmem>>, vector<1x32xf32>
    %18 = vector.broadcast %17 : vector<1x32xf32> to vector<16x32xf32>
    %19 = arith.mulf %16, %18 : vector<16x32xf32>
    %c0_7 = arith.constant 0 : index
    %c0_8 = arith.constant 0 : index
    %20 = vector.load %arg3[%c0_7, %c0_8] : memref<1x32xf32, #tpu.memory_space<vmem>>, vector<1x32xf32>
    %21 = vector.broadcast %20 : vector<1x32xf32> to vector<16x32xf32>
    %22 = arith.addf %19, %21 : vector<16x32xf32>
    %c0_9 = arith.constant 0 : index
    %c0_10 = arith.constant 0 : index
    %23 = vector.load %arg4[%c0_9, %c0_10] : memref<16x32xf32, #tpu.memory_space<vmem>>, vector<16x32xf32>
    tpu.vector_store %arg4[%c0_9, %c0_10], %22 {strides = array<i32>} : memref<16x32xf32, #tpu.memory_space<vmem>>, vector<16x32xf32>,
    return
  }
  func.func @transform_0(%arg0: i32) -> (i32, i32) {
    %c0_i32 = arith.constant 0 : i32
    %c0_i32_0 = arith.constant 0 : i32
    return %arg0, %c0_i32 : i32, i32
  }
  func.func @transform_1(%arg0: i32) -> (i32, i32) {
    %c0_i32 = arith.constant 0 : i32
    %c0_i32_0 = arith.constant 0 : i32
    %c0_i32_1 = arith.constant 0 : i32
    return %c0_i32, %c0_i32_0 : i32, i32
  }
  func.func @transform_2(%arg0: i32) -> (i32, i32) {
    %c0_i32 = arith.constant 0 : i32
    %c0_i32_0 = arith.constant 0 : i32
    %c0_i32_1 = arith.constant 0 : i32
    return %c0_i32, %c0_i32_0 : i32, i32
  }
  func.func @transform_3(%arg0: i32) -> (i32, i32) {
    %c0_i32 = arith.constant 0 : i32
    %c0_i32_0 = arith.constant 0 : i32
    return %arg0, %c0_i32 : i32, i32
  }
}

module attributes {stable_mosaic.version = 11 : i64} {
  func.func @_ln_ffn_resid_kernel(%arg0: i32, %arg1: memref<16x32xf32, #tpu.memory_space<vmem>>, %arg2: memref<1x32xf32, #tpu.memory_space<vmem>>, %arg3: memref<1x32xf32, #tpu.memory_space<vmem>>, %arg4: memref<32x64xf32, #tpu.memory_space<vmem>>, %arg5: memref<1x64xf32, #tpu.memory_space<vmem>>, %arg6: memref<64x32xf32, #tpu.memory_space<vmem>>, %arg7: memref<1x32xf32, #tpu.memory_space<vmem>>, %arg8: memref<16x32xf32, #tpu.memory_space<vmem>>) attributes {dimension_semantics = [#tpu.dimension_semantics<parallel>], iteration_bounds = array<i64: 1>, scalar_prefetch = 0 : i64, scratch_operands = 0 : i64, tpu.core_type = #tpu.core_type<tc>, window_params = [{transform_indices = @transform_0, window_bounds = array<i64: 16, 32>}, {pipeline_mode = #tpu.pipeline_mode<synchronous>, transform_indices = @transform_1, window_bounds = array<i64: 1, 32>}, {pipeline_mode = #tpu.pipeline_mode<synchronous>, transform_indices = @transform_2, window_bounds = array<i64: 1, 32>}, {pipeline_mode = #tpu.pipeline_mode<synchronous>, transform_indices = @transform_3, window_bounds = array<i64: 32, 64>}, {pipeline_mode = #tpu.pipeline_mode<synchronous>, transform_indices = @transform_4, window_bounds = array<i64: 1, 64>}, {pipeline_mode = #tpu.pipeline_mode<synchronous>, transform_indices = @transform_5, window_bounds = array<i64: 64, 32>}, {pipeline_mode = #tpu.pipeline_mode<synchronous>, transform_indices = @transform_6, window_bounds = array<i64: 1, 32>}, {transform_indices = @transform_7, window_bounds = array<i64: 16, 32>}]} {
    %c0 = arith.constant 0 : index
    %c0_0 = arith.constant 0 : index
    %0 = vector.load %arg1[%c0, %c0_0] : memref<16x32xf32, #tpu.memory_space<vmem>>, vector<16x32xf32>
    %cst = arith.constant dense<0.000000e+00> : vector<16xf32>
    %1 = vector.multi_reduction <add>, %0, %cst [1] : vector<16x32xf32> to vector<16xf32>
    %2 = vector.shape_cast %1 : vector<16xf32> to vector<16x1xf32>
    %cst_1 = arith.constant 3.200000e+01 : f32
    %3 = vector.broadcast %cst_1 : f32 to vector<16x1xf32>
    %4 = arith.divf %2, %3 : vector<16x1xf32>
    %5 = vector.broadcast %4 : vector<16x1xf32> to vector<16x32xf32>
    %6 = arith.subf %0, %5 : vector<16x32xf32>
    %7 = arith.mulf %6, %6 : vector<16x32xf32>
    %cst_2 = arith.constant dense<0.000000e+00> : vector<16xf32>
    %8 = vector.multi_reduction <add>, %7, %cst_2 [1] : vector<16x32xf32> to vector<16xf32>
    %9 = vector.shape_cast %8 : vector<16xf32> to vector<16x1xf32>
    %cst_3 = arith.constant 3.200000e+01 : f32
    %10 = vector.broadcast %cst_3 : f32 to vector<16x1xf32>
    %11 = arith.divf %9, %10 : vector<16x1xf32>
    %cst_4 = arith.constant 9.99999974E-6 : f32
    %12 = vector.broadcast %cst_4 : f32 to vector<16x1xf32>
    %13 = arith.addf %11, %12 : vector<16x1xf32>
    %14 = math.rsqrt %13 : vector<16x1xf32>
    %15 = vector.broadcast %14 : vector<16x1xf32> to vector<16x32xf32>
    %16 = arith.mulf %6, %15 : vector<16x32xf32>
    %c0_5 = arith.constant 0 : index
    %c0_6 = arith.constant 0 : index
    %17 = vector.load %arg2[%c0_5, %c0_6] : memref<1x32xf32, #tpu.memory_space<vmem>>, vector<1x32xf32>
    %18 = vector.broadcast %17 : vector<1x32xf32> to vector<16x32xf32>
    %19 = arith.mulf %16, %18 : vector<16x32xf32>
    %c0_7 = arith.constant 0 : index
    %c0_8 = arith.constant 0 : index
    %20 = vector.load %arg3[%c0_7, %c0_8] : memref<1x32xf32, #tpu.memory_space<vmem>>, vector<1x32xf32>
    %21 = vector.broadcast %20 : vector<1x32xf32> to vector<16x32xf32>
    %22 = arith.addf %19, %21 : vector<16x32xf32>
    %c0_9 = arith.constant 0 : index
    %c0_10 = arith.constant 0 : index
    %23 = vector.load %arg4[%c0_9, %c0_10] : memref<32x64xf32, #tpu.memory_space<vmem>>, vector<32x64xf32>
    %cst_11 = arith.constant dense<0.000000e+00> : vector<16x64xf32>
    %24 = tpu.matmul %22, %23, %cst_11 {dimension_numbers = #tpu.dot_dimension_numbers<[1], [0], [0], [1], [0, 0, 1, 1], [], []>} : vector<16x32xf32>, vector<32x64xf32>, vector<16x64xf32> -> vector<16x64xf32>
    %c0_12 = arith.constant 0 : index
    %c0_13 = arith.constant 0 : index
    %25 = vector.load %arg5[%c0_12, %c0_13] : memref<1x64xf32, #tpu.memory_space<vmem>>, vector<1x64xf32>
    %26 = vector.broadcast %25 : vector<1x64xf32> to vector<16x64xf32>
    %27 = arith.addf %24, %26 : vector<16x64xf32>
    %cst_14 = arith.constant 0.000000e+00 : f32
    %28 = vector.broadcast %cst_14 : f32 to vector<16x64xf32>
    %29 = arith.maximumf %27, %28 : vector<16x64xf32>
    %c0_15 = arith.constant 0 : index
    %c0_16 = arith.constant 0 : index
    %30 = vector.load %arg6[%c0_15, %c0_16] : memref<64x32xf32, #tpu.memory_space<vmem>>, vector<64x32xf32>
    %cst_17 = arith.constant dense<0.000000e+00> : vector<16x32xf32>
    %31 = tpu.matmul %29, %30, %cst_17 {dimension_numbers = #tpu.dot_dimension_numbers<[1], [0], [0], [1], [0, 0, 1, 1], [], []>} : vector<16x64xf32>, vector<64x32xf32>, vector<16x32xf32> -> vector<16x32xf32>
    %c0_18 = arith.constant 0 : index
    %c0_19 = arith.constant 0 : index
    %32 = vector.load %arg7[%c0_18, %c0_19] : memref<1x32xf32, #tpu.memory_space<vmem>>, vector<1x32xf32>
    %33 = vector.broadcast %32 : vector<1x32xf32> to vector<16x32xf32>
    %34 = arith.addf %31, %33 : vector<16x32xf32>
    %35 = arith.addf %0, %34 : vector<16x32xf32>
    %c0_20 = arith.constant 0 : index
    %c0_21 = arith.constant 0 : index
    %36 = vector.load %arg8[%c0_20, %c0_21] : memref<16x32xf32, #tpu.memory_space<vmem>>, vector<16x32xf32>
    tpu.vector_store %arg8[%c0_20, %c0_21], %35 {strides = array<i32>} : memref<16x32xf32, #tpu.memory_space<vmem>>, vector<16x32xf32>,
    return
  }
  func.func @transform_0(%arg0: i32) -> (i32, i32) {
    %c0_i32 = arith.constant 0 : i32
    %c0_i32_0 = arith.constant 0 : i32
    return %arg0, %c0_i32 : i32, i32
  }
  func.func @transform_1(%arg0: i32) -> (i32, i32) {
    %c0_i32 = arith.constant 0 : i32
    %c0_i32_0 = arith.constant 0 : i32
    %c0_i32_1 = arith.constant 0 : i32
    return %c0_i32, %c0_i32_0 : i32, i32
  }
  func.func @transform_2(%arg0: i32) -> (i32, i32) {
    %c0_i32 = arith.constant 0 : i32
    %c0_i32_0 = arith.constant 0 : i32
    %c0_i32_1 = arith.constant 0 : i32
    return %c0_i32, %c0_i32_0 : i32, i32
  }
  func.func @transform_3(%arg0: i32) -> (i32, i32) {
    %c0_i32 = arith.constant 0 : i32
    %c0_i32_0 = arith.constant 0 : i32
    %c0_i32_1 = arith.constant 0 : i32
    return %c0_i32, %c0_i32_0 : i32, i32
  }
  func.func @transform_4(%arg0: i32) -> (i32, i32) {
    %c0_i32 = arith.constant 0 : i32
    %c0_i32_0 = arith.constant 0 : i32
    %c0_i32_1 = arith.constant 0 : i32
    return %c0_i32, %c0_i32_0 : i32, i32
  }
  func.func @transform_5(%arg0: i32) -> (i32, i32) {
    %c0_i32 = arith.constant 0 : i32
    %c0_i32_0 = arith.constant 0 : i32
    %c0_i32_1 = arith.constant 0 : i32
    return %c0_i32, %c0_i32_0 : i32, i32
  }
  func.func @transform_6(%arg0: i32) -> (i32, i32) {
    %c0_i32 = arith.constant 0 : i32
    %c0_i32_0 = arith.constant 0 : i32
    %c0_i32_1 = arith.constant 0 : i32
    return %c0_i32, %c0_i32_0 : i32, i32
  }
  func.func @transform_7(%arg0: i32) -> (i32, i32) {
    %c0_i32 = arith.constant 0 : i32
    %c0_i32_0 = arith.constant 0 : i32
    return %arg0, %c0_i32 : i32, i32
  }
}

</mosaic_0001>

<llo_original>
// kernel: decoder_forward.2
$region0: #{decoder_forward.2}
  #allocation0 [shape = 'u32[]', space=smem, size = 0x4, offset = 0x4, fixed_abs, tag = 'smem constant byte address 0x4 - core index']
  #allocation1 [shape = 'u32[72,128]{1,0:T(1,128)}', space=vmem, size = 0x9000, scoped, tag = 'internal scratch']
  %s0 = inlined_call_operand.vmem [shape: f32[16,32], index: 0, kind: input, shape index: {}]
  %s1 = inlined_call_operand.hbm [shape: f32[32,64], index: 1, kind: input, shape index: {}]
  %s2 = inlined_call_operand.hbm [shape: f32[1,64], index: 2, kind: input, shape index: {}]
  %s3 = inlined_call_operand.vmem [shape: f32[16,64], index: 3, kind: output, shape index: {}]
  %s4 = sld [smem:[#allocation0]]
  $region30: #{decoder_forward.2} parent=0
    _
  %s6 = ssub.s32 1, %s4
  %s7 = scalar_select 0, %s6, %s4
  $region1: #{decoder_forward.2} parent=0
    #allocation2 [shape = 'u8[16384]{0}', space=vmem, size = 0x4000, scoped, tag = 'input window, operand 1, single buffered']
    #allocation3 [shape = 's32[1]{0}', space=sflag, size = 0x4, scoped, tag = 'scoped memory for decoder_forward.2']
    #allocation4 [shape = 'u8[512]{0}', space=vmem, size = 0x400, scoped, tag = 'input window, operand 2, single buffered']
    #allocation5 [shape = 's32[1]{0}', space=sflag, size = 0x4, scoped, tag = 'scoped memory for decoder_forward.2']
    %8 = vsyncpa [#allocation3], 0
    %9 = vsyncpa [#allocation5], 0
    // Predicated region
    $region2: #{decoder_forward.2} parent=1 // pred_check
      _
    $region3: #{decoder_forward.2} parent=1 // pred_check_branch
      %11 = sbr.rel (0) target = $region5
    $region4: #{decoder_forward.2} parent=1 // pred_region
      _
    $region5: #{decoder_forward.2} parent=1 // pred_fallthru
      _
    // Predicated region
    $region6: #{decoder_forward.2} parent=1 // pred_check
      _
    $region7: #{decoder_forward.2} parent=1 // pred_check_branch
      %13 = sbr.rel (0) target = $region9
    $region8: #{decoder_forward.2} parent=1 // pred_region
      %15 = vsyncadd [#allocation3], 0
      %s16 = sshll.u32 %s1, 4
      %s17 = int_to_ptr.hbm [resolvable:$true] %s16
      %s18 = sshll.u32 [#allocation2], 4
      %s19 = int_to_ptr.vmem [resolvable:$true] %s18
      %24 = dma.hbm_to_vmem [thread:$0]  %s17, 512, %s19, [#allocation3], 128, 128, 8
    $region9: #{decoder_forward.2} parent=1 // pred_fallthru
      _
    // Predicated region
    $region10: #{decoder_forward.2} parent=1 // pred_check
      _
    $region11: #{decoder_forward.2} parent=1 // pred_check_branch
      %26 = sbr.rel (0) target = $region13
    $region12: #{decoder_forward.2} parent=1 // pred_region
      %28 = vsyncadd [#allocation5], 0
      %s30 = sshll.u32 %s2, 4
      %s31 = int_to_ptr.hbm [resolvable:$true] %s30
      %s32 = sshll.u32 [#allocation4], 4
      %s33 = int_to_ptr.vmem [resolvable:$true] %s32
      %35 = dma.hbm_to_vmem [thread:$0]  %s31, 16, %s33, [#allocation5]
    $region13: #{decoder_forward.2} parent=1 // pred_fallthru
      _
    // Predicated region
    $region14: #{decoder_forward.2} parent=1 // pred_check
      _
    $region15: #{decoder_forward.2} parent=1 // pred_check_branch
      %37 = sbr.rel (0) target = $region17
    $region16: #{decoder_forward.2} parent=1 // pred_region
      %39 = dma.done [#allocation3], 512
    $region17: #{decoder_forward.2} parent=1 // pred_fallthru
      _
    // Predicated region
    $region18: #{decoder_forward.2} parent=1 // pred_check
      _
    $region19: #{decoder_forward.2} parent=1 // pred_check_branch
      %41 = sbr.rel (0) target = $region21
    $region20: #{decoder_forward.2} parent=1 // pred_region
      %43 = dma.done [#allocation5], 16
    $region21: #{decoder_forward.2} parent=1 // pred_fallthru
      _
    %v44 = vld [vmem:[%s0] sm:$0xff]
    %v45 = vld [vmem:[%s0 + $0x8] sm:$0xff]
    %v46 = vld [vmem:[#allocation2] sm:$0xff]
    %v47 = vld [vmem:[#allocation2 + $0x8] sm:$0xff]
    %v48 = vld [vmem:[#allocation2 + $0x10] sm:$0xff]
    %v49 = vld [vmem:[#allocation2 + $0x18] sm:$0xff]
    %v50 = vld [vmem:[#allocation4] sm:$0x1]
    %v52 = vperm.slane %v50, 0
    %vm54 = vcmask 261120
    %v56 = vsel %vm54, %v44, 0
    %v59 = vsel %vm54, %v45, 0
    %61 = vmatpush.msra.mxu0 0.0
    %62 = vmatpush.msra.mxu0 0.0
    %63 = vmatpush.msra.mxu0 0.0
    %64 = vmatpush.msra.mxu0 0.0
    %65 = vmatpush.msra.mxu0 0.0
    %66 = vmatpush.msra.mxu0 0.0
    %67 = vmatpush.msra.mxu0 0.0
    %68 = vmatpush.msra.mxu0 0.0
    %69 = vmatpush.msra.mxu0 0.0
    %70 = vmatpush.msra.mxu0 0.0
    %71 = vmatpush.msra.mxu0 0.0
    %72 = vmatpush.msra.mxu0 0.0
    %73 = vmatpush.msra.mxu0 %v49
    %74 = vmatpush.msra.mxu0 %v48
    %75 = vmatpush.msra.mxu0 %v47
    %76 = vmatpush.msra.mxu0 %v46
    %77 = vmatmul.f32.gmra.mxu0 %v56
    %v78 = vpop.f32.mrf.mxu0
    %v79 = vadd.f32 %v52, %v78
    %80 = vmatmul.f32.gmra.mxu0 %v59
    %v81 = vpop.f32.mrf.mxu0
    %v82 = vadd.f32 %v52, %v81
    %83 = vdwg.mxu0
    %vm84 = vcmask 523264
    %85 = vst.msk [vmem:[%s3] sm:$0xff] %vm84, %v79
    %86 = vst.msk [vmem:[%s3 + $0x8] sm:$0xff] %vm84, %v82
    // Predicated region
    $region22: #{decoder_forward.2} parent=1 // pred_check
      _
    $region23: #{decoder_forward.2} parent=1 // pred_check_branch
      %88 = sbr.rel (0) target = $region25
    $region24: #{decoder_forward.2} parent=1 // pred_region
      _
    $region25: #{decoder_forward.2} parent=1 // pred_fallthru
      _
    // Predicated region
    $region26: #{decoder_forward.2} parent=1 // pred_check
      _
    $region27: #{decoder_forward.2} parent=1 // pred_check_branch
      %90 = sbr.rel (0) target = $region29
    $region28: #{decoder_forward.2} parent=1 // pred_region
      _
    $region29: #{decoder_forward.2} parent=1 // pred_fallthru
      _
    %91 = vsyncpa [#allocation3], 1
    %92 = vsyncpa [#allocation5], 1

// kernel: closed_call.16
$region0: #{closed_call.16}
  #allocation0 [shape = 'u32[]', space=smem, size = 0x4, offset = 0x4, fixed_abs, tag = 'smem constant byte address 0x4 - core index']
  #allocation1 [shape = 'u32[72,128]{1,0:T(1,128)}', space=vmem, size = 0x9000, scoped, tag = 'internal scratch']
  %s0 = inlined_call_operand.vmem [shape: f32[16,32], index: 0, kind: input, shape index: {}]
  %s1 = inlined_call_operand.vmem [shape: f32[1,32], index: 1, kind: input, shape index: {}]
  %s2 = inlined_call_operand.vmem [shape: f32[1,32], index: 2, kind: input, shape index: {}]
  %s3 = inlined_call_operand.vmem [shape: f32[32,96], index: 3, kind: input, shape index: {}]
  %s4 = inlined_call_operand.vmem [shape: f32[1,96], index: 4, kind: input, shape index: {}]
  %s5 = inlined_call_operand.vmem [shape: f32[16,96], index: 5, kind: output, shape index: {}]
  %s6 = sld [smem:[#allocation0]]
  $region30: #{closed_call.16} parent=0
    _
  %s8 = ssub.s32 1, %s6
  %s9 = scalar_select 0, %s8, %s6
  // Predicated region
  $region2: #{closed_call.16} parent=0 // pred_check
    _
  $region3: #{closed_call.16} parent=0 // pred_check_branch
    %11 = sbr.rel (0) target = $region5
  $region4: #{closed_call.16} parent=0 // pred_region
    _
  $region5: #{closed_call.16} parent=0 // pred_fallthru
    _
  // Predicated region
  $region6: #{closed_call.16} parent=0 // pred_check
    _
  $region7: #{closed_call.16} parent=0 // pred_check_branch
    %13 = sbr.rel (0) target = $region9
  $region8: #{closed_call.16} parent=0 // pred_region
    _
  $region9: #{closed_call.16} parent=0 // pred_fallthru
    _
  // Predicated region
  $region10: #{closed_call.16} parent=0 // pred_check
    _
  $region11: #{closed_call.16} parent=0 // pred_check_branch
    %15 = sbr.rel (0) target = $region13
  $region12: #{closed_call.16} parent=0 // pred_region
    _
  $region13: #{closed_call.16} parent=0 // pred_fallthru
    _
  // Predicated region
  $region14: #{closed_call.16} parent=0 // pred_check
    _
  $region15: #{closed_call.16} parent=0 // pred_check_branch
    %17 = sbr.rel (0) target = $region17
  $region16: #{closed_call.16} parent=0 // pred_region
    _
  $region17: #{closed_call.16} parent=0 // pred_fallthru
    _
  // Predicated region
  $region18: #{closed_call.16} parent=0 // pred_check
    _
  $region19: #{closed_call.16} parent=0 // pred_check_branch
    %19 = sbr.rel (0) target = $region21
  $region20: #{closed_call.16} parent=0 // pred_region
    _
  $region21: #{closed_call.16} parent=0 // pred_fallthru
    _
  %v20 = vld [vmem:[%s0] sm:$0xff]
  %v21 = vld [vmem:[%s0 + $0x8] sm:$0xff]
  %vm22 = vcmask 261120
  %v23 = vsel %vm22, %v20, 0.0
  %24 = vadd.xlane.f32.xlu0 %v23
  %v25 = vpop.xlane.xlu0 %24
  %v26 = vsel %vm22, %v21, 0.0
  %27 = vadd.xlane.f32.xlu0 %v26
  %v28 = vpop.xlane.xlu0 %27
  %v29 = vrcp.pop 32.0
  %v30 = vmul.f32 32.0, %v29
  %v31 = vsub.f32 1.0, %v30
  %v32 = vmul.f32 %v29, %v31
  %v33 = vadd.f32 %v29, %v32
  %vm34 = vweird.f32 %v29
  %v35 = vsel %vm34, %v29, %v33
  %v36 = vmul.f32 %v25, %v35
  %v37 = vmul.f32 %v28, %v35
  %v38 = vsub.f32 %v20, %v36
  %v39 = vsub.f32 %v21, %v37
  %v40 = vmul.f32 %v38, %v38
  %v41 = vmul.f32 %v39, %v39
  %v42 = vsel %vm22, %v40, 0.0
  %43 = vadd.xlane.f32.xlu0 %v42
  %v44 = vpop.xlane.xlu0 %43
  %v45 = vsel %vm22, %v41, 0.0
  %46 = vadd.xlane.f32.xlu0 %v45
  %v47 = vpop.xlane.xlu0 %46
  %v48 = vmul.f32 %v44, %v35
  %v49 = vmul.f32 %v47, %v35
  %v50 = vadd.f32 %v48, 1e-05
  %v51 = vadd.f32 %v49, 1e-05
  %v52 = vrsqrt.pop %v50
  %v53 = vmul.f32 %v52, %v50
  %v54 = vmul.f32 %v53, %v52
  %v55 = vmul.f32 0.5, %v54
  %v56 = vsub.f32 1.5, %v55
  %v57 = vmul.f32 %v52, %v56
  %vm58 = vweird.f32 %v50
  %vm59 = vweird.f32 %v52
  %vm60 = vmor %vm58, %vm59
  %v61 = vsel %vm60, %v52, %v57
  %v62 = vrsqrt.pop %v51
  %v63 = vmul.f32 %v62, %v51
  %v64 = vmul.f32 %v63, %v62
  %v65 = vmul.f32 0.5, %v64
  %v66 = vsub.f32 1.5, %v65
  %v67 = vmul.f32 %v62, %v66
  %vm68 = vweird.f32 %v51
  %vm69 = vweird.f32 %v62
  %vm70 = vmor %vm68, %vm69
  %v71 = vsel %vm70, %v62, %v67
  %v72 = vmul.f32 %v38, %v61
  %v73 = vmul.f32 %v39, %v71
  %v74 = vld [vmem:[%s1] sm:$0x1]
  %v76 = vperm.slane %v74, 0
  %v78 = vmul.f32 %v72, %v76
  %v79 = vmul.f32 %v73, %v76
  %v80 = vld [vmem:[%s2] sm:$0x1]
  %v82 = vperm.slane %v80, 0
  %v84 = vadd.f32 %v78, %v82
  %v85 = vadd.f32 %v79, %v82
  %v86 = vld [vmem:[%s3] sm:$0xff]
  %v87 = vld [vmem:[%s3 + $0x8] sm:$0xff]
  %v88 = vld [vmem:[%s3 + $0x10] sm:$0xff]
  %v89 = vld [vmem:[%s3 + $0x18] sm:$0xff]
  %v90 = vld [vmem:[%s4] sm:$0x1]
  %v92 = vperm.slane %v90, 0
  %v95 = vsel %vm22, %v84, 0
  %v98 = vsel %vm22, %v85, 0
  %100 = vmatpush.msra.mxu0 0.0
  %101 = vmatpush.msra.mxu0 0.0
  %102 = vmatpush.msra.mxu0 0.0
  %103 = vmatpush.msra.mxu0 0.0
  %104 = vmatpush.msra.mxu0 0.0
  %105 = vmatpush.msra.mxu0 0.0
  %106 = vmatpush.msra.mxu0 0.0
  %107 = vmatpush.msra.mxu0 0.0
  %108 = vmatpush.msra.mxu0 0.0
  %109 = vmatpush.msra.mxu0 0.0
  %110 = vmatpush.msra.mxu0 0.0
  %111 = vmatpush.msra.mxu0 0.0
  %112 = vmatpush.msra.mxu0 %v89
  %113 = vmatpush.msra.mxu0 %v88
  %114 = vmatpush.msra.mxu0 %v87
  %115 = vmatpush.msra.mxu0 %v86
  %116 = vmatmul.f32.gmra.mxu0 %v95
  %v117 = vpop.f32.mrf.mxu0
  %v118 = vadd.f32 %v92, %v117
  %119 = vmatmul.f32.gmra.mxu0 %v98
  %v120 = vpop.f32.mrf.mxu0
  %v121 = vadd.f32 %v92, %v120
  %122 = vdwg.mxu0
  %vm123 = vcmask 785408
  %124 = vst.msk [vmem:[%s5] sm:$0xff] %vm123, %v118
  %125 = vst.msk [vmem:[%s5 + $0x8] sm:$0xff] %vm123, %v121
  // Predicated region
  $region22: #{closed_call.16} parent=0 // pred_check
    _
  $region23: #{closed_call.16} parent=0 // pred_check_branch
    %127 = sbr.rel (0) target = $region25
  $region24: #{closed_call.16} parent=0 // pred_region
    _
  $region25: #{closed_call.16} parent=0 // pred_fallthru
    _
  // Predicated region
  $region26: #{closed_call.16} parent=0 // pred_check
    _
  $region27: #{closed_call.16} parent=0 // pred_check_branch
    %129 = sbr.rel (0) target = $region29
  $region28: #{closed_call.16} parent=0 // pred_region
    _
  $region29: #{closed_call.16} parent=0 // pred_fallthru
    _

// kernel: closed_call.18
$region0: #{closed_call.18}
  #allocation0 [shape = 'u32[]', space=smem, size = 0x4, offset = 0x4, fixed_abs, tag = 'smem constant byte address 0x4 - core index']
  #allocation1 [shape = 'u32[72,128]{1,0:T(1,128)}', space=vmem, size = 0x9000, scoped, tag = 'internal scratch']
  %s0 = inlined_call_operand.vmem [shape: f32[16,32], index: 0, kind: input, shape index: {}]
  %s1 = inlined_call_operand.vmem [shape: f32[1,32], index: 1, kind: input, shape index: {}]
  %s2 = inlined_call_operand.vmem [shape: f32[1,32], index: 2, kind: input, shape index: {}]
  %s3 = inlined_call_operand.vmem [shape: f32[32,32], index: 3, kind: input, shape index: {}]
  %s4 = inlined_call_operand.vmem [shape: f32[1,32], index: 4, kind: input, shape index: {}]
  %s5 = inlined_call_operand.vmem [shape: f32[16,32], index: 5, kind: output, shape index: {}]
  %s6 = sld [smem:[#allocation0]]
  $region30: #{closed_call.18} parent=0
    _
  %s8 = ssub.s32 1, %s6
  %s9 = scalar_select 0, %s8, %s6
  // Predicated region
  $region2: #{closed_call.18} parent=0 // pred_check
    _
  $region3: #{closed_call.18} parent=0 // pred_check_branch
    %11 = sbr.rel (0) target = $region5
  $region4: #{closed_call.18} parent=0 // pred_region
    _
  $region5: #{closed_call.18} parent=0 // pred_fallthru
    _
  // Predicated region
  $region6: #{closed_call.18} parent=0 // pred_check
    _
  $region7: #{closed_call.18} parent=0 // pred_check_branch
    %13 = sbr.rel (0) target = $region9
  $region8: #{closed_call.18} parent=0 // pred_region
    _
  $region9: #{closed_call.18} parent=0 // pred_fallthru
    _
  // Predicated region
  $region10: #{closed_call.18} parent=0 // pred_check
    _
  $region11: #{closed_call.18} parent=0 // pred_check_branch
    %15 = sbr.rel (0) target = $region13
  $region12: #{closed_call.18} parent=0 // pred_region
    _
  $region13: #{closed_call.18} parent=0 // pred_fallthru
    _
  // Predicated region
  $region14: #{closed_call.18} parent=0 // pred_check
    _
  $region15: #{closed_call.18} parent=0 // pred_check_branch
    %17 = sbr.rel (0) target = $region17
  $region16: #{closed_call.18} parent=0 // pred_region
    _
  $region17: #{closed_call.18} parent=0 // pred_fallthru
    _
  // Predicated region
  $region18: #{closed_call.18} parent=0 // pred_check
    _
  $region19: #{closed_call.18} parent=0 // pred_check_branch
    %19 = sbr.rel (0) target = $region21
  $region20: #{closed_call.18} parent=0 // pred_region
    _
  $region21: #{closed_call.18} parent=0 // pred_fallthru
    _
  %v20 = vld [vmem:[%s0] sm:$0xff]
  %v21 = vld [vmem:[%s0 + $0x8] sm:$0xff]
  %vm22 = vcmask 261120
  %v23 = vsel %vm22, %v20, 0.0
  %24 = vadd.xlane.f32.xlu0 %v23
  %v25 = vpop.xlane.xlu0 %24
  %v26 = vsel %vm22, %v21, 0.0
  %27 = vadd.xlane.f32.xlu0 %v26
  %v28 = vpop.xlane.xlu0 %27
  %v29 = vrcp.pop 32.0
  %v30 = vmul.f32 32.0, %v29
  %v31 = vsub.f32 1.0, %v30
  %v32 = vmul.f32 %v29, %v31
  %v33 = vadd.f32 %v29, %v32
  %vm34 = vweird.f32 %v29
  %v35 = vsel %vm34, %v29, %v33
  %v36 = vmul.f32 %v25, %v35
  %v37 = vmul.f32 %v28, %v35
  %v38 = vsub.f32 %v20, %v36
  %v39 = vsub.f32 %v21, %v37
  %v40 = vmul.f32 %v38, %v38
  %v41 = vmul.f32 %v39, %v39
  %v42 = vsel %vm22, %v40, 0.0
  %43 = vadd.xlane.f32.xlu0 %v42
  %v44 = vpop.xlane.xlu0 %43
  %v45 = vsel %vm22, %v41, 0.0
  %46 = vadd.xlane.f32.xlu0 %v45
  %v47 = vpop.xlane.xlu0 %46
  %v48 = vmul.f32 %v44, %v35
  %v49 = vmul.f32 %v47, %v35
  %v50 = vadd.f32 %v48, 1e-05
  %v51 = vadd.f32 %v49, 1e-05
  %v52 = vrsqrt.pop %v50
  %v53 = vmul.f32 %v52, %v50
  %v54 = vmul.f32 %v53, %v52
  %v55 = vmul.f32 0.5, %v54
  %v56 = vsub.f32 1.5, %v55
  %v57 = vmul.f32 %v52, %v56
  %vm58 = vweird.f32 %v50
  %vm59 = vweird.f32 %v52
  %vm60 = vmor %vm58, %vm59
  %v61 = vsel %vm60, %v52, %v57
  %v62 = vrsqrt.pop %v51
  %v63 = vmul.f32 %v62, %v51
  %v64 = vmul.f32 %v63, %v62
  %v65 = vmul.f32 0.5, %v64
  %v66 = vsub.f32 1.5, %v65
  %v67 = vmul.f32 %v62, %v66
  %vm68 = vweird.f32 %v51
  %vm69 = vweird.f32 %v62
  %vm70 = vmor %vm68, %vm69
  %v71 = vsel %vm70, %v62, %v67
  %v72 = vmul.f32 %v38, %v61
  %v73 = vmul.f32 %v39, %v71
  %v74 = vld [vmem:[%s1] sm:$0x1]
  %v76 = vperm.slane %v74, 0
  %v78 = vmul.f32 %v72, %v76
  %v79 = vmul.f32 %v73, %v76
  %v80 = vld [vmem:[%s2] sm:$0x1]
  %v82 = vperm.slane %v80, 0
  %v84 = vadd.f32 %v78, %v82
  %v85 = vadd.f32 %v79, %v82
  %v86 = vld [vmem:[%s3] sm:$0xff]
  %v87 = vld [vmem:[%s3 + $0x8] sm:$0xff]
  %v88 = vld [vmem:[%s3 + $0x10] sm:$0xff]
  %v89 = vld [vmem:[%s3 + $0x18] sm:$0xff]
  %v90 = vld [vmem:[%s4] sm:$0x1]
  %v92 = vperm.slane %v90, 0
  %v95 = vsel %vm22, %v84, 0
  %v98 = vsel %vm22, %v85, 0
  %100 = vmatpush.msra.mxu0 0.0
  %101 = vmatpush.msra.mxu0 0.0
  %102 = vmatpush.msra.mxu0 0.0
  %103 = vmatpush.msra.mxu0 0.0
  %104 = vmatpush.msra.mxu0 0.0
  %105 = vmatpush.msra.mxu0 0.0
  %106 = vmatpush.msra.mxu0 0.0
  %107 = vmatpush.msra.mxu0 0.0
  %108 = vmatpush.msra.mxu0 0.0
  %109 = vmatpush.msra.mxu0 0.0
  %110 = vmatpush.msra.mxu0 0.0
  %111 = vmatpush.msra.mxu0 0.0
  %112 = vmatpush.msra.mxu0 %v89
  %113 = vmatpush.msra.mxu0 %v88
  %114 = vmatpush.msra.mxu0 %v87
  %115 = vmatpush.msra.mxu0 %v86
  %116 = vmatmul.f32.gmra.mxu0 %v95
  %v117 = vpop.f32.mrf.mxu0
  %v118 = vadd.f32 %v92, %v117
  %119 = vmatmul.f32.gmra.mxu0 %v98
  %v120 = vpop.f32.mrf.mxu0
  %v121 = vadd.f32 %v92, %v120
  %122 = vdwg.mxu0
  %123 = vst.msk [vmem:[%s5] sm:$0xff] %vm22, %v118
  %124 = vst.msk [vmem:[%s5 + $0x8] sm:$0xff] %vm22, %v121
  // Predicated region
  $region22: #{closed_call.18} parent=0 // pred_check
    _
  $region23: #{closed_call.18} parent=0 // pred_check_branch
    %126 = sbr.rel (0) target = $region25
  $region24: #{closed_call.18} parent=0 // pred_region
    _
  $region25: #{closed_call.18} parent=0 // pred_fallthru
    _
  // Predicated region
  $region26: #{closed_call.18} parent=0 // pred_check
    _
  $region27: #{closed_call.18} parent=0 // pred_check_branch
    %128 = sbr.rel (0) target = $region29
  $region28: #{closed_call.18} parent=0 // pred_region
    _
  $region29: #{closed_call.18} parent=0 // pred_fallthru
    _

// kernel: closed_call.17
$region0: #{closed_call.17}
  #allocation0 [shape = 'u32[]', space=smem, size = 0x4, offset = 0x4, fixed_abs, tag = 'smem constant byte address 0x4 - core index']
  #allocation1 [shape = 'u32[72,128]{1,0:T(1,128)}', space=vmem, size = 0x9000, scoped, tag = 'internal scratch']
  %s0 = inlined_call_operand.vmem [shape: f32[2,8,32], index: 0, kind: input, shape index: {}]
  %s1 = inlined_call_operand.vmem [shape: f32[2,8,64], index: 1, kind: input, shape index: {}]
  %s2 = inlined_call_operand.vmem [shape: f32[1,8,8], index: 2, kind: input, shape index: {}]
  %s3 = inlined_call_operand.vmem [shape: f32[32,32], index: 3, kind: input, shape index: {}]
  %s4 = inlined_call_operand.vmem [shape: f32[1,32], index: 4, kind: input, shape index: {}]
  %s5 = inlined_call_operand.vmem [shape: f32[2,8,32], index: 5, kind: input, shape index: {}]
  %s6 = inlined_call_operand.vmem [shape: f32[2,8,32], index: 6, kind: output, shape index: {}]
  %s7 = sld [smem:[#allocation0]]
  $region57: #{closed_call.17} parent=0
    _
  %s9 = ssub.s32 1, %s7
  %s10 = scalar_select 0, %s9, %s7
  loop: start=0, step=1, limit=4
  $region2: #{closed_call.17} parent=0 // loop_pre_header
    _
  $region3: #{closed_call.17} parent=0 // loop_header
    %s12 = sphi 0, %s16
    %p13 = scmp.ge.s32.totalorder %s12, 4
    %s22 = sphi 0, %s24
    %s25 = sphi 0, %s22
    %s26 = sphi 0, %s25
    %s42 = sphi 0, %s26
    %s48 = sphi 0, %s50
    %s51 = sphi 0, %s48
    %s52 = sphi 0, %s51
    %s68 = sphi 0, %s52
    %s72 = sphi 0, %s72
    %s74 = sphi 0, %s72
    %s75 = sphi 0, %s74
    %s89 = sphi 0, %s75
    %s93 = sphi 0, %s93
    %s95 = sphi 0, %s93
    %s96 = sphi 0, %s95
    %s110 = sphi 0, %s96
    %s114 = sphi 0, %s114
    %s116 = sphi 0, %s114
    %s117 = sphi 0, %s116
    %s131 = sphi 0, %s117
    %s137 = sphi 0, %s139
    %s140 = sphi 0, %s137
    %s141 = sphi 0, %s140
    %s157 = sphi 0, %s141
    %s163 = sphi 0, %s165
    %s166 = sphi 0, %s163
    %s167 = sphi 0, %s166
    %s183 = sphi 0, %s167
  $region4: #{closed_call.17} parent=0 // loop_header_branch
    %15 = sbr.rel (%p13) target = $region8
  $region5: #{closed_call.17} parent=0 // loop_body
    %s17 = ssub.s32 %s12, 1
    %s18 = ssub.s32 %s12, 2
    %s19 = sadd.s32 %s12, 1
    %s20 = ssub.s32 %s12, %s19
    %p21 = scmp.eq.s32.totalorder %s20, 0
    %s23 = sadd.s32 %s22, 1
    %s24 = scalar_select %p21, %s22, %s23
    %p27 = pneg %p21
    %p28 = scmp.eq.s32.totalorder %s12, 1
    %p29 = por %p27, %p28
    %p30 = scmp.ne.s32.totalorder %s22, %s25
    %p31 = scmp.eq.s32.totalorder %s12, 0
    %p32 = por %p30, %p31
    %p33 = scmp.ne.s32.totalorder %s22, %s25
    %p34 = scmp.eq.s32.totalorder %s17, 1
    %p35 = por %p33, %p34
    %p36 = scmp.ne.s32.totalorder %s25, %s26
    %p37 = scmp.eq.s32.totalorder %s17, 0
    %p38 = por %p36, %p37
    %p39 = scmp.ne.s32.totalorder %s25, %s26
    %p40 = scmp.eq.s32.totalorder %s18, 1
    %p41 = por %p39, %p40
    %p43 = scmp.ne.s32.totalorder %s26, %s42
    %p44 = scmp.eq.s32.totalorder %s18, 0
    %p45 = por %p43, %p44
    %s46 = ssub.s32 %s12, %s19
    %p47 = scmp.eq.s32.totalorder %s46, 0
    %s49 = sadd.s32 %s48, 1
    %s50 = scalar_select %p47, %s48, %s49
    %p53 = pneg %p47
    %p54 = scmp.eq.s32.totalorder %s12, 1
    %p55 = por %p53, %p54
    %p56 = scmp.ne.s32.totalorder %s48, %s51
    %p57 = scmp.eq.s32.totalorder %s12, 0
    %p58 = por %p56, %p57
    %p59 = scmp.ne.s32.totalorder %s48, %s51
    %p60 = scmp.eq.s32.totalorder %s17, 1
    %p61 = por %p59, %p60
    %p62 = scmp.ne.s32.totalorder %s51, %s52
    %p63 = scmp.eq.s32.totalorder %s17, 0
    %p64 = por %p62, %p63
    %p65 = scmp.ne.s32.totalorder %s51, %s52
    %p66 = scmp.eq.s32.totalorder %s18, 1
    %p67 = por %p65, %p66
    %p69 = scmp.ne.s32.totalorder %s52, %s68
    %p70 = scmp.eq.s32.totalorder %s18, 0
    %p71 = por %p69, %p70
    %s73 = sadd.s32 %s72, 1
    %p76 = scmp.eq.s32.totalorder %s12, 1
    %p77 = scmp.ne.s32.totalorder %s72, %s74
    %p78 = scmp.eq.s32.totalorder %s12, 0
    %p79 = por %p77, %p78
    %p80 = scmp.ne.s32.totalorder %s72, %s74
    %p81 = scmp.eq.s32.totalorder %s17, 1
    %p82 = por %p80, %p81
    %p83 = scmp.ne.s32.totalorder %s74, %s75
    %p84 = scmp.eq.s32.totalorder %s17, 0
    %p85 = por %p83, %p84
    %p86 = scmp.ne.s32.totalorder %s74, %s75
    %p87 = scmp.eq.s32.totalorder %s18, 1
    %p88 = por %p86, %p87
    %p90 = scmp.ne.s32.totalorder %s75, %s89
    %p91 = scmp.eq.s32.totalorder %s18, 0
    %p92 = por %p90, %p91
    %s94 = sadd.s32 %s93, 1
    %p97 = scmp.eq.s32.totalorder %s12, 1
    %p98 = scmp.ne.s32.totalorder %s93, %s95
    %p99 = scmp.eq.s32.totalorder %s12, 0
    %p100 = por %p98, %p99
    %p101 = scmp.ne.s32.totalorder %s93, %s95
    %p102 = scmp.eq.s32.totalorder %s17, 1
    %p103 = por %p101, %p102
    %p104 = scmp.ne.s32.totalorder %s95, %s96
    %p105 = scmp.eq.s32.totalorder %s17, 0
    %p106 = por %p104, %p105
    %p107 = scmp.ne.s32.totalorder %s95, %s96
    %p108 = scmp.eq.s32.totalorder %s18, 1
    %p109 = por %p107, %p108
    %p111 = scmp.ne.s32.totalorder %s96, %s110
    %p112 = scmp.eq.s32.totalorder %s18, 0
    %p113 = por %p111, %p112
    %s115 = sadd.s32 %s114, 1
    %p118 = scmp.eq.s32.totalorder %s12, 1
    %p119 = scmp.ne.s32.totalorder %s114, %s116
    %p120 = scmp.eq.s32.totalorder %s12, 0
    %p121 = por %p119, %p120
    %p122 = scmp.ne.s32.totalorder %s114, %s116
    %p123 = scmp.eq.s32.totalorder %s17, 1
    %p124 = por %p122, %p123
    %p125 = scmp.ne.s32.totalorder %s116, %s117
    %p126 = scmp.eq.s32.totalorder %s17, 0
    %p127 = por %p125, %p126
    %p128 = scmp.ne.s32.totalorder %s116, %s117
    %p129 = scmp.eq.s32.totalorder %s18, 1
    %p130 = por %p128, %p129
    %p132 = scmp.ne.s32.totalorder %s117, %s131
    %p133 = scmp.eq.s32.totalorder %s18, 0
    %p134 = por %p132, %p133
    %s135 = ssub.s32 %s12, %s19
    %p136 = scmp.eq.s32.totalorder %s135, 0
    %s138 = sadd.s32 %s137, 1
    %s139 = scalar_select %p136, %s137, %s138
    %p142 = pneg %p136
    %p143 = scmp.eq.s32.totalorder %s12, 1
    %p144 = por %p142, %p143
    %p145 = scmp.ne.s32.totalorder %s137, %s140
    %p146 = scmp.eq.s32.totalorder %s12, 0
    %p147 = por %p145, %p146
    %p148 = scmp.ne.s32.totalorder %s137, %s140
    %p149 = scmp.eq.s32.totalorder %s17, 1
    %p150 = por %p148, %p149
    %p151 = scmp.ne.s32.totalorder %s140, %s141
    %p152 = scmp.eq.s32.totalorder %s17, 0
    %p153 = por %p151, %p152
    %p154 = scmp.ne.s32.totalorder %s140, %s141
    %p155 = scmp.eq.s32.totalorder %s18, 1
    %p156 = por %p154, %p155
    %p158 = scmp.ne.s32.totalorder %s141, %s157
    %p159 = scmp.eq.s32.totalorder %s18, 0
    %p160 = por %p158, %p159
    %s161 = ssub.s32 %s12, %s19
    %p162 = scmp.eq.s32.totalorder %s161, 0
    %s164 = sadd.s32 %s163, 1
    %s165 = scalar_select %p162, %s163, %s164
    %p168 = pneg %p162
    %p169 = scmp.eq.s32.totalorder %s12, 1
    %p170 = por %p168, %p169
    %p171 = scmp.ne.s32.totalorder %s163, %s166
    %p172 = scmp.eq.s32.totalorder %s12, 0
    %p173 = por %p171, %p172
    %p174 = scmp.ne.s32.totalorder %s163, %s166
    %p175 = scmp.eq.s32.totalorder %s17, 1
    %p176 = por %p174, %p175
    %p177 = scmp.ne.s32.totalorder %s166, %s167
    %p178 = scmp.eq.s32.totalorder %s17, 0
    %p179 = por %p177, %p178
    %p180 = scmp.ne.s32.totalorder %s166, %s167
    %p181 = scmp.eq.s32.totalorder %s18, 1
    %p182 = por %p180, %p181
    %p184 = scmp.ne.s32.totalorder %s167, %s183
    %p185 = scmp.eq.s32.totalorder %s18, 0
    %p186 = por %p184, %p185
    %p187 = scmp.le.s32.totalorder 1, %s12
    %p188 = scmp.lt.s32.totalorder %s12, 3
    %p189 = pnand %p187, %p188
    %p190 = pneg %p189
    // Predicated region
    $region9: #{closed_call.17} parent=5 // pred_check
      _
    $region10: #{closed_call.17} parent=5 // pred_check_branch
      %192 = sbr.rel (%p189) target = $region12
    $region11: #{closed_call.17} parent=5 // pred_region
      %s193 = ssub.s32 %s12, 1
      // Predicated region
      $region13: #{closed_call.17} parent=11 // pred_check
        %p194 = pneg %p85
      $region14: #{closed_call.17} parent=11 // pred_check_branch
        %196 = sbr.rel (%p194) target = $region16
      $region15: #{closed_call.17} parent=11 // pred_region
        _
      $region16: #{closed_call.17} parent=11 // pred_fallthru
        _
      // Predicated region
      $region17: #{closed_call.17} parent=11 // pred_check
        %p197 = pneg %p106
      $region18: #{closed_call.17} parent=11 // pred_check_branch
        %199 = sbr.rel (%p197) target = $region20
      $region19: #{closed_call.17} parent=11 // pred_region
        _
      $region20: #{closed_call.17} parent=11 // pred_fallthru
        _
      // Predicated region
      $region21: #{closed_call.17} parent=11 // pred_check
        %p200 = pneg %p127
      $region22: #{closed_call.17} parent=11 // pred_check_branch
        %202 = sbr.rel (%p200) target = $region24
      $region23: #{closed_call.17} parent=11 // pred_region
        _
      $region24: #{closed_call.17} parent=11 // pred_fallthru
        _
    $region12: #{closed_call.17} parent=5 // pred_fallthru
      _
    %p203 = scmp.lt.s32.totalorder %s12, 2
    // Predicated region
    $region25: #{closed_call.17} parent=5 // pred_check
      %p204 = pneg %p203
    $region26: #{closed_call.17} parent=5 // pred_check_branch
      %206 = sbr.rel (%p204) target = $region28
    $region27: #{closed_call.17} parent=5 // pred_region
      // Predicated region
      $region29: #{closed_call.17} parent=27 // pred_check
        %p207 = pneg %p32
      $region30: #{closed_call.17} parent=27 // pred_check_branch
        %209 = sbr.rel (%p207) target = $region32
      $region31: #{closed_call.17} parent=27 // pred_region
        %p210 = scmp.lt.s32.totalorder %s12, 1
        %s211 = scalar_select %p210, %s12, 1
        %s212 = smul.addr %s211, 8
        %s213 = scalar_lea.vmem %s0, %s212
      $region32: #{closed_call.17} parent=27 // pred_fallthru
        _
      // Predicated region
      $region33: #{closed_call.17} parent=27 // pred_check
        %p214 = pneg %p58
      $region34: #{closed_call.17} parent=27 // pred_check_branch
        %216 = sbr.rel (%p214) target = $region36
      $region35: #{closed_call.17} parent=27 // pred_region
        %p217 = scmp.lt.s32.totalorder %s12, 1
        %s218 = scalar_select %p217, %s12, 1
        %s219 = smul.addr %s218, 8
        %s220 = scalar_lea.vmem %s1, %s219
      $region36: #{closed_call.17} parent=27 // pred_fallthru
        _
      // Predicated region
      $region37: #{closed_call.17} parent=27 // pred_check
        %p221 = pneg %p147
      $region38: #{closed_call.17} parent=27 // pred_check_branch
        %223 = sbr.rel (%p221) target = $region40
      $region39: #{closed_call.17} parent=27 // pred_region
        %p224 = scmp.lt.s32.totalorder %s12, 1
        %s225 = scalar_select %p224, %s12, 1
        %s226 = smul.addr %s225, 8
        %s227 = scalar_lea.vmem %s5, %s226
      $region40: #{closed_call.17} parent=27 // pred_fallthru
        _
    $region28: #{closed_call.17} parent=5 // pred_fallthru
      _
    %p228 = scmp.le.s32.totalorder 1, %s12
    %p229 = scmp.lt.s32.totalorder %s12, 3
    %p230 = pnand %p228, %p229
    %p231 = pneg %p230
    // Predicated region
    $region41: #{closed_call.17} parent=5 // pred_check
      _
    $region42: #{closed_call.17} parent=5 // pred_check_branch
      %233 = sbr.rel (%p230) target = $region44
    $region43: #{closed_call.17} parent=5 // pred_region
      %s234 = ssub.s32 %s12, 1
      %p235 = scmp.lt.s32.totalorder %s17, 1
      %s236 = scalar_select %p235, %s17, 1
      %s237 = smul.addr %s236, 8
      %s238 = scalar_lea.vmem %s0, %s237
      %p239 = pneg %p38
      %p240 = pneg %p35
      %p241 = scmp.lt.s32.totalorder %s17, 1
      %s242 = scalar_select %p241, %s17, 1
      %s243 = smul.addr %s242, 8
      %s244 = scalar_lea.vmem %s1, %s243
      %p245 = pneg %p64
      %p246 = pneg %p61
      %p247 = pneg %p85
      %p248 = pneg %p82
      %p249 = pneg %p106
      %p250 = pneg %p103
      %p251 = pneg %p127
      %p252 = pneg %p124
      %p253 = scmp.lt.s32.totalorder %s17, 1
      %s254 = scalar_select %p253, %s17, 1
      %s255 = smul.addr %s254, 8
      %s256 = scalar_lea.vmem %s5, %s255
      %p257 = pneg %p153
      %p258 = pneg %p150
      %p259 = pneg %p179
      %p260 = pneg %p176
      %p261 = scmp.lt.s32.totalorder %s17, 1
      %s262 = scalar_select %p261, %s17, 1
      %s263 = smul.addr %s262, 8
      %s264 = scalar_lea.vmem %s6, %s263
      %p265 = scmp.lt.s32.totalorder %s17, 1
      %s266 = scalar_select %p265, %s17, 1
      %s267 = smul.addr %s266, 8
      %s268 = scalar_lea.vmem %s0, %s267
      %p269 = scmp.lt.s32.totalorder %s17, 1
      %s270 = scalar_select %p269, %s17, 1
      %s271 = smul.addr %s270, 8
      %s272 = scalar_lea.vmem %s1, %s271
      %p273 = scmp.lt.s32.totalorder %s17, 1
      %s274 = scalar_select %p273, %s17, 1
      %s275 = smul.addr %s274, 8
      %s276 = scalar_lea.vmem %s5, %s275
      %p277 = scmp.lt.s32.totalorder %s17, 1
      %s278 = scalar_select %p277, %s17, 1
      %s279 = smul.addr %s278, 8
      %s280 = scalar_lea.vmem %s6, %s279
      %v281 = vld [vmem:[%s268] sm:$0xff]
      %v282 = vmul.f32 %v281, 0.35355338
      %v283 = vld [vmem:[%s272] sm:$0xff]
      %v284 = vld [vmem:[%s2] sm:$0xff]
      %v285 = vld [vmem:[%s3] sm:$0xff]
      %v286 = vld [vmem:[%s3 + $0x8] sm:$0xff]
      %v287 = vld [vmem:[%s3 + $0x10] sm:$0xff]
      %v288 = vld [vmem:[%s3 + $0x18] sm:$0xff]
      %vm289 = vcmask 64512
      %v291 = vsel %vm289, %v282, 0
      %v294 = vsel %vm289, %v283, 0
      %296 = vmatpush.xpose.msra.mxu0 0.0
      %297 = vmatpush.xpose.msra.mxu0 0.0
      %298 = vmatpush.xpose.msra.mxu0 0.0
      %299 = vmatpush.xpose.msra.mxu0 0.0
      %300 = vmatpush.xpose.msra.mxu0 0.0
      %301 = vmatpush.xpose.msra.mxu0 0.0
      %302 = vmatpush.xpose.msra.mxu0 0.0
      %303 = vmatpush.xpose.msra.mxu0 0.0
      %304 = vmatpush.xpose.msra.mxu0 0.0
      %305 = vmatpush.xpose.msra.mxu0 0.0
      %306 = vmatpush.xpose.msra.mxu0 0.0
      %307 = vmatpush.xpose.msra.mxu0 0.0
      %308 = vmatpush.xpose.msra.mxu0 0.0
      %309 = vmatpush.xpose.msra.mxu0 0.0
      %310 = vmatpush.xpose.msra.mxu0 0.0
      %311 = vmatpush.xpose.msra.mxu0 %v294
      %312 = vmatmul.f32.gmra.mxu0 %v291
      %v313 = vpop.f32.mrf.mxu0
      %v314 = vadd.f32 0.0, %v313
      %315 = vdwg.mxu0
      %vm316 = vcmp.eq.f32.partialorder %v284, 0.0
      %v317 = vsel %vm316, -1e+30, %v314
      %v318 = vsel %vm289, %v317, -inf
      %319 = vmax.xlane.f32.xlu0 %v318
      %v320 = vpop.xlane.xlu0 %319
      %v321 = vsub.f32 %v317, %v320
      %v322 = vmul.f32 %v321, 1.442695
      %v323 = vpow.pop %v322
      %v324 = vsel %vm289, %v323, 0.0
      %325 = vadd.xlane.f32.xlu0 %v324
      %v326 = vpop.xlane.xlu0 %325
      %v327 = vrcp.pop %v326
      %v328 = vmul.f32 %v323, %v327
      %329 = vrot.lane.b32.xlu0 %v283, 96
      %v330 = vpop.permute.xlu0 %329
      %v333 = vsel %vm289, %v328, 0
      %335 = vmatpush.msra.mxu0 0.0
      %336 = vmatpush.msra.mxu0 0.0
      %337 = vmatpush.msra.mxu0 0.0
      %338 = vmatpush.msra.mxu0 0.0
      %339 = vmatpush.msra.mxu0 0.0
      %340 = vmatpush.msra.mxu0 0.0
      %341 = vmatpush.msra.mxu0 0.0
      %342 = vmatpush.msra.mxu0 0.0
      %343 = vmatpush.msra.mxu0 0.0
      %344 = vmatpush.msra.mxu0 0.0
      %345 = vmatpush.msra.mxu0 0.0
      %346 = vmatpush.msra.mxu0 0.0
      %347 = vmatpush.msra.mxu0 0.0
      %348 = vmatpush.msra.mxu0 0.0
      %349 = vmatpush.msra.mxu0 0.0
      %350 = vmatpush.msra.mxu0 %v330
      %351 = vmatmul.f32.gmra.mxu0 %v333
      %v352 = vpop.f32.mrf.mxu0
      %v353 = vadd.f32 0.0, %v352
      %354 = vdwg.mxu0
      %355 = vrot.lane.b32.xlu0 %v282, 120
      %v356 = vpop.permute.xlu0 %355
      %357 = vrot.lane.b32.xlu0 %v283, 120
      %v358 = vpop.permute.xlu0 %357
      %v359 = vsel %vm289, %v356, 0
      %v361 = vsel %vm289, %v358, 0
      %363 = vmatpush.xpose.msra.mxu0 0.0
      %364 = vmatpush.xpose.msra.mxu0 0.0
      %365 = vmatpush.xpose.msra.mxu0 0.0
      %366 = vmatpush.xpose.msra.mxu0 0.0
      %367 = vmatpush.xpose.msra.mxu0 0.0
      %368 = vmatpush.xpose.msra.mxu0 0.0
      %369 = vmatpush.xpose.msra.mxu0 0.0
      %370 = vmatpush.xpose.msra.mxu0 0.0
      %371 = vmatpush.xpose.msra.mxu0 0.0
      %372 = vmatpush.xpose.msra.mxu0 0.0
      %373 = vmatpush.xpose.msra.mxu0 0.0
      %374 = vmatpush.xpose.msra.mxu0 0.0
      %375 = vmatpush.xpose.msra.mxu0 0.0
      %376 = vmatpush.xpose.msra.mxu0 0.0
      %377 = vmatpush.xpose.msra.mxu0 0.0
      %378 = vmatpush.xpose.msra.mxu0 %v361
      %379 = vmatmul.f32.gmra.mxu0 %v359
      %v380 = vpop.f32.mrf.mxu0
      %v381 = vadd.f32 0.0, %v380
      %382 = vdwg.mxu0
      %v383 = vsel %vm316, -1e+30, %v381
      %v384 = vsel %vm289, %v383, -inf
      %385 = vmax.xlane.f32.xlu0 %v384
      %v386 = vpop.xlane.xlu0 %385
      %v387 = vsub.f32 %v383, %v386
      %v388 = vmul.f32 %v387, 1.442695
      %v389 = vpow.pop %v388
      %v390 = vsel %vm289, %v389, 0.0
      %391 = vadd.xlane.f32.xlu0 %v390
      %v392 = vpop.xlane.xlu0 %391
      %v393 = vrcp.pop %v392
      %v394 = vmul.f32 %v389, %v393
      %395 = vrot.lane.b32.xlu0 %v283, 88
      %v396 = vpop.permute.xlu0 %395
      %v399 = vsel %vm289, %v394, 0
      %401 = vmatpush.msra.mxu0 0.0
      %402 = vmatpush.msra.mxu0 0.0
      %403 = vmatpush.msra.mxu0 0.0
      %404 = vmatpush.msra.mxu0 0.0
      %405 = vmatpush.msra.mxu0 0.0
      %406 = vmatpush.msra.mxu0 0.0
      %407 = vmatpush.msra.mxu0 0.0
      %408 = vmatpush.msra.mxu0 0.0
      %409 = vmatpush.msra.mxu0 0.0
      %410 = vmatpush.msra.mxu0 0.0
      %411 = vmatpush.msra.mxu0 0.0
      %412 = vmatpush.msra.mxu0 0.0
      %413 = vmatpush.msra.mxu0 0.0
      %414 = vmatpush.msra.mxu0 0.0
      %415 = vmatpush.msra.mxu0 0.0
      %416 = vmatpush.msra.mxu0 %v396
      %417 = vmatmul.f32.gmra.mxu0 %v399
      %v418 = vpop.f32.mrf.mxu0
      %v419 = vadd.f32 0.0, %v418
      %420 = vdwg.mxu0
      %v422 = vsel %vm289, %v419, 0
      %424 = vmatpush.msra.mxu0 0.0
      %425 = vmatpush.msra.mxu0 0.0
      %426 = vmatpush.msra.mxu0 0.0
      %427 = vmatpush.msra.mxu0 0.0
      %428 = vmatpush.msra.mxu0 0.0
      %429 = vmatpush.msra.mxu0 0.0
      %430 = vmatpush.msra.mxu0 0.0
      %431 = vmatpush.msra.mxu0 0.0
      %432 = vmatpush.msra.mxu0 0.0
      %433 = vmatpush.msra.mxu0 0.0
      %434 = vmatpush.msra.mxu0 0.0
      %435 = vmatpush.msra.mxu0 0.0
      %436 = vmatpush.msra.mxu0 0.0
      %437 = vmatpush.msra.mxu0 0.0
      %438 = vmatpush.msra.mxu0 0.0
      %439 = vmatpush.msra.mxu0 %v286
      %440 = vmatmul.f32.gmra.mxu0 %v422
      %v441 = vpop.f32.mrf.mxu0
      %v442 = vadd.f32 0.0, %v441
      %443 = vdwg.mxu0
      %v445 = vsel %vm289, %v353, 0
      %447 = vmatpush.msra.mxu0 0.0
      %448 = vmatpush.msra.mxu0 0.0
      %449 = vmatpush.msra.mxu0 0.0
      %450 = vmatpush.msra.mxu0 0.0
      %451 = vmatpush.msra.mxu0 0.0
      %452 = vmatpush.msra.mxu0 0.0
      %453 = vmatpush.msra.mxu0 0.0
      %454 = vmatpush.msra.mxu0 0.0
      %455 = vmatpush.msra.mxu0 0.0
      %456 = vmatpush.msra.mxu0 0.0
      %457 = vmatpush.msra.mxu0 0.0
      %458 = vmatpush.msra.mxu0 0.0
      %459 = vmatpush.msra.mxu0 0.0
      %460 = vmatpush.msra.mxu0 0.0
      %461 = vmatpush.msra.mxu0 0.0
      %462 = vmatpush.msra.mxu0 %v285
      %463 = vmatmul.f32.gmra.mxu0 %v445
      %v464 = vpop.f32.mrf.mxu0
      %v465 = vadd.f32 %v442, %v464
      %466 = vdwg.mxu0
      %467 = vrot.lane.b32.xlu0 %v282, 112
      %v468 = vpop.permute.xlu0 %467
      %469 = vrot.lane.b32.xlu0 %v283, 112
      %v470 = vpop.permute.xlu0 %469
      %v471 = vsel %vm289, %v468, 0
      %v473 = vsel %vm289, %v470, 0
      %475 = vmatpush.xpose.msra.mxu0 0.0
      %476 = vmatpush.xpose.msra.mxu0 0.0
      %477 = vmatpush.xpose.msra.mxu0 0.0
      %478 = vmatpush.xpose.msra.mxu0 0.0
      %479 = vmatpush.xpose.msra.mxu0 0.0
      %480 = vmatpush.xpose.msra.mxu0 0.0
      %481 = vmatpush.xpose.msra.mxu0 0.0
      %482 = vmatpush.xpose.msra.mxu0 0.0
      %483 = vmatpush.xpose.msra.mxu0 0.0
      %484 = vmatpush.xpose.msra.mxu0 0.0
      %485 = vmatpush.xpose.msra.mxu0 0.0
      %486 = vmatpush.xpose.msra.mxu0 0.0
      %487 = vmatpush.xpose.msra.mxu0 0.0
      %488 = vmatpush.xpose.msra.mxu0 0.0
      %489 = vmatpush.xpose.msra.mxu0 0.0
      %490 = vmatpush.xpose.msra.mxu0 %v473
      %491 = vmatmul.f32.gmra.mxu0 %v471
      %v492 = vpop.f32.mrf.mxu0
      %v493 = vadd.f32 0.0, %v492
      %494 = vdwg.mxu0
      %v495 = vsel %vm316, -1e+30, %v493
      %v496 = vsel %vm289, %v495, -inf
      %497 = vmax.xlane.f32.xlu0 %v496
      %v498 = vpop.xlane.xlu0 %497
      %v499 = vsub.f32 %v495, %v498
      %v500 = vmul.f32 %v499, 1.442695
      %v501 = vpow.pop %v500
      %v502 = vsel %vm289, %v501, 0.0
      %503 = vadd.xlane.f32.xlu0 %v502
      %v504 = vpop.xlane.xlu0 %503
      %v505 = vrcp.pop %v504
      %v506 = vmul.f32 %v501, %v505
      %507 = vrot.lane.b32.xlu0 %v283, 80
      %v508 = vpop.permute.xlu0 %507
      %v511 = vsel %vm289, %v506, 0
      %513 = vmatpush.msra.mxu0 0.0
      %514 = vmatpush.msra.mxu0 0.0
      %515 = vmatpush.msra.mxu0 0.0
      %516 = vmatpush.msra.mxu0 0.0
      %517 = vmatpush.msra.mxu0 0.0
      %518 = vmatpush.msra.mxu0 0.0
      %519 = vmatpush.msra.mxu0 0.0
      %520 = vmatpush.msra.mxu0 0.0
      %521 = vmatpush.msra.mxu0 0.0
      %522 = vmatpush.msra.mxu0 0.0
      %523 = vmatpush.msra.mxu0 0.0
      %524 = vmatpush.msra.mxu0 0.0
      %525 = vmatpush.msra.mxu0 0.0
      %526 = vmatpush.msra.mxu0 0.0
      %527 = vmatpush.msra.mxu0 0.0
      %528 = vmatpush.msra.mxu0 %v508
      %529 = vmatmul.f32.gmra.mxu0 %v511
      %v530 = vpop.f32.mrf.mxu0
      %v531 = vadd.f32 0.0, %v530
      %532 = vdwg.mxu0
      %v534 = vsel %vm289, %v531, 0
      %536 = vmatpush.msra.mxu0 0.0
      %537 = vmatpush.msra.mxu0 0.0
      %538 = vmatpush.msra.mxu0 0.0
      %539 = vmatpush.msra.mxu0 0.0
      %540 = vmatpush.msra.mxu0 0.0
      %541 = vmatpush.msra.mxu0 0.0
      %542 = vmatpush.msra.mxu0 0.0
      %543 = vmatpush.msra.mxu0 0.0
      %544 = vmatpush.msra.mxu0 0.0
      %545 = vmatpush.msra.mxu0 0.0
      %546 = vmatpush.msra.mxu0 0.0
      %547 = vmatpush.msra.mxu0 0.0
      %548 = vmatpush.msra.mxu0 0.0
      %549 = vmatpush.msra.mxu0 0.0
      %550 = vmatpush.msra.mxu0 0.0
      %551 = vmatpush.msra.mxu0 %v287
      %552 = vmatmul.f32.gmra.mxu0 %v534
      %v553 = vpop.f32.mrf.mxu0
      %v554 = vadd.f32 0.0, %v553
      %555 = vdwg.mxu0
      %v556 = vadd.f32 %v465, %v554
      %557 = vrot.lane.b32.xlu0 %v282, 104
      %v558 = vpop.permute.xlu0 %557
      %559 = vrot.lane.b32.xlu0 %v283, 104
      %v560 = vpop.permute.xlu0 %559
      %v561 = vsel %vm289, %v558, 0
      %v563 = vsel %vm289, %v560, 0
      %565 = vmatpush.xpose.msra.mxu0 0.0
      %566 = vmatpush.xpose.msra.mxu0 0.0
      %567 = vmatpush.xpose.msra.mxu0 0.0
      %568 = vmatpush.xpose.msra.mxu0 0.0
      %569 = vmatpush.xpose.msra.mxu0 0.0
      %570 = vmatpush.xpose.msra.mxu0 0.0
      %571 = vmatpush.xpose.msra.mxu0 0.0
      %572 = vmatpush.xpose.msra.mxu0 0.0
      %573 = vmatpush.xpose.msra.mxu0 0.0
      %574 = vmatpush.xpose.msra.mxu0 0.0
      %575 = vmatpush.xpose.msra.mxu0 0.0
      %576 = vmatpush.xpose.msra.mxu0 0.0
      %577 = vmatpush.xpose.msra.mxu0 0.0
      %578 = vmatpush.xpose.msra.mxu0 0.0
      %579 = vmatpush.xpose.msra.mxu0 0.0
      %580 = vmatpush.xpose.msra.mxu0 %v563
      %581 = vmatmul.f32.gmra.mxu0 %v561
      %v582 = vpop.f32.mrf.mxu0
      %v583 = vadd.f32 0.0, %v582
      %584 = vdwg.mxu0
      %v585 = vsel %vm316, -1e+30, %v583
      %v586 = vsel %vm289, %v585, -inf
      %587 = vmax.xlane.f32.xlu0 %v586
      %v588 = vpop.xlane.xlu0 %587
      %v589 = vsub.f32 %v585, %v588
      %v590 = vmul.f32 %v589, 1.442695
      %v591 = vpow.pop %v590
      %v592 = vsel %vm289, %v591, 0.0
      %593 = vadd.xlane.f32.xlu0 %v592
      %v594 = vpop.xlane.xlu0 %593
      %v595 = vrcp.pop %v594
      %v596 = vmul.f32 %v591, %v595
      %597 = vrot.lane.b32.xlu0 %v283, 72
      %v598 = vpop.permute.xlu0 %597
      %v601 = vsel %vm289, %v596, 0
      %603 = vmatpush.msra.mxu0 0.0
      %604 = vmatpush.msra.mxu0 0.0
      %605 = vmatpush.msra.mxu0 0.0
      %606 = vmatpush.msra.mxu0 0.0
      %607 = vmatpush.msra.mxu0 0.0
      %608 = vmatpush.msra.mxu0 0.0
      %609 = vmatpush.msra.mxu0 0.0
      %610 = vmatpush.msra.mxu0 0.0
      %611 = vmatpush.msra.mxu0 0.0
      %612 = vmatpush.msra.mxu0 0.0
      %613 = vmatpush.msra.mxu0 0.0
      %614 = vmatpush.msra.mxu0 0.0
      %615 = vmatpush.msra.mxu0 0.0
      %616 = vmatpush.msra.mxu0 0.0
      %617 = vmatpush.msra.mxu0 0.0
      %618 = vmatpush.msra.mxu0 %v598
      %619 = vmatmul.f32.gmra.mxu0 %v601
      %v620 = vpop.f32.mrf.mxu0
      %v621 = vadd.f32 0.0, %v620
      %622 = vdwg.mxu0
      %v624 = vsel %vm289, %v621, 0
      %626 = vmatpush.msra.mxu0 0.0
      %627 = vmatpush.msra.mxu0 0.0
      %628 = vmatpush.msra.mxu0 0.0
      %629 = vmatpush.msra.mxu0 0.0
      %630 = vmatpush.msra.mxu0 0.0
      %631 = vmatpush.msra.mxu0 0.0
      %632 = vmatpush.msra.mxu0 0.0
      %633 = vmatpush.msra.mxu0 0.0
      %634 = vmatpush.msra.mxu0 0.0
      %635 = vmatpush.msra.mxu0 0.0
      %636 = vmatpush.msra.mxu0 0.0
      %637 = vmatpush.msra.mxu0 0.0
      %638 = vmatpush.msra.mxu0 0.0
      %639 = vmatpush.msra.mxu0 0.0
      %640 = vmatpush.msra.mxu0 0.0
      %641 = vmatpush.msra.mxu0 %v288
      %642 = vmatmul.f32.gmra.mxu0 %v624
      %v643 = vpop.f32.mrf.mxu0
      %v644 = vadd.f32 0.0, %v643
      %645 = vdwg.mxu0
      %v646 = vadd.f32 %v556, %v644
      %v647 = vld [vmem:[%s4] sm:$0x1]
      %v649 = vperm.slane %v647, 0
      %v651 = vadd.f32 %v646, %v649
      %v652 = vld [vmem:[%s276] sm:$0xff]
      %v653 = vadd.f32 %v652, %v651
      %vm654 = vcmask 261120
      %655 = vst.msk [vmem:[%s280] sm:$0xff] %vm654, %v653
      %p656 = scmp.lt.s32.totalorder %s17, 1
      %s657 = scalar_select %p656, %s17, 1
      %s658 = smul.addr %s657, 8
      %s659 = scalar_lea.vmem %s6, %s658
      // Predicated region
      $region45: #{closed_call.17} parent=43 // pred_check
        %p660 = pneg %p176
      $region46: #{closed_call.17} parent=43 // pred_check_branch
        %662 = sbr.rel (%p660) target = $region48
      $region47: #{closed_call.17} parent=43 // pred_region
        _
      $region48: #{closed_call.17} parent=43 // pred_fallthru
        _
    $region44: #{closed_call.17} parent=5 // pred_fallthru
      _
    %p663 = scmp.le.s32.totalorder 2, %s12
    // Predicated region
    $region49: #{closed_call.17} parent=5 // pred_check
      %p664 = pneg %p663
    $region50: #{closed_call.17} parent=5 // pred_check_branch
      %666 = sbr.rel (%p664) target = $region52
    $region51: #{closed_call.17} parent=5 // pred_region
      %s667 = ssub.s32 %s12, 2
      // Predicated region
      $region53: #{closed_call.17} parent=51 // pred_check
        %p668 = pneg %p182
      $region54: #{closed_call.17} parent=51 // pred_check_branch
        %670 = sbr.rel (%p668) target = $region56
      $region55: #{closed_call.17} parent=51 // pred_region
        %p671 = scmp.lt.s32.totalorder %s18, 1
        %s672 = scalar_select %p671, %s18, 1
        %s673 = smul.addr %s672, 8
        %s674 = scalar_lea.vmem %s6, %s673
      $region56: #{closed_call.17} parent=51 // pred_fallthru
        _
    $region52: #{closed_call.17} parent=5 // pred_fallthru
      _
  $region6: #{closed_call.17} parent=0 // loop_footer
    %s16 = sadd.s32 1, %s12
  $region7: #{closed_call.17} parent=0 // loop_footer_branch
    %11 = sbr.rel target = $region3
  $region8: #{closed_call.17} parent=0 // loop_exit
    _

// kernel: decoder_forward.3
$region0: #{decoder_forward.3}
  #allocation0 [shape = 'u32[]', space=smem, size = 0x4, offset = 0x4, fixed_abs, tag = 'smem constant byte address 0x4 - core index']
  #allocation1 [shape = 'u32[72,128]{1,0:T(1,128)}', space=vmem, size = 0x9000, scoped, tag = 'internal scratch']
  %s0 = inlined_call_operand.vmem [shape: f32[16,32], index: 0, kind: input, shape index: {}]
  %s1 = inlined_call_operand.vmem [shape: f32[1,32], index: 1, kind: input, shape index: {}]
  %s2 = inlined_call_operand.vmem [shape: f32[1,32], index: 2, kind: input, shape index: {}]
  %s3 = inlined_call_operand.vmem [shape: f32[16,32], index: 3, kind: output, shape index: {}]
  %s4 = sld [smem:[#allocation0]]
  $region22: #{decoder_forward.3} parent=0
    _
  %s6 = ssub.s32 1, %s4
  %s7 = scalar_select 0, %s6, %s4
  // Predicated region
  $region2: #{decoder_forward.3} parent=0 // pred_check
    _
  $region3: #{decoder_forward.3} parent=0 // pred_check_branch
    %9 = sbr.rel (0) target = $region5
  $region4: #{decoder_forward.3} parent=0 // pred_region
    _
  $region5: #{decoder_forward.3} parent=0 // pred_fallthru
    _
  // Predicated region
  $region6: #{decoder_forward.3} parent=0 // pred_check
    _
  $region7: #{decoder_forward.3} parent=0 // pred_check_branch
    %11 = sbr.rel (0) target = $region9
  $region8: #{decoder_forward.3} parent=0 // pred_region
    _
  $region9: #{decoder_forward.3} parent=0 // pred_fallthru
    _
  // Predicated region
  $region10: #{decoder_forward.3} parent=0 // pred_check
    _
  $region11: #{decoder_forward.3} parent=0 // pred_check_branch
    %13 = sbr.rel (0) target = $region13
  $region12: #{decoder_forward.3} parent=0 // pred_region
    _
  $region13: #{decoder_forward.3} parent=0 // pred_fallthru
    _
  %v14 = vld [vmem:[%s0] sm:$0xff]
  %v15 = vld [vmem:[%s0 + $0x8] sm:$0xff]
  %vm16 = vcmask 261120
  %v17 = vsel %vm16, %v14, 0.0
  %18 = vadd.xlane.f32.xlu0 %v17
  %v19 = vpop.xlane.xlu0 %18
  %v20 = vsel %vm16, %v15, 0.0
  %21 = vadd.xlane.f32.xlu0 %v20
  %v22 = vpop.xlane.xlu0 %21
  %v23 = vrcp.pop 32.0
  %v24 = vmul.f32 32.0, %v23
  %v25 = vsub.f32 1.0, %v24
  %v26 = vmul.f32 %v23, %v25
  %v27 = vadd.f32 %v23, %v26
  %vm28 = vweird.f32 %v23
  %v29 = vsel %vm28, %v23, %v27
  %v30 = vmul.f32 %v19, %v29
  %v31 = vmul.f32 %v22, %v29
  %v32 = vsub.f32 %v14, %v30
  %v33 = vsub.f32 %v15, %v31
  %v34 = vmul.f32 %v32, %v32
  %v35 = vmul.f32 %v33, %v33
  %v36 = vsel %vm16, %v34, 0.0
  %37 = vadd.xlane.f32.xlu0 %v36
  %v38 = vpop.xlane.xlu0 %37
  %v39 = vsel %vm16, %v35, 0.0
  %40 = vadd.xlane.f32.xlu0 %v39
  %v41 = vpop.xlane.xlu0 %40
  %v42 = vmul.f32 %v38, %v29
  %v43 = vmul.f32 %v41, %v29
  %v44 = vadd.f32 %v42, 1e-05
  %v45 = vadd.f32 %v43, 1e-05
  %v46 = vrsqrt.pop %v44
  %v47 = vmul.f32 %v46, %v44
  %v48 = vmul.f32 %v47, %v46
  %v49 = vmul.f32 0.5, %v48
  %v50 = vsub.f32 1.5, %v49
  %v51 = vmul.f32 %v46, %v50
  %vm52 = vweird.f32 %v44
  %vm53 = vweird.f32 %v46
  %vm54 = vmor %vm52, %vm53
  %v55 = vsel %vm54, %v46, %v51
  %v56 = vrsqrt.pop %v45
  %v57 = vmul.f32 %v56, %v45
  %v58 = vmul.f32 %v57, %v56
  %v59 = vmul.f32 0.5, %v58
  %v60 = vsub.f32 1.5, %v59
  %v61 = vmul.f32 %v56, %v60
  %vm62 = vweird.f32 %v45
  %vm63 = vweird.f32 %v56
  %vm64 = vmor %vm62, %vm63
  %v65 = vsel %vm64, %v56, %v61
  %v66 = vmul.f32 %v32, %v55
  %v67 = vmul.f32 %v33, %v65
  %v68 = vld [vmem:[%s1] sm:$0x1]
  %v70 = vperm.slane %v68, 0
  %v72 = vmul.f32 %v66, %v70
  %v73 = vmul.f32 %v67, %v70
  %v74 = vld [vmem:[%s2] sm:$0x1]
  %v76 = vperm.slane %v74, 0
  %v78 = vadd.f32 %v72, %v76
  %v79 = vadd.f32 %v73, %v76
  %80 = vst.msk [vmem:[%s3] sm:$0xff] %vm16, %v78
  %81 = vst.msk [vmem:[%s3 + $0x8] sm:$0xff] %vm16, %v79
  // Predicated region
  $region14: #{decoder_forward.3} parent=0 // pred_check
    _
  $region15: #{decoder_forward.3} parent=0 // pred_check_branch
    %83 = sbr.rel (0) target = $region17
  $region16: #{decoder_forward.3} parent=0 // pred_region
    _
  $region17: #{decoder_forward.3} parent=0 // pred_fallthru
    _
  // Predicated region
  $region18: #{decoder_forward.3} parent=0 // pred_check
    _
  $region19: #{decoder_forward.3} parent=0 // pred_check_branch
    %85 = sbr.rel (0) target = $region21
  $region20: #{decoder_forward.3} parent=0 // pred_region
    _
  $region21: #{decoder_forward.3} parent=0 // pred_fallthru
    _

// kernel: closed_call.19
$region0: #{closed_call.19}
  #allocation0 [shape = 'u32[]', space=smem, size = 0x4, offset = 0x4, fixed_abs, tag = 'smem constant byte address 0x4 - core index']
  #allocation1 [shape = 'u32[72,128]{1,0:T(1,128)}', space=vmem, size = 0x9000, scoped, tag = 'internal scratch']
  %s0 = inlined_call_operand.vmem [shape: f32[2,8,32], index: 0, kind: input, shape index: {}]
  %s1 = inlined_call_operand.vmem [shape: f32[2,8,64], index: 1, kind: input, shape index: {}]
  %s2 = inlined_call_operand.vmem [shape: f32[2,1,8], index: 2, kind: input, shape index: {}]
  %s3 = inlined_call_operand.vmem [shape: f32[32,32], index: 3, kind: input, shape index: {}]
  %s4 = inlined_call_operand.vmem [shape: f32[1,32], index: 4, kind: input, shape index: {}]
  %s5 = inlined_call_operand.vmem [shape: f32[2,8,32], index: 5, kind: input, shape index: {}]
  %s6 = inlined_call_operand.vmem [shape: f32[2,8,32], index: 6, kind: output, shape index: {}]
  %s7 = sld [smem:[#allocation0]]
  $region57: #{closed_call.19} parent=0
    _
  %s9 = ssub.s32 1, %s7
  %s10 = scalar_select 0, %s9, %s7
  loop: start=0, step=1, limit=4
  $region2: #{closed_call.19} parent=0 // loop_pre_header
    _
  $region3: #{closed_call.19} parent=0 // loop_header
    %s12 = sphi 0, %s16
    %p13 = scmp.ge.s32.totalorder %s12, 4
    %s22 = sphi 0, %s24
    %s25 = sphi 0, %s22
    %s26 = sphi 0, %s25
    %s42 = sphi 0, %s26
    %s48 = sphi 0, %s50
    %s51 = sphi 0, %s48
    %s52 = sphi 0, %s51
    %s68 = sphi 0, %s52
    %s74 = sphi 0, %s76
    %s77 = sphi 0, %s74
    %s78 = sphi 0, %s77
    %s94 = sphi 0, %s78
    %s98 = sphi 0, %s98
    %s100 = sphi 0, %s98
    %s101 = sphi 0, %s100
    %s115 = sphi 0, %s101
    %s119 = sphi 0, %s119
    %s121 = sphi 0, %s119
    %s122 = sphi 0, %s121
    %s136 = sphi 0, %s122
    %s142 = sphi 0, %s144
    %s145 = sphi 0, %s142
    %s146 = sphi 0, %s145
    %s162 = sphi 0, %s146
    %s168 = sphi 0, %s170
    %s171 = sphi 0, %s168
    %s172 = sphi 0, %s171
    %s188 = sphi 0, %s172
  $region4: #{closed_call.19} parent=0 // loop_header_branch
    %15 = sbr.rel (%p13) target = $region8
  $region5: #{closed_call.19} parent=0 // loop_body
    %s17 = ssub.s32 %s12, 1
    %s18 = ssub.s32 %s12, 2
    %s19 = sadd.s32 %s12, 1
    %s20 = ssub.s32 %s12, %s19
    %p21 = scmp.eq.s32.totalorder %s20, 0
    %s23 = sadd.s32 %s22, 1
    %s24 = scalar_select %p21, %s22, %s23
    %p27 = pneg %p21
    %p28 = scmp.eq.s32.totalorder %s12, 1
    %p29 = por %p27, %p28
    %p30 = scmp.ne.s32.totalorder %s22, %s25
    %p31 = scmp.eq.s32.totalorder %s12, 0
    %p32 = por %p30, %p31
    %p33 = scmp.ne.s32.totalorder %s22, %s25
    %p34 = scmp.eq.s32.totalorder %s17, 1
    %p35 = por %p33, %p34
    %p36 = scmp.ne.s32.totalorder %s25, %s26
    %p37 = scmp.eq.s32.totalorder %s17, 0
    %p38 = por %p36, %p37
    %p39 = scmp.ne.s32.totalorder %s25, %s26
    %p40 = scmp.eq.s32.totalorder %s18, 1
    %p41 = por %p39, %p40
    %p43 = scmp.ne.s32.totalorder %s26, %s42
    %p44 = scmp.eq.s32.totalorder %s18, 0
    %p45 = por %p43, %p44
    %s46 = ssub.s32 %s12, %s19
    %p47 = scmp.eq.s32.totalorder %s46, 0
    %s49 = sadd.s32 %s48, 1
    %s50 = scalar_select %p47, %s48, %s49
    %p53 = pneg %p47
    %p54 = scmp.eq.s32.totalorder %s12, 1
    %p55 = por %p53, %p54
    %p56 = scmp.ne.s32.totalorder %s48, %s51
    %p57 = scmp.eq.s32.totalorder %s12, 0
    %p58 = por %p56, %p57
    %p59 = scmp.ne.s32.totalorder %s48, %s51
    %p60 = scmp.eq.s32.totalorder %s17, 1
    %p61 = por %p59, %p60
    %p62 = scmp.ne.s32.totalorder %s51, %s52
    %p63 = scmp.eq.s32.totalorder %s17, 0
    %p64 = por %p62, %p63
    %p65 = scmp.ne.s32.totalorder %s51, %s52
    %p66 = scmp.eq.s32.totalorder %s18, 1
    %p67 = por %p65, %p66
    %p69 = scmp.ne.s32.totalorder %s52, %s68
    %p70 = scmp.eq.s32.totalorder %s18, 0
    %p71 = por %p69, %p70
    %s72 = ssub.s32 %s12, %s19
    %p73 = scmp.eq.s32.totalorder %s72, 0
    %s75 = sadd.s32 %s74, 1
    %s76 = scalar_select %p73, %s74, %s75
    %p79 = pneg %p73
    %p80 = scmp.eq.s32.totalorder %s12, 1
    %p81 = por %p79, %p80
    %p82 = scmp.ne.s32.totalorder %s74, %s77
    %p83 = scmp.eq.s32.totalorder %s12, 0
    %p84 = por %p82, %p83
    %p85 = scmp.ne.s32.totalorder %s74, %s77
    %p86 = scmp.eq.s32.totalorder %s17, 1
    %p87 = por %p85, %p86
    %p88 = scmp.ne.s32.totalorder %s77, %s78
    %p89 = scmp.eq.s32.totalorder %s17, 0
    %p90 = por %p88, %p89
    %p91 = scmp.ne.s32.totalorder %s77, %s78
    %p92 = scmp.eq.s32.totalorder %s18, 1
    %p93 = por %p91, %p92
    %p95 = scmp.ne.s32.totalorder %s78, %s94
    %p96 = scmp.eq.s32.totalorder %s18, 0
    %p97 = por %p95, %p96
    %s99 = sadd.s32 %s98, 1
    %p102 = scmp.eq.s32.totalorder %s12, 1
    %p103 = scmp.ne.s32.totalorder %s98, %s100
    %p104 = scmp.eq.s32.totalorder %s12, 0
    %p105 = por %p103, %p104
    %p106 = scmp.ne.s32.totalorder %s98, %s100
    %p107 = scmp.eq.s32.totalorder %s17, 1
    %p108 = por %p106, %p107
    %p109 = scmp.ne.s32.totalorder %s100, %s101
    %p110 = scmp.eq.s32.totalorder %s17, 0
    %p111 = por %p109, %p110
    %p112 = scmp.ne.s32.totalorder %s100, %s101
    %p113 = scmp.eq.s32.totalorder %s18, 1
    %p114 = por %p112, %p113
    %p116 = scmp.ne.s32.totalorder %s101, %s115
    %p117 = scmp.eq.s32.totalorder %s18, 0
    %p118 = por %p116, %p117
    %s120 = sadd.s32 %s119, 1
    %p123 = scmp.eq.s32.totalorder %s12, 1
    %p124 = scmp.ne.s32.totalorder %s119, %s121
    %p125 = scmp.eq.s32.totalorder %s12, 0
    %p126 = por %p124, %p125
    %p127 = scmp.ne.s32.totalorder %s119, %s121
    %p128 = scmp.eq.s32.totalorder %s17, 1
    %p129 = por %p127, %p128
    %p130 = scmp.ne.s32.totalorder %s121, %s122
    %p131 = scmp.eq.s32.totalorder %s17, 0
    %p132 = por %p130, %p131
    %p133 = scmp.ne.s32.totalorder %s121, %s122
    %p134 = scmp.eq.s32.totalorder %s18, 1
    %p135 = por %p133, %p134
    %p137 = scmp.ne.s32.totalorder %s122, %s136
    %p138 = scmp.eq.s32.totalorder %s18, 0
    %p139 = por %p137, %p138
    %s140 = ssub.s32 %s12, %s19
    %p141 = scmp.eq.s32.totalorder %s140, 0
    %s143 = sadd.s32 %s142, 1
    %s144 = scalar_select %p141, %s142, %s143
    %p147 = pneg %p141
    %p148 = scmp.eq.s32.totalorder %s12, 1
    %p149 = por %p147, %p148
    %p150 = scmp.ne.s32.totalorder %s142, %s145
    %p151 = scmp.eq.s32.totalorder %s12, 0
    %p152 = por %p150, %p151
    %p153 = scmp.ne.s32.totalorder %s142, %s145
    %p154 = scmp.eq.s32.totalorder %s17, 1
    %p155 = por %p153, %p154
    %p156 = scmp.ne.s32.totalorder %s145, %s146
    %p157 = scmp.eq.s32.totalorder %s17, 0
    %p158 = por %p156, %p157
    %p159 = scmp.ne.s32.totalorder %s145, %s146
    %p160 = scmp.eq.s32.totalorder %s18, 1
    %p161 = por %p159, %p160
    %p163 = scmp.ne.s32.totalorder %s146, %s162
    %p164 = scmp.eq.s32.totalorder %s18, 0
    %p165 = por %p163, %p164
    %s166 = ssub.s32 %s12, %s19
    %p167 = scmp.eq.s32.totalorder %s166, 0
    %s169 = sadd.s32 %s168, 1
    %s170 = scalar_select %p167, %s168, %s169
    %p173 = pneg %p167
    %p174 = scmp.eq.s32.totalorder %s12, 1
    %p175 = por %p173, %p174
    %p176 = scmp.ne.s32.totalorder %s168, %s171
    %p177 = scmp.eq.s32.totalorder %s12, 0
    %p178 = por %p176, %p177
    %p179 = scmp.ne.s32.totalorder %s168, %s171
    %p180 = scmp.eq.s32.totalorder %s17, 1
    %p181 = por %p179, %p180
    %p182 = scmp.ne.s32.totalorder %s171, %s172
    %p183 = scmp.eq.s32.totalorder %s17, 0
    %p184 = por %p182, %p183
    %p185 = scmp.ne.s32.totalorder %s171, %s172
    %p186 = scmp.eq.s32.totalorder %s18, 1
    %p187 = por %p185, %p186
    %p189 = scmp.ne.s32.totalorder %s172, %s188
    %p190 = scmp.eq.s32.totalorder %s18, 0
    %p191 = por %p189, %p190
    %p192 = scmp.le.s32.totalorder 1, %s12
    %p193 = scmp.lt.s32.totalorder %s12, 3
    %p194 = pnand %p192, %p193
    %p195 = pneg %p194
    // Predicated region
    $region9: #{closed_call.19} parent=5 // pred_check
      _
    $region10: #{closed_call.19} parent=5 // pred_check_branch
      %197 = sbr.rel (%p194) target = $region12
    $region11: #{closed_call.19} parent=5 // pred_region
      %s198 = ssub.s32 %s12, 1
      // Predicated region
      $region13: #{closed_call.19} parent=11 // pred_check
        %p199 = pneg %p111
      $region14: #{closed_call.19} parent=11 // pred_check_branch
        %201 = sbr.rel (%p199) target = $region16
      $region15: #{closed_call.19} parent=11 // pred_region
        _
      $region16: #{closed_call.19} parent=11 // pred_fallthru
        _
      // Predicated region
      $region17: #{closed_call.19} parent=11 // pred_check
        %p202 = pneg %p132
      $region18: #{closed_call.19} parent=11 // pred_check_branch
        %204 = sbr.rel (%p202) target = $region20
      $region19: #{closed_call.19} parent=11 // pred_region
        _
      $region20: #{closed_call.19} parent=11 // pred_fallthru
        _
    $region12: #{closed_call.19} parent=5 // pred_fallthru
      _
    %p205 = scmp.lt.s32.totalorder %s12, 2
    // Predicated region
    $region21: #{closed_call.19} parent=5 // pred_check
      %p206 = pneg %p205
    $region22: #{closed_call.19} parent=5 // pred_check_branch
      %208 = sbr.rel (%p206) target = $region24
    $region23: #{closed_call.19} parent=5 // pred_region
      // Predicated region
      $region25: #{closed_call.19} parent=23 // pred_check
        %p209 = pneg %p32
      $region26: #{closed_call.19} parent=23 // pred_check_branch
        %211 = sbr.rel (%p209) target = $region28
      $region27: #{closed_call.19} parent=23 // pred_region
        %p212 = scmp.lt.s32.totalorder %s12, 1
        %s213 = scalar_select %p212, %s12, 1
        %s214 = smul.addr %s213, 8
        %s215 = scalar_lea.vmem %s0, %s214
      $region28: #{closed_call.19} parent=23 // pred_fallthru
        _
      // Predicated region
      $region29: #{closed_call.19} parent=23 // pred_check
        %p216 = pneg %p58
      $region30: #{closed_call.19} parent=23 // pred_check_branch
        %218 = sbr.rel (%p216) target = $region32
      $region31: #{closed_call.19} parent=23 // pred_region
        %p219 = scmp.lt.s32.totalorder %s12, 1
        %s220 = scalar_select %p219, %s12, 1
        %s221 = smul.addr %s220, 8
        %s222 = scalar_lea.vmem %s1, %s221
      $region32: #{closed_call.19} parent=23 // pred_fallthru
        _
      // Predicated region
      $region33: #{closed_call.19} parent=23 // pred_check
        %p223 = pneg %p84
      $region34: #{closed_call.19} parent=23 // pred_check_branch
        %225 = sbr.rel (%p223) target = $region36
      $region35: #{closed_call.19} parent=23 // pred_region
        %p226 = scmp.lt.s32.totalorder %s12, 1
        %s227 = scalar_select %p226, %s12, 1
        %s228 = scalar_lea.vmem %s2, %s227
      $region36: #{closed_call.19} parent=23 // pred_fallthru
        _
      // Predicated region
      $region37: #{closed_call.19} parent=23 // pred_check
        %p229 = pneg %p152
      $region38: #{closed_call.19} parent=23 // pred_check_branch
        %231 = sbr.rel (%p229) target = $region40
      $region39: #{closed_call.19} parent=23 // pred_region
        %p232 = scmp.lt.s32.totalorder %s12, 1
        %s233 = scalar_select %p232, %s12, 1
        %s234 = smul.addr %s233, 8
        %s235 = scalar_lea.vmem %s5, %s234
      $region40: #{closed_call.19} parent=23 // pred_fallthru
        _
    $region24: #{closed_call.19} parent=5 // pred_fallthru
      _
    %p236 = scmp.le.s32.totalorder 1, %s12
    %p237 = scmp.lt.s32.totalorder %s12, 3
    %p238 = pnand %p236, %p237
    %p239 = pneg %p238
    // Predicated region
    $region41: #{closed_call.19} parent=5 // pred_check
      _
    $region42: #{closed_call.19} parent=5 // pred_check_branch
      %241 = sbr.rel (%p238) target = $region44
    $region43: #{closed_call.19} parent=5 // pred_region
      %s242 = ssub.s32 %s12, 1
      %p243 = scmp.lt.s32.totalorder %s17, 1
      %s244 = scalar_select %p243, %s17, 1
      %s245 = smul.addr %s244, 8
      %s246 = scalar_lea.vmem %s0, %s245
      %p247 = pneg %p38
      %p248 = pneg %p35
      %p249 = scmp.lt.s32.totalorder %s17, 1
      %s250 = scalar_select %p249, %s17, 1
      %s251 = smul.addr %s250, 8
      %s252 = scalar_lea.vmem %s1, %s251
      %p253 = pneg %p64
      %p254 = pneg %p61
      %p255 = scmp.lt.s32.totalorder %s17, 1
      %s256 = scalar_select %p255, %s17, 1
      %s257 = scalar_lea.vmem %s2, %s256
      %p258 = pneg %p90
      %p259 = pneg %p87
      %p260 = pneg %p111
      %p261 = pneg %p108
      %p262 = pneg %p132
      %p263 = pneg %p129
      %p264 = scmp.lt.s32.totalorder %s17, 1
      %s265 = scalar_select %p264, %s17, 1
      %s266 = smul.addr %s265, 8
      %s267 = scalar_lea.vmem %s5, %s266
      %p268 = pneg %p158
      %p269 = pneg %p155
      %p270 = pneg %p184
      %p271 = pneg %p181
      %p272 = scmp.lt.s32.totalorder %s17, 1
      %s273 = scalar_select %p272, %s17, 1
      %s274 = smul.addr %s273, 8
      %s275 = scalar_lea.vmem %s6, %s274
      %p276 = scmp.lt.s32.totalorder %s17, 1
      %s277 = scalar_select %p276, %s17, 1
      %s278 = smul.addr %s277, 8
      %s279 = scalar_lea.vmem %s0, %s278
      %p280 = scmp.lt.s32.totalorder %s17, 1
      %s281 = scalar_select %p280, %s17, 1
      %s282 = smul.addr %s281, 8
      %s283 = scalar_lea.vmem %s1, %s282
      %p284 = scmp.lt.s32.totalorder %s17, 1
      %s285 = scalar_select %p284, %s17, 1
      %s286 = scalar_lea.vmem %s2, %s285
      %p287 = scmp.lt.s32.totalorder %s17, 1
      %s288 = scalar_select %p287, %s17, 1
      %s289 = smul.addr %s288, 8
      %s290 = scalar_lea.vmem %s5, %s289
      %p291 = scmp.lt.s32.totalorder %s17, 1
      %s292 = scalar_select %p291, %s17, 1
      %s293 = smul.addr %s292, 8
      %s294 = scalar_lea.vmem %s6, %s293
      %v295 = vld [vmem:[%s279] sm:$0xff]
      %v296 = vmul.f32 %v295, 0.35355338
      %v297 = vld [vmem:[%s283] sm:$0xff]
      %v298 = vld [vmem:[%s286] sm:$0x1]
      %v299 = vld [vmem:[%s3] sm:$0xff]
      %v300 = vld [vmem:[%s3 + $0x8] sm:$0xff]
      %v301 = vld [vmem:[%s3 + $0x10] sm:$0xff]
      %v302 = vld [vmem:[%s3 + $0x18] sm:$0xff]
      %vm303 = vcmask 64512
      %v305 = vsel %vm303, %v296, 0
      %v308 = vsel %vm303, %v297, 0
      %310 = vmatpush.xpose.msra.mxu0 0.0
      %311 = vmatpush.xpose.msra.mxu0 0.0
      %312 = vmatpush.xpose.msra.mxu0 0.0
      %313 = vmatpush.xpose.msra.mxu0 0.0
      %314 = vmatpush.xpose.msra.mxu0 0.0
      %315 = vmatpush.xpose.msra.mxu0 0.0
      %316 = vmatpush.xpose.msra.mxu0 0.0
      %317 = vmatpush.xpose.msra.mxu0 0.0
      %318 = vmatpush.xpose.msra.mxu0 0.0
      %319 = vmatpush.xpose.msra.mxu0 0.0
      %320 = vmatpush.xpose.msra.mxu0 0.0
      %321 = vmatpush.xpose.msra.mxu0 0.0
      %322 = vmatpush.xpose.msra.mxu0 0.0
      %323 = vmatpush.xpose.msra.mxu0 0.0
      %324 = vmatpush.xpose.msra.mxu0 0.0
      %325 = vmatpush.xpose.msra.mxu0 %v308
      %326 = vmatmul.f32.gmra.mxu0 %v305
      %v327 = vpop.f32.mrf.mxu0
      %v328 = vadd.f32 0.0, %v327
      %329 = vdwg.mxu0
      %vm330 = vcmp.eq.f32.partialorder %v298, 0.0
      %v331 = vsel %vm330, 1, 0
      %v332 = vperm.slane %v331, 0
      %vm333 = vcmp.eq.s32.totalorder %v332, 1
      %v334 = vsel %vm333, -1e+30, %v328
      %v335 = vsel %vm303, %v334, -inf
      %336 = vmax.xlane.f32.xlu0 %v335
      %v337 = vpop.xlane.xlu0 %336
      %v338 = vsub.f32 %v334, %v337
      %v339 = vmul.f32 %v338, 1.442695
      %v340 = vpow.pop %v339
      %v341 = vsel %vm303, %v340, 0.0
      %342 = vadd.xlane.f32.xlu0 %v341
      %v343 = vpop.xlane.xlu0 %342
      %v344 = vrcp.pop %v343
      %v345 = vmul.f32 %v340, %v344
      %346 = vrot.lane.b32.xlu0 %v297, 96
      %v347 = vpop.permute.xlu0 %346
      %v350 = vsel %vm303, %v345, 0
      %352 = vmatpush.msra.mxu0 0.0
      %353 = vmatpush.msra.mxu0 0.0
      %354 = vmatpush.msra.mxu0 0.0
      %355 = vmatpush.msra.mxu0 0.0
      %356 = vmatpush.msra.mxu0 0.0
      %357 = vmatpush.msra.mxu0 0.0
      %358 = vmatpush.msra.mxu0 0.0
      %359 = vmatpush.msra.mxu0 0.0
      %360 = vmatpush.msra.mxu0 0.0
      %361 = vmatpush.msra.mxu0 0.0
      %362 = vmatpush.msra.mxu0 0.0
      %363 = vmatpush.msra.mxu0 0.0
      %364 = vmatpush.msra.mxu0 0.0
      %365 = vmatpush.msra.mxu0 0.0
      %366 = vmatpush.msra.mxu0 0.0
      %367 = vmatpush.msra.mxu0 %v347
      %368 = vmatmul.f32.gmra.mxu0 %v350
      %v369 = vpop.f32.mrf.mxu0
      %v370 = vadd.f32 0.0, %v369
      %371 = vdwg.mxu0
      %372 = vrot.lane.b32.xlu0 %v296, 120
      %v373 = vpop.permute.xlu0 %372
      %374 = vrot.lane.b32.xlu0 %v297, 120
      %v375 = vpop.permute.xlu0 %374
      %v376 = vsel %vm303, %v373, 0
      %v378 = vsel %vm303, %v375, 0
      %380 = vmatpush.xpose.msra.mxu0 0.0
      %381 = vmatpush.xpose.msra.mxu0 0.0
      %382 = vmatpush.xpose.msra.mxu0 0.0
      %383 = vmatpush.xpose.msra.mxu0 0.0
      %384 = vmatpush.xpose.msra.mxu0 0.0
      %385 = vmatpush.xpose.msra.mxu0 0.0
      %386 = vmatpush.xpose.msra.mxu0 0.0
      %387 = vmatpush.xpose.msra.mxu0 0.0
      %388 = vmatpush.xpose.msra.mxu0 0.0
      %389 = vmatpush.xpose.msra.mxu0 0.0
      %390 = vmatpush.xpose.msra.mxu0 0.0
      %391 = vmatpush.xpose.msra.mxu0 0.0
      %392 = vmatpush.xpose.msra.mxu0 0.0
      %393 = vmatpush.xpose.msra.mxu0 0.0
      %394 = vmatpush.xpose.msra.mxu0 0.0
      %395 = vmatpush.xpose.msra.mxu0 %v378
      %396 = vmatmul.f32.gmra.mxu0 %v376
      %v397 = vpop.f32.mrf.mxu0
      %v398 = vadd.f32 0.0, %v397
      %399 = vdwg.mxu0
      %v400 = vsel %vm333, -1e+30, %v398
      %v401 = vsel %vm303, %v400, -inf
      %402 = vmax.xlane.f32.xlu0 %v401
      %v403 = vpop.xlane.xlu0 %402
      %v404 = vsub.f32 %v400, %v403
      %v405 = vmul.f32 %v404, 1.442695
      %v406 = vpow.pop %v405
      %v407 = vsel %vm303, %v406, 0.0
      %408 = vadd.xlane.f32.xlu0 %v407
      %v409 = vpop.xlane.xlu0 %408
      %v410 = vrcp.pop %v409
      %v411 = vmul.f32 %v406, %v410
      %412 = vrot.lane.b32.xlu0 %v297, 88
      %v413 = vpop.permute.xlu0 %412
      %v416 = vsel %vm303, %v411, 0
      %418 = vmatpush.msra.mxu0 0.0
      %419 = vmatpush.msra.mxu0 0.0
      %420 = vmatpush.msra.mxu0 0.0
      %421 = vmatpush.msra.mxu0 0.0
      %422 = vmatpush.msra.mxu0 0.0
      %423 = vmatpush.msra.mxu0 0.0
      %424 = vmatpush.msra.mxu0 0.0
      %425 = vmatpush.msra.mxu0 0.0
      %426 = vmatpush.msra.mxu0 0.0
      %427 = vmatpush.msra.mxu0 0.0
      %428 = vmatpush.msra.mxu0 0.0
      %429 = vmatpush.msra.mxu0 0.0
      %430 = vmatpush.msra.mxu0 0.0
      %431 = vmatpush.msra.mxu0 0.0
      %432 = vmatpush.msra.mxu0 0.0
      %433 = vmatpush.msra.mxu0 %v413
      %434 = vmatmul.f32.gmra.mxu0 %v416
      %v435 = vpop.f32.mrf.mxu0
      %v436 = vadd.f32 0.0, %v435
      %437 = vdwg.mxu0
      %v439 = vsel %vm303, %v436, 0
      %441 = vmatpush.msra.mxu0 0.0
      %442 = vmatpush.msra.mxu0 0.0
      %443 = vmatpush.msra.mxu0 0.0
      %444 = vmatpush.msra.mxu0 0.0
      %445 = vmatpush.msra.mxu0 0.0
      %446 = vmatpush.msra.mxu0 0.0
      %447 = vmatpush.msra.mxu0 0.0
      %448 = vmatpush.msra.mxu0 0.0
      %449 = vmatpush.msra.mxu0 0.0
      %450 = vmatpush.msra.mxu0 0.0
      %451 = vmatpush.msra.mxu0 0.0
      %452 = vmatpush.msra.mxu0 0.0
      %453 = vmatpush.msra.mxu0 0.0
      %454 = vmatpush.msra.mxu0 0.0
      %455 = vmatpush.msra.mxu0 0.0
      %456 = vmatpush.msra.mxu0 %v300
      %457 = vmatmul.f32.gmra.mxu0 %v439
      %v458 = vpop.f32.mrf.mxu0
      %v459 = vadd.f32 0.0, %v458
      %460 = vdwg.mxu0
      %v462 = vsel %vm303, %v370, 0
      %464 = vmatpush.msra.mxu0 0.0
      %465 = vmatpush.msra.mxu0 0.0
      %466 = vmatpush.msra.mxu0 0.0
      %467 = vmatpush.msra.mxu0 0.0
      %468 = vmatpush.msra.mxu0 0.0
      %469 = vmatpush.msra.mxu0 0.0
      %470 = vmatpush.msra.mxu0 0.0
      %471 = vmatpush.msra.mxu0 0.0
      %472 = vmatpush.msra.mxu0 0.0
      %473 = vmatpush.msra.mxu0 0.0
      %474 = vmatpush.msra.mxu0 0.0
      %475 = vmatpush.msra.mxu0 0.0
      %476 = vmatpush.msra.mxu0 0.0
      %477 = vmatpush.msra.mxu0 0.0
      %478 = vmatpush.msra.mxu0 0.0
      %479 = vmatpush.msra.mxu0 %v299
      %480 = vmatmul.f32.gmra.mxu0 %v462
      %v481 = vpop.f32.mrf.mxu0
      %v482 = vadd.f32 %v459, %v481
      %483 = vdwg.mxu0
      %484 = vrot.lane.b32.xlu0 %v296, 112
      %v485 = vpop.permute.xlu0 %484
      %486 = vrot.lane.b32.xlu0 %v297, 112
      %v487 = vpop.permute.xlu0 %486
      %v488 = vsel %vm303, %v485, 0
      %v490 = vsel %vm303, %v487, 0
      %492 = vmatpush.xpose.msra.mxu0 0.0
      %493 = vmatpush.xpose.msra.mxu0 0.0
      %494 = vmatpush.xpose.msra.mxu0 0.0
      %495 = vmatpush.xpose.msra.mxu0 0.0
      %496 = vmatpush.xpose.msra.mxu0 0.0
      %497 = vmatpush.xpose.msra.mxu0 0.0
      %498 = vmatpush.xpose.msra.mxu0 0.0
      %499 = vmatpush.xpose.msra.mxu0 0.0
      %500 = vmatpush.xpose.msra.mxu0 0.0
      %501 = vmatpush.xpose.msra.mxu0 0.0
      %502 = vmatpush.xpose.msra.mxu0 0.0
      %503 = vmatpush.xpose.msra.mxu0 0.0
      %504 = vmatpush.xpose.msra.mxu0 0.0
      %505 = vmatpush.xpose.msra.mxu0 0.0
      %506 = vmatpush.xpose.msra.mxu0 0.0
      %507 = vmatpush.xpose.msra.mxu0 %v490
      %508 = vmatmul.f32.gmra.mxu0 %v488
      %v509 = vpop.f32.mrf.mxu0
      %v510 = vadd.f32 0.0, %v509
      %511 = vdwg.mxu0
      %v512 = vsel %vm333, -1e+30, %v510
      %v513 = vsel %vm303, %v512, -inf
      %514 = vmax.xlane.f32.xlu0 %v513
      %v515 = vpop.xlane.xlu0 %514
      %v516 = vsub.f32 %v512, %v515
      %v517 = vmul.f32 %v516, 1.442695
      %v518 = vpow.pop %v517
      %v519 = vsel %vm303, %v518, 0.0
      %520 = vadd.xlane.f32.xlu0 %v519
      %v521 = vpop.xlane.xlu0 %520
      %v522 = vrcp.pop %v521
      %v523 = vmul.f32 %v518, %v522
      %524 = vrot.lane.b32.xlu0 %v297, 80
      %v525 = vpop.permute.xlu0 %524
      %v528 = vsel %vm303, %v523, 0
      %530 = vmatpush.msra.mxu0 0.0
      %531 = vmatpush.msra.mxu0 0.0
      %532 = vmatpush.msra.mxu0 0.0
      %533 = vmatpush.msra.mxu0 0.0
      %534 = vmatpush.msra.mxu0 0.0
      %535 = vmatpush.msra.mxu0 0.0
      %536 = vmatpush.msra.mxu0 0.0
      %537 = vmatpush.msra.mxu0 0.0
      %538 = vmatpush.msra.mxu0 0.0
      %539 = vmatpush.msra.mxu0 0.0
      %540 = vmatpush.msra.mxu0 0.0
      %541 = vmatpush.msra.mxu0 0.0
      %542 = vmatpush.msra.mxu0 0.0
      %543 = vmatpush.msra.mxu0 0.0
      %544 = vmatpush.msra.mxu0 0.0
      %545 = vmatpush.msra.mxu0 %v525
      %546 = vmatmul.f32.gmra.mxu0 %v528
      %v547 = vpop.f32.mrf.mxu0
      %v548 = vadd.f32 0.0, %v547
      %549 = vdwg.mxu0
      %v551 = vsel %vm303, %v548, 0
      %553 = vmatpush.msra.mxu0 0.0
      %554 = vmatpush.msra.mxu0 0.0
      %555 = vmatpush.msra.mxu0 0.0
      %556 = vmatpush.msra.mxu0 0.0
      %557 = vmatpush.msra.mxu0 0.0
      %558 = vmatpush.msra.mxu0 0.0
      %559 = vmatpush.msra.mxu0 0.0
      %560 = vmatpush.msra.mxu0 0.0
      %561 = vmatpush.msra.mxu0 0.0
      %562 = vmatpush.msra.mxu0 0.0
      %563 = vmatpush.msra.mxu0 0.0
      %564 = vmatpush.msra.mxu0 0.0
      %565 = vmatpush.msra.mxu0 0.0
      %566 = vmatpush.msra.mxu0 0.0
      %567 = vmatpush.msra.mxu0 0.0
      %568 = vmatpush.msra.mxu0 %v301
      %569 = vmatmul.f32.gmra.mxu0 %v551
      %v570 = vpop.f32.mrf.mxu0
      %v571 = vadd.f32 0.0, %v570
      %572 = vdwg.mxu0
      %v573 = vadd.f32 %v482, %v571
      %574 = vrot.lane.b32.xlu0 %v296, 104
      %v575 = vpop.permute.xlu0 %574
      %576 = vrot.lane.b32.xlu0 %v297, 104
      %v577 = vpop.permute.xlu0 %576
      %v578 = vsel %vm303, %v575, 0
      %v580 = vsel %vm303, %v577, 0
      %582 = vmatpush.xpose.msra.mxu0 0.0
      %583 = vmatpush.xpose.msra.mxu0 0.0
      %584 = vmatpush.xpose.msra.mxu0 0.0
      %585 = vmatpush.xpose.msra.mxu0 0.0
      %586 = vmatpush.xpose.msra.mxu0 0.0
      %587 = vmatpush.xpose.msra.mxu0 0.0
      %588 = vmatpush.xpose.msra.mxu0 0.0
      %589 = vmatpush.xpose.msra.mxu0 0.0
      %590 = vmatpush.xpose.msra.mxu0 0.0
      %591 = vmatpush.xpose.msra.mxu0 0.0
      %592 = vmatpush.xpose.msra.mxu0 0.0
      %593 = vmatpush.xpose.msra.mxu0 0.0
      %594 = vmatpush.xpose.msra.mxu0 0.0
      %595 = vmatpush.xpose.msra.mxu0 0.0
      %596 = vmatpush.xpose.msra.mxu0 0.0
      %597 = vmatpush.xpose.msra.mxu0 %v580
      %598 = vmatmul.f32.gmra.mxu0 %v578
      %v599 = vpop.f32.mrf.mxu0
      %v600 = vadd.f32 0.0, %v599
      %601 = vdwg.mxu0
      %v602 = vsel %vm333, -1e+30, %v600
      %v603 = vsel %vm303, %v602, -inf
      %604 = vmax.xlane.f32.xlu0 %v603
      %v605 = vpop.xlane.xlu0 %604
      %v606 = vsub.f32 %v602, %v605
      %v607 = vmul.f32 %v606, 1.442695
      %v608 = vpow.pop %v607
      %v609 = vsel %vm303, %v608, 0.0
      %610 = vadd.xlane.f32.xlu0 %v609
      %v611 = vpop.xlane.xlu0 %610
      %v612 = vrcp.pop %v611
      %v613 = vmul.f32 %v608, %v612
      %614 = vrot.lane.b32.xlu0 %v297, 72
      %v615 = vpop.permute.xlu0 %614
      %v618 = vsel %vm303, %v613, 0
      %620 = vmatpush.msra.mxu0 0.0
      %621 = vmatpush.msra.mxu0 0.0
      %622 = vmatpush.msra.mxu0 0.0
      %623 = vmatpush.msra.mxu0 0.0
      %624 = vmatpush.msra.mxu0 0.0
      %625 = vmatpush.msra.mxu0 0.0
      %626 = vmatpush.msra.mxu0 0.0
      %627 = vmatpush.msra.mxu0 0.0
      %628 = vmatpush.msra.mxu0 0.0
      %629 = vmatpush.msra.mxu0 0.0
      %630 = vmatpush.msra.mxu0 0.0
      %631 = vmatpush.msra.mxu0 0.0
      %632 = vmatpush.msra.mxu0 0.0
      %633 = vmatpush.msra.mxu0 0.0
      %634 = vmatpush.msra.mxu0 0.0
      %635 = vmatpush.msra.mxu0 %v615
      %636 = vmatmul.f32.gmra.mxu0 %v618
      %v637 = vpop.f32.mrf.mxu0
      %v638 = vadd.f32 0.0, %v637
      %639 = vdwg.mxu0
      %v641 = vsel %vm303, %v638, 0
      %643 = vmatpush.msra.mxu0 0.0
      %644 = vmatpush.msra.mxu0 0.0
      %645 = vmatpush.msra.mxu0 0.0
      %646 = vmatpush.msra.mxu0 0.0
      %647 = vmatpush.msra.mxu0 0.0
      %648 = vmatpush.msra.mxu0 0.0
      %649 = vmatpush.msra.mxu0 0.0
      %650 = vmatpush.msra.mxu0 0.0
      %651 = vmatpush.msra.mxu0 0.0
      %652 = vmatpush.msra.mxu0 0.0
      %653 = vmatpush.msra.mxu0 0.0
      %654 = vmatpush.msra.mxu0 0.0
      %655 = vmatpush.msra.mxu0 0.0
      %656 = vmatpush.msra.mxu0 0.0
      %657 = vmatpush.msra.mxu0 0.0
      %658 = vmatpush.msra.mxu0 %v302
      %659 = vmatmul.f32.gmra.mxu0 %v641
      %v660 = vpop.f32.mrf.mxu0
      %v661 = vadd.f32 0.0, %v660
      %662 = vdwg.mxu0
      %v663 = vadd.f32 %v573, %v661
      %v664 = vld [vmem:[%s4] sm:$0x1]
      %v666 = vperm.slane %v664, 0
      %v668 = vadd.f32 %v663, %v666
      %v669 = vld [vmem:[%s290] sm:$0xff]
      %v670 = vadd.f32 %v669, %v668
      %vm671 = vcmask 261120
      %672 = vst.msk [vmem:[%s294] sm:$0xff] %vm671, %v670
      %p673 = scmp.lt.s32.totalorder %s17, 1
      %s674 = scalar_select %p673, %s17, 1
      %s675 = smul.addr %s674, 8
      %s676 = scalar_lea.vmem %s6, %s675
      // Predicated region
      $region45: #{closed_call.19} parent=43 // pred_check
        %p677 = pneg %p181
      $region46: #{closed_call.19} parent=43 // pred_check_branch
        %679 = sbr.rel (%p677) target = $region48
      $region47: #{closed_call.19} parent=43 // pred_region
        _
      $region48: #{closed_call.19} parent=43 // pred_fallthru
        _
    $region44: #{closed_call.19} parent=5 // pred_fallthru
      _
    %p680 = scmp.le.s32.totalorder 2, %s12
    // Predicated region
    $region49: #{closed_call.19} parent=5 // pred_check
      %p681 = pneg %p680
    $region50: #{closed_call.19} parent=5 // pred_check_branch
      %683 = sbr.rel (%p681) target = $region52
    $region51: #{closed_call.19} parent=5 // pred_region
      %s684 = ssub.s32 %s12, 2
      // Predicated region
      $region53: #{closed_call.19} parent=51 // pred_check
        %p685 = pneg %p187
      $region54: #{closed_call.19} parent=51 // pred_check_branch
        %687 = sbr.rel (%p685) target = $region56
      $region55: #{closed_call.19} parent=51 // pred_region
        %p688 = scmp.lt.s32.totalorder %s18, 1
        %s689 = scalar_select %p688, %s18, 1
        %s690 = smul.addr %s689, 8
        %s691 = scalar_lea.vmem %s6, %s690
      $region56: #{closed_call.19} parent=51 // pred_fallthru
        _
    $region52: #{closed_call.19} parent=5 // pred_fallthru
      _
  $region6: #{closed_call.19} parent=0 // loop_footer
    %s16 = sadd.s32 1, %s12
  $region7: #{closed_call.19} parent=0 // loop_footer_branch
    %11 = sbr.rel target = $region3
  $region8: #{closed_call.19} parent=0 // loop_exit
    _

// kernel: closed_call.20
$region0: #{closed_call.20}
  #allocation0 [shape = 'u32[]', space=smem, size = 0x4, offset = 0x4, fixed_abs, tag = 'smem constant byte address 0x4 - core index']
  #allocation1 [shape = 'u32[72,128]{1,0:T(1,128)}', space=vmem, size = 0x9000, scoped, tag = 'internal scratch']
  %s0 = inlined_call_operand.vmem [shape: f32[16,32], index: 0, kind: input, shape index: {}]
  %s1 = inlined_call_operand.vmem [shape: f32[1,32], index: 1, kind: input, shape index: {}]
  %s2 = inlined_call_operand.vmem [shape: f32[1,32], index: 2, kind: input, shape index: {}]
  %s3 = inlined_call_operand.vmem [shape: f32[32,64], index: 3, kind: input, shape index: {}]
  %s4 = inlined_call_operand.vmem [shape: f32[1,64], index: 4, kind: input, shape index: {}]
  %s5 = inlined_call_operand.vmem [shape: f32[64,32], index: 5, kind: input, shape index: {}]
  %s6 = inlined_call_operand.vmem [shape: f32[1,32], index: 6, kind: input, shape index: {}]
  %s7 = inlined_call_operand.vmem [shape: f32[16,32], index: 7, kind: output, shape index: {}]
  %s8 = sld [smem:[#allocation0]]
  $region38: #{closed_call.20} parent=0
    _
  %s10 = ssub.s32 1, %s8
  %s11 = scalar_select 0, %s10, %s8
  // Predicated region
  $region2: #{closed_call.20} parent=0 // pred_check
    _
  $region3: #{closed_call.20} parent=0 // pred_check_branch
    %13 = sbr.rel (0) target = $region5
  $region4: #{closed_call.20} parent=0 // pred_region
    _
  $region5: #{closed_call.20} parent=0 // pred_fallthru
    _
  // Predicated region
  $region6: #{closed_call.20} parent=0 // pred_check
    _
  $region7: #{closed_call.20} parent=0 // pred_check_branch
    %15 = sbr.rel (0) target = $region9
  $region8: #{closed_call.20} parent=0 // pred_region
    _
  $region9: #{closed_call.20} parent=0 // pred_fallthru
    _
  // Predicated region
  $region10: #{closed_call.20} parent=0 // pred_check
    _
  $region11: #{closed_call.20} parent=0 // pred_check_branch
    %17 = sbr.rel (0) target = $region13
  $region12: #{closed_call.20} parent=0 // pred_region
    _
  $region13: #{closed_call.20} parent=0 // pred_fallthru
    _
  // Predicated region
  $region14: #{closed_call.20} parent=0 // pred_check
    _
  $region15: #{closed_call.20} parent=0 // pred_check_branch
    %19 = sbr.rel (0) target = $region17
  $region16: #{closed_call.20} parent=0 // pred_region
    _
  $region17: #{closed_call.20} parent=0 // pred_fallthru
    _
  // Predicated region
  $region18: #{closed_call.20} parent=0 // pred_check
    _
  $region19: #{closed_call.20} parent=0 // pred_check_branch
    %21 = sbr.rel (0) target = $region21
  $region20: #{closed_call.20} parent=0 // pred_region
    _
  $region21: #{closed_call.20} parent=0 // pred_fallthru
    _
  // Predicated region
  $region22: #{closed_call.20} parent=0 // pred_check
    _
  $region23: #{closed_call.20} parent=0 // pred_check_branch
    %23 = sbr.rel (0) target = $region25
  $region24: #{closed_call.20} parent=0 // pred_region
    _
  $region25: #{closed_call.20} parent=0 // pred_fallthru
    _
  // Predicated region
  $region26: #{closed_call.20} parent=0 // pred_check
    _
  $region27: #{closed_call.20} parent=0 // pred_check_branch
    %25 = sbr.rel (0) target = $region29
  $region28: #{closed_call.20} parent=0 // pred_region
    _
  $region29: #{closed_call.20} parent=0 // pred_fallthru
    _
  %v26 = vld [vmem:[%s0] sm:$0xff]
  %v27 = vld [vmem:[%s0 + $0x8] sm:$0xff]
  %vm28 = vcmask 261120
  %v29 = vsel %vm28, %v26, 0.0
  %30 = vadd.xlane.f32.xlu0 %v29
  %v31 = vpop.xlane.xlu0 %30
  %v32 = vsel %vm28, %v27, 0.0
  %33 = vadd.xlane.f32.xlu0 %v32
  %v34 = vpop.xlane.xlu0 %33
  %v35 = vrcp.pop 32.0
  %v36 = vmul.f32 32.0, %v35
  %v37 = vsub.f32 1.0, %v36
  %v38 = vmul.f32 %v35, %v37
  %v39 = vadd.f32 %v35, %v38
  %vm40 = vweird.f32 %v35
  %v41 = vsel %vm40, %v35, %v39
  %v42 = vmul.f32 %v31, %v41
  %v43 = vmul.f32 %v34, %v41
  %v44 = vsub.f32 %v26, %v42
  %v45 = vsub.f32 %v27, %v43
  %v46 = vmul.f32 %v44, %v44
  %v47 = vmul.f32 %v45, %v45
  %v48 = vsel %vm28, %v46, 0.0
  %49 = vadd.xlane.f32.xlu0 %v48
  %v50 = vpop.xlane.xlu0 %49
  %v51 = vsel %vm28, %v47, 0.0
  %52 = vadd.xlane.f32.xlu0 %v51
  %v53 = vpop.xlane.xlu0 %52
  %v54 = vmul.f32 %v50, %v41
  %v55 = vmul.f32 %v53, %v41
  %v56 = vadd.f32 %v54, 1e-05
  %v57 = vadd.f32 %v55, 1e-05
  %v58 = vrsqrt.pop %v56
  %v59 = vmul.f32 %v58, %v56
  %v60 = vmul.f32 %v59, %v58
  %v61 = vmul.f32 0.5, %v60
  %v62 = vsub.f32 1.5, %v61
  %v63 = vmul.f32 %v58, %v62
  %vm64 = vweird.f32 %v56
  %vm65 = vweird.f32 %v58
  %vm66 = vmor %vm64, %vm65
  %v67 = vsel %vm66, %v58, %v63
  %v68 = vrsqrt.pop %v57
  %v69 = vmul.f32 %v68, %v57
  %v70 = vmul.f32 %v69, %v68
  %v71 = vmul.f32 0.5, %v70
  %v72 = vsub.f32 1.5, %v71
  %v73 = vmul.f32 %v68, %v72
  %vm74 = vweird.f32 %v57
  %vm75 = vweird.f32 %v68
  %vm76 = vmor %vm74, %vm75
  %v77 = vsel %vm76, %v68, %v73
  %v78 = vmul.f32 %v44, %v67
  %v79 = vmul.f32 %v45, %v77
  %v80 = vld [vmem:[%s1] sm:$0x1]
  %v82 = vperm.slane %v80, 0
  %v84 = vmul.f32 %v78, %v82
  %v85 = vmul.f32 %v79, %v82
  %v86 = vld [vmem:[%s2] sm:$0x1]
  %v88 = vperm.slane %v86, 0
  %v90 = vadd.f32 %v84, %v88
  %v91 = vadd.f32 %v85, %v88
  %v92 = vld [vmem:[%s3] sm:$0xff]
  %v93 = vld [vmem:[%s3 + $0x8] sm:$0xff]
  %v94 = vld [vmem:[%s3 + $0x10] sm:$0xff]
  %v95 = vld [vmem:[%s3 + $0x18] sm:$0xff]
  %v96 = vld [vmem:[%s4] sm:$0x1]
  %v98 = vperm.slane %v96, 0
  %v101 = vsel %vm28, %v90, 0
  %v104 = vsel %vm28, %v91, 0
  %106 = vmatpush.msra.mxu0 0.0
  %107 = vmatpush.msra.mxu0 0.0
  %108 = vmatpush.msra.mxu0 0.0
  %109 = vmatpush.msra.mxu0 0.0
  %110 = vmatpush.msra.mxu0 0.0
  %111 = vmatpush.msra.mxu0 0.0
  %112 = vmatpush.msra.mxu0 0.0
  %113 = vmatpush.msra.mxu0 0.0
  %114 = vmatpush.msra.mxu0 0.0
  %115 = vmatpush.msra.mxu0 0.0
  %116 = vmatpush.msra.mxu0 0.0
  %117 = vmatpush.msra.mxu0 0.0
  %118 = vmatpush.msra.mxu0 %v95
  %119 = vmatpush.msra.mxu0 %v94
  %120 = vmatpush.msra.mxu0 %v93
  %121 = vmatpush.msra.mxu0 %v92
  %122 = vmatmul.f32.gmra.mxu0 %v101
  %v123 = vpop.f32.mrf.mxu0
  %v124 = vadd.f32 %v98, %v123
  %125 = vmatmul.f32.gmra.mxu0 %v104
  %v126 = vpop.f32.mrf.mxu0
  %v127 = vadd.f32 %v98, %v126
  %128 = vdwg.mxu0
  %v129 = vmax.f32 %v124, 0.0
  %v130 = vmax.f32 %v127, 0.0
  %v131 = vld [vmem:[%s5] sm:$0xff]
  %v132 = vld [vmem:[%s5 + $0x8] sm:$0xff]
  %v133 = vld [vmem:[%s5 + $0x10] sm:$0xff]
  %v134 = vld [vmem:[%s5 + $0x18] sm:$0xff]
  %v135 = vld [vmem:[%s5 + $0x20] sm:$0xff]
  %v136 = vld [vmem:[%s5 + $0x28] sm:$0xff]
  %v137 = vld [vmem:[%s5 + $0x30] sm:$0xff]
  %v138 = vld [vmem:[%s5 + $0x38] sm:$0xff]
  %v139 = vld [vmem:[%s6] sm:$0x1]
  %v141 = vperm.slane %v139, 0
  %vm143 = vcmask 523264
  %v145 = vsel %vm143, %v129, 0
  %v148 = vsel %vm143, %v130, 0
  %150 = vmatpush.msra.mxu0 0.0
  %151 = vmatpush.msra.mxu0 0.0
  %152 = vmatpush.msra.mxu0 0.0
  %153 = vmatpush.msra.mxu0 0.0
  %154 = vmatpush.msra.mxu0 0.0
  %155 = vmatpush.msra.mxu0 0.0
  %156 = vmatpush.msra.mxu0 0.0
  %157 = vmatpush.msra.mxu0 0.0
  %158 = vmatpush.msra.mxu0 %v138
  %159 = vmatpush.msra.mxu0 %v137
  %160 = vmatpush.msra.mxu0 %v136
  %161 = vmatpush.msra.mxu0 %v135
  %162 = vmatpush.msra.mxu0 %v134
  %163 = vmatpush.msra.mxu0 %v133
  %164 = vmatpush.msra.mxu0 %v132
  %165 = vmatpush.msra.mxu0 %v131
  %166 = vmatmul.f32.gmra.mxu0 %v145
  %v167 = vpop.f32.mrf.mxu0
  %v168 = vadd.f32 %v141, %v167
  %169 = vmatmul.f32.gmra.mxu0 %v148
  %v170 = vpop.f32.mrf.mxu0
  %v171 = vadd.f32 %v141, %v170
  %172 = vdwg.mxu0
  %v173 = vadd.f32 %v26, %v168
  %v174 = vadd.f32 %v27, %v171
  %175 = vst.msk [vmem:[%s7] sm:$0xff] %vm28, %v173
  %176 = vst.msk [vmem:[%s7 + $0x8] sm:$0xff] %vm28, %v174
  // Predicated region
  $region30: #{closed_call.20} parent=0 // pred_check
    _
  $region31: #{closed_call.20} parent=0 // pred_check_branch
    %178 = sbr.rel (0) target = $region33
  $region32: #{closed_call.20} parent=0 // pred_region
    _
  $region33: #{closed_call.20} parent=0 // pred_fallthru
    _
  // Predicated region
  $region34: #{closed_call.20} parent=0 // pred_check
    _
  $region35: #{closed_call.20} parent=0 // pred_check_branch
    %180 = sbr.rel (0) target = $region37
  $region36: #{closed_call.20} parent=0 // pred_region
    _
  $region37: #{closed_call.20} parent=0 // pred_fallthru
    _

</llo_original>
